<compile_context>
chip_gen: v7x
topology: tpu7x:2x2x1
jax: 0.10.0
libtpu: 0.0.40
codegen_flags: <defaults>
</compile_context>

<pallas_src>
import math

import jax
import jax.numpy as jnp
from jax.experimental import pallas as pl
from jax.experimental.pallas import tpu as pltpu


def _default_vmem_limit():
    """Generation-aware VMEM budget (v5e/v6e: 128 MiB, v7x: 64 MiB)."""
    try:
        cap = int(pltpu.get_tpu_info().vmem_capacity_bytes)
        return int(min((cap * 3) // 4, 96 * 1024 * 1024))
    except Exception:
        return 48 * 1024 * 1024          # safe fallback on every generation


_VMEM_LIMIT = _default_vmem_limit()


# ----------------------------------------------------------------------------
# In-kernel 3x3 "same" conv in transposed layout (channels on sublanes,
# flattened spatial on lanes).
#   h: (Cin, H*W) float    w: (Cout, 9*Cin) bf16, columns ordered (dy, dx, ci)
#   b: (Cout, 1)  f32      returns f32 (Cout, H*W)
# A real PyTorch (Cout, Cin, 3, 3) weight maps via
#   w.transpose(0, 2, 3, 1).reshape(Cout, 9*Cin).
# The 9 shifted patches are lane-shifts of a flat zero-padded copy (W+1 zero
# lanes on each side); taps with dx != 1 additionally get a per-column mask
# because a +-1 lane shift wraps across image rows.
# ----------------------------------------------------------------------------
def _conv3x3_t(h, w, b, *, H, W, relu=False):
    Cin, HW = h.shape
    assert HW == H * W
    pad = W + 1
    hb = h.astype(jnp.bfloat16)
    zpad = jnp.zeros((Cin, pad), jnp.bfloat16)
    hp = jnp.concatenate([zpad, hb, zpad], axis=1)           # (Cin, HW + 2W + 2)

    x_idx = jax.lax.broadcasted_iota(jnp.int32, (Cin, HW), 1) % W
    not_left = x_idx > 0                                     # valid mask, dx == 0
    not_right = x_idx < (W - 1)                              # valid mask, dx == 2
    zeros = jnp.zeros((Cin, HW), jnp.bfloat16)

    patches = []
    for dy in range(3):
        for dx in range(3):
            off = (dy - 1) * W + (dx - 1)
            cand = hp[:, pad + off: pad + off + HW]          # pure lane shift
            if dx == 0:
                cand = jnp.where(not_left, cand, zeros)
            elif dx == 2:
                cand = jnp.where(not_right, cand, zeros)
            patches.append(cand)
    patches = jnp.concatenate(patches, axis=0)               # (9*Cin, HW) bf16

    acc = jnp.dot(w, patches, preferred_element_type=jnp.float32)   # (Cout, HW)
    acc = acc + b
    if relu:
        acc = jnp.maximum(acc, 0.0)
    return acc


# ----------------------------------------------------------------------------
# Kernel 1: standalone 3x3 conv (+ bias, optional ReLU), one image per step.
# Used for the upsampler and tail convolutions.
# ----------------------------------------------------------------------------
def _make_conv_kernel(H, W, relu):
    def kernel(x_ref, w_ref, b_ref, o_ref):
        acc = _conv3x3_t(x_ref[0], w_ref[...], b_ref[...], H=H, W=W, relu=relu)
        o_ref[0] = acc.astype(o_ref.dtype)
    return kernel


def conv3x3(x, w, b, *, H, W, relu=False):
    """x: (N, Cin, H*W) f32 -> (N, Cout, H*W) f32.  w: (Cout, 9*Cin) bf16."""
    N, Cin, HW = x.shape
    Cout = w.shape[0]
    assert HW == H * W and w.shape[1] == 9 * Cin
    return pl.pallas_call(
        _make_conv_kernel(H, W, relu),
        out_shape=jax.ShapeDtypeStruct((N, Cout, HW), jnp.float32),
        grid=(N,),
        in_specs=[
            pl.BlockSpec((1, Cin, HW), lambda n: (n, 0, 0)),
            pl.BlockSpec((Cout, 9 * Cin), lambda n: (0, 0)),
            pl.BlockSpec((Cout, 1), lambda n: (0, 0)),
        ],
        out_specs=pl.BlockSpec((1, Cout, HW), lambda n: (n, 0, 0)),
        compiler_params=pltpu.CompilerParams(
            dimension_semantics=("parallel",),
            vmem_limit_bytes=_VMEM_LIMIT),
    )(x, w, b)


# ----------------------------------------------------------------------------
# Kernel 2: fully fused EDSR head + body.
#   x0 = conv(x)                                   (head)
#   h  = x0
#   repeat n_resblocks: t = relu(conv(h)); h = res_scale*conv(t) + h
#   out = conv(h) + x0                             (trailing body conv + skip)
# All intermediate activations stay in VMEM; one image per grid step.
# ----------------------------------------------------------------------------
def _make_body_kernel(H, W, nres, res_scale):
    def kernel(x_ref, hw_ref, hb_ref, rw_ref, rb_ref, tw_ref, tb_ref, o_ref):
        x0 = _conv3x3_t(x_ref[0], hw_ref[...], hb_ref[...], H=H, W=W)   # (C, HW)

        def block(i, h):
            wi = rw_ref[i]                       # (2, C, 9C) dynamic weight load
            bi = rb_ref[i]                       # (2, C, 1)
            t = _conv3x3_t(h, wi[0], bi[0], H=H, W=W, relu=True)
            r = _conv3x3_t(t, wi[1], bi[1], H=H, W=W)
            if res_scale != 1.0:
                r = r * res_scale
            return r + h

        h = jax.lax.fori_loop(0, nres, block, x0)
        res = _conv3x3_t(h, tw_ref[...], tb_ref[...], H=H, W=W)
        o_ref[0] = (res + x0).astype(o_ref.dtype)
    return kernel


def edsr_head_body(x, head_w, head_b, res_w, res_b, tail_w, tail_b,
                   *, H, W, res_scale):
    """x: (N, n_colors, H*W).  head_w: (C, 9*n_colors).  res_w: (nres, 2, C, 9C).
    res_b: (nres, 2, C, 1).  tail_w: (C, 9C).  tail_b: (C, 1)."""
    N, n_colors, HW = x.shape
    C = head_w.shape[0]
    nres = res_w.shape[0]
    return pl.pallas_call(
        _make_body_kernel(H, W, nres, float(res_scale)),
        out_shape=jax.ShapeDtypeStruct((N, C, HW), jnp.float32),
        grid=(N,),
        in_specs=[
            pl.BlockSpec((1, n_colors, HW), lambda n: (n, 0, 0)),
            pl.BlockSpec((C, 9 * n_colors), lambda n: (0, 0)),
            pl.BlockSpec((C, 1), lambda n: (0, 0)),
            pl.BlockSpec((nres, 2, C, 9 * C), lambda n: (0, 0, 0, 0)),
            pl.BlockSpec((nres, 2, C, 1), lambda n: (0, 0, 0, 0)),
            pl.BlockSpec((C, 9 * C), lambda n: (0, 0)),
            pl.BlockSpec((C, 1), lambda n: (0, 0)),
        ],
        out_specs=pl.BlockSpec((1, C, HW), lambda n: (n, 0, 0)),
        compiler_params=pltpu.CompilerParams(
            dimension_semantics=("parallel",),
            vmem_limit_bytes=_VMEM_LIMIT),
    )(x, head_w, head_b, res_w, res_b, tail_w, tail_b)


# ----------------------------------------------------------------------------
# Layout glue (outside kernels): PixelShuffle in the transposed layout.
# Input channel index co*r*r + i*r + j -> output pixel (y*r+i, x*r+j), channel
# co (matches nn.PixelShuffle).
# ----------------------------------------------------------------------------
def _pixel_shuffle_t(y, H, W, r):
    N, C, HW = y.shape
    Co = C // (r * r)
    y = y.reshape(N, Co, r, r, H, W)
    y = jnp.transpose(y, (0, 1, 4, 2, 5, 3))      # N, Co, H, i, W, j
    return y.reshape(N, Co, (H * r) * (W * r))


# ----------------------------------------------------------------------------
# Parameter init (deterministic, synthetic).  Weights stored directly in the
# (Cout, 9*Cin) bf16 layout the kernels consume; a real PyTorch
# (Cout, Cin, 3, 3) weight maps via w.transpose(0, 2, 3, 1).reshape(Cout, 9*Cin).
# ----------------------------------------------------------------------------
def _conv_params(key, cin, cout):
    k1, k2 = jax.random.split(key)
    w = jax.random.normal(k1, (cout, 9 * cin), jnp.float32) / math.sqrt(9 * cin)
    b = 0.01 * jax.random.normal(k2, (cout, 1), jnp.float32)
    return w.astype(jnp.bfloat16), b


def init_edsr_params(key, *, n_colors, n_feats, n_resblocks, scale,
                     no_upsampling):
    keys = jax.random.split(key, 2 * n_resblocks + 8)
    ki = iter(keys)
    params = {"head": _conv_params(next(ki), n_colors, n_feats)}
    rw, rb = [], []
    for _ in range(n_resblocks):
        w1, b1 = _conv_params(next(ki), n_feats, n_feats)
        w2, b2 = _conv_params(next(ki), n_feats, n_feats)
        rw.append(jnp.stack([w1, w2]))            # (2, C, 9C)
        rb.append(jnp.stack([b1, b2]))            # (2, C, 1)
    params["res_w"] = jnp.stack(rw)               # (nres, 2, C, 9C) bf16
    params["res_b"] = jnp.stack(rb)               # (nres, 2, C, 1)  f32
    params["body_tail"] = _conv_params(next(ki), n_feats, n_feats)
    if not no_upsampling:
        params["up"] = []
        if (scale & (scale - 1)) == 0:
            for _ in range(int(math.log2(scale))):
                params["up"].append(_conv_params(next(ki), n_feats, 4 * n_feats))
        elif scale == 3:
            params["up"].append(_conv_params(next(ki), n_feats, 9 * n_feats))
        else:
            raise NotImplementedError
        params["tail"] = _conv_params(next(ki), n_feats, n_colors)
    return params


# ----------------------------------------------------------------------------
# EDSR forward (matches EDSR.forward: head -> body -> += x -> tail)
# ----------------------------------------------------------------------------
def edsr_forward(x_nchw, params, *, res_scale, scale, no_upsampling):
    N, Cc, H, W = x_nchw.shape
    # NCHW -> (N, C, H*W): channels on sublanes, spatial on lanes (pure reshape)
    x = x_nchw.reshape(N, Cc, H * W)

    res = edsr_head_body(x, *params["head"], params["res_w"], params["res_b"],
                         *params["body_tail"], H=H, W=W, res_scale=res_scale)

    if no_upsampling:
        out, Ho, Wo = res, H, W
    else:
        y, Ho, Wo = res, H, W
        if (scale & (scale - 1)) == 0:
            for s in range(int(math.log2(scale))):
                w, b = params["up"][s]
                y = conv3x3(y, w, b, H=Ho, W=Wo)
                y = _pixel_shuffle_t(y, Ho, Wo, 2)
                Ho, Wo = Ho * 2, Wo * 2
        elif scale == 3:
            w, b = params["up"][0]
            y = conv3x3(y, w, b, H=Ho, W=Wo)
            y = _pixel_shuffle_t(y, Ho, Wo, 3)
            Ho, Wo = Ho * 3, Wo * 3
        else:
            raise NotImplementedError
        out = conv3x3(y, *params["tail"], H=Ho, W=Wo)        # tail conv

    Cout = out.shape[1]
    return out.reshape(N, Cout, Ho, Wo)                      # already NCHW order


# ----------------------------------------------------------------------------
if __name__ == "__main__":
    # Small synthetic EDSR config (args analogue):
    #   n_resblocks=2, n_feats=16, n_colors=4, scale=(2,), res_scale=1.0,
    #   no_upsampling=False
    N, n_colors, H, W = 2, 4, 16, 16
    n_feats, n_resblocks = 16, 2
    scale, res_scale = 2, 1.0
    no_upsampling = False

    key = jax.random.PRNGKey(0)
    kx, kp = jax.random.split(key)

    x = jax.random.normal(kx, (N, n_colors, H, W), jnp.float32)     # NCHW input
    params = init_edsr_params(kp, n_colors=n_colors, n_feats=n_feats,
                              n_resblocks=n_resblocks, scale=scale,
                              no_upsampling=no_upsampling)

    fwd = jax.jit(lambda a: edsr_forward(a, params, res_scale=res_scale,
                                         scale=scale,
                                         no_upsampling=no_upsampling))
    out = fwd(x)
    jax.block_until_ready(out)

    assert out.shape == (N, n_colors, H * scale, W * scale), out.shape
    print("KERNEL_OK")
</pallas_src>

<mosaic_0001>
module attributes {stable_mosaic.version = 11 : i64} {
  func.func @kernel(%arg0: i32, %arg1: memref<1x4x256xf32, #tpu.memory_space<vmem>>, %arg2: memref<16x36xbf16, #tpu.memory_space<vmem>>, %arg3: memref<16x1xf32, #tpu.memory_space<vmem>>, %arg4: memref<2x2x16x144xbf16, #tpu.memory_space<vmem>>, %arg5: memref<2x2x16x1xf32, #tpu.memory_space<vmem>>, %arg6: memref<16x144xbf16, #tpu.memory_space<vmem>>, %arg7: memref<16x1xf32, #tpu.memory_space<vmem>>, %arg8: memref<1x16x256xf32, #tpu.memory_space<vmem>>) attributes {dimension_semantics = [#tpu.dimension_semantics<parallel>], iteration_bounds = array<i64: 2>, scalar_prefetch = 0 : i64, scratch_operands = 0 : i64, tpu.core_type = #tpu.core_type<tc>, window_params = [{transform_indices = @transform_0, window_bounds = array<i64: 1, 4, 256>}, {pipeline_mode = #tpu.pipeline_mode<synchronous>, transform_indices = @transform_1, window_bounds = array<i64: 16, 36>}, {pipeline_mode = #tpu.pipeline_mode<synchronous>, transform_indices = @transform_2, window_bounds = array<i64: 16, 1>}, {pipeline_mode = #tpu.pipeline_mode<synchronous>, transform_indices = @transform_3, window_bounds = array<i64: 2, 2, 16, 144>}, {pipeline_mode = #tpu.pipeline_mode<synchronous>, transform_indices = @transform_4, window_bounds = array<i64: 2, 2, 16, 1>}, {pipeline_mode = #tpu.pipeline_mode<synchronous>, transform_indices = @transform_5, window_bounds = array<i64: 16, 144>}, {pipeline_mode = #tpu.pipeline_mode<synchronous>, transform_indices = @transform_6, window_bounds = array<i64: 16, 1>}, {transform_indices = @transform_7, window_bounds = array<i64: 1, 16, 256>}]} {
    %c0 = arith.constant 0 : index
    %c0_0 = arith.constant 0 : index
    %c0_1 = arith.constant 0 : index
    %0 = vector.load %arg1[%c0, %c0_0, %c0_1] : memref<1x4x256xf32, #tpu.memory_space<vmem>>, vector<1x4x256xf32>
    %1 = vector.shape_cast %0 : vector<1x4x256xf32> to vector<4x256xf32>
    %c0_2 = arith.constant 0 : index
    %c0_3 = arith.constant 0 : index
    %2 = vector.load %arg2[%c0_2, %c0_3] : memref<16x36xbf16, #tpu.memory_space<vmem>>, vector<16x36xbf16>
    %c0_4 = arith.constant 0 : index
    %c0_5 = arith.constant 0 : index
    %3 = vector.load %arg3[%c0_4, %c0_5] : memref<16x1xf32, #tpu.memory_space<vmem>>, vector<16x1xf32>
    %4 = arith.truncf %1 : vector<4x256xf32> to vector<4x256xbf16>
    %cst = arith.constant 0.000000e+00 : bf16
    %5 = vector.broadcast %cst : bf16 to vector<4x17xbf16>
    %6 = tpu.concatenate %5, %4, %5 in 1 : vector<4x17xbf16>, vector<4x256xbf16>, vector<4x17xbf16> -> vector<4x290xbf16>
    %7 = tpu.iota {dimensions = array<i32: 1>} : vector<4x256xi32>
    %c16_i32 = arith.constant 16 : i32
    %c0_i32 = arith.constant 0 : i32
    %8 = arith.cmpi eq, %c16_i32, %c0_i32 : i32
    %c1_i32 = arith.constant 1 : i32
    %9 = arith.select %8, %c1_i32, %c16_i32 : i32
    %10 = vector.broadcast %9 : i32 to vector<4x256xi32>
    %11 = arith.remsi %7, %10 : vector<4x256xi32>
    %c0_i32_6 = arith.constant 0 : i32
    %12 = vector.broadcast %c0_i32_6 : i32 to vector<4x256xi32>
    %13 = arith.cmpi ne, %11, %12 : vector<4x256xi32>
    %c0_i32_7 = arith.constant 0 : i32
    %14 = vector.broadcast %c0_i32_7 : i32 to vector<4x256xi32>
    %15 = arith.cmpi slt, %11, %14 : vector<4x256xi32>
    %c0_i32_8 = arith.constant 0 : i32
    %16 = arith.cmpi slt, %9, %c0_i32_8 : i32
    %17 = vector.broadcast %16 : i1 to vector<4x256xi1>
    %18 = vector.broadcast %17 : vector<4x256xi1> to vector<4x256xi1>
    %19 = arith.xori %15, %18 : vector<4x256xi1>
    %20 = arith.andi %19, %13 : vector<4x256xi1>
    %21 = vector.broadcast %9 : i32 to vector<4x256xi32>
    %22 = arith.addi %11, %21 : vector<4x256xi32>
    %23 = arith.select %20, %22, %11 : vector<4x256xi1>, vector<4x256xi32>
    %c0_i32_9 = arith.constant 0 : i32
    %24 = vector.broadcast %c0_i32_9 : i32 to vector<4x256xi32>
    %25 = arith.cmpi sgt, %23, %24 : vector<4x256xi32>
    %c15_i32 = arith.constant 15 : i32
    %26 = vector.broadcast %c15_i32 : i32 to vector<4x256xi32>
    %27 = arith.cmpi slt, %23, %26 : vector<4x256xi32>
    %cst_10 = arith.constant 0.000000e+00 : bf16
    %28 = vector.broadcast %cst_10 : bf16 to vector<4x256xbf16>
    %29 = vector.extract_strided_slice %6 {offsets = [0, 0], sizes = [4, 256], strides = [1, 1]} : vector<4x290xbf16> to vector<4x256xbf16>
    %30 = arith.select %25, %29, %28 : vector<4x256xi1>, vector<4x256xbf16>
    %31 = vector.extract_strided_slice %6 {offsets = [0, 1], sizes = [4, 256], strides = [1, 1]} : vector<4x290xbf16> to vector<4x256xbf16>
    %32 = vector.extract_strided_slice %6 {offsets = [0, 2], sizes = [4, 256], strides = [1, 1]} : vector<4x290xbf16> to vector<4x256xbf16>
    %33 = arith.select %27, %32, %28 : vector<4x256xi1>, vector<4x256xbf16>
    %34 = vector.extract_strided_slice %6 {offsets = [0, 16], sizes = [4, 256], strides = [1, 1]} : vector<4x290xbf16> to vector<4x256xbf16>
    %35 = arith.select %25, %34, %28 : vector<4x256xi1>, vector<4x256xbf16>
    %36 = vector.extract_strided_slice %6 {offsets = [0, 17], sizes = [4, 256], strides = [1, 1]} : vector<4x290xbf16> to vector<4x256xbf16>
    %37 = vector.extract_strided_slice %6 {offsets = [0, 18], sizes = [4, 256], strides = [1, 1]} : vector<4x290xbf16> to vector<4x256xbf16>
    %38 = arith.select %27, %37, %28 : vector<4x256xi1>, vector<4x256xbf16>
    %39 = vector.extract_strided_slice %6 {offsets = [0, 32], sizes = [4, 256], strides = [1, 1]} : vector<4x290xbf16> to vector<4x256xbf16>
    %40 = arith.select %25, %39, %28 : vector<4x256xi1>, vector<4x256xbf16>
    %41 = vector.extract_strided_slice %6 {offsets = [0, 33], sizes = [4, 256], strides = [1, 1]} : vector<4x290xbf16> to vector<4x256xbf16>
    %42 = vector.extract_strided_slice %6 {offsets = [0, 34], sizes = [4, 256], strides = [1, 1]} : vector<4x290xbf16> to vector<4x256xbf16>
    %43 = arith.select %27, %42, %28 : vector<4x256xi1>, vector<4x256xbf16>
    %44 = tpu.concatenate %30, %31, %33, %35, %36, %38, %40, %41, %43 in 0 : vector<4x256xbf16>, vector<4x256xbf16>, vector<4x256xbf16>, vector<4x256xbf16>, vector<4x256xbf16>, vector<4x256xbf16>, vector<4x256xbf16>, vector<4x256xbf16>, vector<4x256xbf16> -> vector<36x256xbf16>
    %cst_11 = arith.constant dense<0.000000e+00> : vector<16x256xf32>
    %45 = tpu.matmul %2, %44, %cst_11 {dimension_numbers = #tpu.dot_dimension_numbers<[1], [0], [0], [1], [0, 0, 1, 1], [], []>} : vector<16x36xbf16>, vector<36x256xbf16>, vector<16x256xf32> -> vector<16x256xf32>
    %46 = vector.broadcast %3 : vector<16x1xf32> to vector<16x256xf32>
    %47 = arith.addf %45, %46 : vector<16x256xf32>
    %c0_i32_12 = arith.constant 0 : i32
    %c2_i32 = arith.constant 2 : i32
    %48 = arith.addi %c0_i32_12, %c2_i32 : i32
    %c1_i32_13 = arith.constant 1 : i32
    %49 = scf.for %arg9 = %c0_i32_12 to %48 step %c1_i32_13 iter_args(%arg10 = %47) -> (vector<16x256xf32>)  : i32 {
      %100 = arith.index_cast %arg9 : i32 to index
      %c0_33 = arith.constant 0 : index
      %c0_34 = arith.constant 0 : index
      %c0_35 = arith.constant 0 : index
      %101 = vector.load %arg4[%100, %c0_33, %c0_34, %c0_35] : memref<2x2x16x144xbf16, #tpu.memory_space<vmem>>, vector<1x2x16x144xbf16>
      %102 = vector.shape_cast %101 : vector<1x2x16x144xbf16> to vector<2x16x144xbf16>
      %103 = arith.index_cast %arg9 : i32 to index
      %c0_36 = arith.constant 0 : index
      %c0_37 = arith.constant 0 : index
      %c0_38 = arith.constant 0 : index
      %104 = vector.load %arg5[%103, %c0_36, %c0_37, %c0_38] : memref<2x2x16x1xf32, #tpu.memory_space<vmem>>, vector<1x2x16x1xf32>
      %105 = vector.shape_cast %104 : vector<1x2x16x1xf32> to vector<2x16x1xf32>
      %106 = vector.extract_strided_slice %102 {offsets = [0, 0, 0], sizes = [1, 16, 144], strides = [1, 1, 1]} : vector<2x16x144xbf16> to vector<1x16x144xbf16>
      %107 = vector.shape_cast %106 : vector<1x16x144xbf16> to vector<16x144xbf16>
      %108 = vector.extract_strided_slice %105 {offsets = [0, 0, 0], sizes = [1, 16, 1], strides = [1, 1, 1]} : vector<2x16x1xf32> to vector<1x16x1xf32>
      %109 = vector.shape_cast %108 : vector<1x16x1xf32> to vector<16x1xf32>
      %110 = arith.truncf %arg10 : vector<16x256xf32> to vector<16x256xbf16>
      %cst_39 = arith.constant 0.000000e+00 : bf16
      %111 = vector.broadcast %cst_39 : bf16 to vector<16x17xbf16>
      %112 = tpu.concatenate %111, %110, %111 in 1 : vector<16x17xbf16>, vector<16x256xbf16>, vector<16x17xbf16> -> vector<16x290xbf16>
      %113 = tpu.iota {dimensions = array<i32: 1>} : vector<16x256xi32>
      %c16_i32_40 = arith.constant 16 : i32
      %c0_i32_41 = arith.constant 0 : i32
      %114 = arith.cmpi eq, %c16_i32_40, %c0_i32_41 : i32
      %c1_i32_42 = arith.constant 1 : i32
      %115 = arith.select %114, %c1_i32_42, %c16_i32_40 : i32
      %116 = vector.broadcast %115 : i32 to vector<16x256xi32>
      %117 = arith.remsi %113, %116 : vector<16x256xi32>
      %c0_i32_43 = arith.constant 0 : i32
      %118 = vector.broadcast %c0_i32_43 : i32 to vector<16x256xi32>
      %119 = arith.cmpi ne, %117, %118 : vector<16x256xi32>
      %c0_i32_44 = arith.constant 0 : i32
      %120 = vector.broadcast %c0_i32_44 : i32 to vector<16x256xi32>
      %121 = arith.cmpi slt, %117, %120 : vector<16x256xi32>
      %c0_i32_45 = arith.constant 0 : i32
      %122 = arith.cmpi slt, %115, %c0_i32_45 : i32
      %123 = vector.broadcast %122 : i1 to vector<16x256xi1>
      %124 = vector.broadcast %123 : vector<16x256xi1> to vector<16x256xi1>
      %125 = arith.xori %121, %124 : vector<16x256xi1>
      %126 = arith.andi %125, %119 : vector<16x256xi1>
      %127 = vector.broadcast %115 : i32 to vector<16x256xi32>
      %128 = arith.addi %117, %127 : vector<16x256xi32>
      %129 = arith.select %126, %128, %117 : vector<16x256xi1>, vector<16x256xi32>
      %c0_i32_46 = arith.constant 0 : i32
      %130 = vector.broadcast %c0_i32_46 : i32 to vector<16x256xi32>
      %131 = arith.cmpi sgt, %129, %130 : vector<16x256xi32>
      %c15_i32_47 = arith.constant 15 : i32
      %132 = vector.broadcast %c15_i32_47 : i32 to vector<16x256xi32>
      %133 = arith.cmpi slt, %129, %132 : vector<16x256xi32>
      %cst_48 = arith.constant 0.000000e+00 : bf16
      %134 = vector.broadcast %cst_48 : bf16 to vector<16x256xbf16>
      %135 = vector.extract_strided_slice %112 {offsets = [0, 0], sizes = [16, 256], strides = [1, 1]} : vector<16x290xbf16> to vector<16x256xbf16>
      %136 = arith.select %131, %135, %134 : vector<16x256xi1>, vector<16x256xbf16>
      %137 = vector.extract_strided_slice %112 {offsets = [0, 1], sizes = [16, 256], strides = [1, 1]} : vector<16x290xbf16> to vector<16x256xbf16>
      %138 = vector.extract_strided_slice %112 {offsets = [0, 2], sizes = [16, 256], strides = [1, 1]} : vector<16x290xbf16> to vector<16x256xbf16>
      %139 = arith.select %133, %138, %134 : vector<16x256xi1>, vector<16x256xbf16>
      %140 = vector.extract_strided_slice %112 {offsets = [0, 16], sizes = [16, 256], strides = [1, 1]} : vector<16x290xbf16> to vector<16x256xbf16>
      %141 = arith.select %131, %140, %134 : vector<16x256xi1>, vector<16x256xbf16>
      %142 = vector.extract_strided_slice %112 {offsets = [0, 17], sizes = [16, 256], strides = [1, 1]} : vector<16x290xbf16> to vector<16x256xbf16>
      %143 = vector.extract_strided_slice %112 {offsets = [0, 18], sizes = [16, 256], strides = [1, 1]} : vector<16x290xbf16> to vector<16x256xbf16>
      %144 = arith.select %133, %143, %134 : vector<16x256xi1>, vector<16x256xbf16>
      %145 = vector.extract_strided_slice %112 {offsets = [0, 32], sizes = [16, 256], strides = [1, 1]} : vector<16x290xbf16> to vector<16x256xbf16>
      %146 = arith.select %131, %145, %134 : vector<16x256xi1>, vector<16x256xbf16>
      %147 = vector.extract_strided_slice %112 {offsets = [0, 33], sizes = [16, 256], strides = [1, 1]} : vector<16x290xbf16> to vector<16x256xbf16>
      %148 = vector.extract_strided_slice %112 {offsets = [0, 34], sizes = [16, 256], strides = [1, 1]} : vector<16x290xbf16> to vector<16x256xbf16>
      %149 = arith.select %133, %148, %134 : vector<16x256xi1>, vector<16x256xbf16>
      %150 = tpu.concatenate %136, %137, %139, %141, %142, %144, %146, %147, %149 in 0 : vector<16x256xbf16>, vector<16x256xbf16>, vector<16x256xbf16>, vector<16x256xbf16>, vector<16x256xbf16>, vector<16x256xbf16>, vector<16x256xbf16>, vector<16x256xbf16>, vector<16x256xbf16> -> vector<144x256xbf16>
      %cst_49 = arith.constant dense<0.000000e+00> : vector<16x256xf32>
      %151 = tpu.matmul %107, %150, %cst_49 {dimension_numbers = #tpu.dot_dimension_numbers<[1], [0], [0], [1], [0, 0, 1, 1], [], []>} : vector<16x144xbf16>, vector<144x256xbf16>, vector<16x256xf32> -> vector<16x256xf32>
      %152 = vector.broadcast %109 : vector<16x1xf32> to vector<16x256xf32>
      %153 = arith.addf %151, %152 : vector<16x256xf32>
      %cst_50 = arith.constant 0.000000e+00 : f32
      %154 = vector.broadcast %cst_50 : f32 to vector<16x256xf32>
      %155 = arith.maximumf %153, %154 : vector<16x256xf32>
      %156 = vector.extract_strided_slice %102 {offsets = [1, 0, 0], sizes = [1, 16, 144], strides = [1, 1, 1]} : vector<2x16x144xbf16> to vector<1x16x144xbf16>
      %157 = vector.shape_cast %156 : vector<1x16x144xbf16> to vector<16x144xbf16>
      %158 = vector.extract_strided_slice %105 {offsets = [1, 0, 0], sizes = [1, 16, 1], strides = [1, 1, 1]} : vector<2x16x1xf32> to vector<1x16x1xf32>
      %159 = vector.shape_cast %158 : vector<1x16x1xf32> to vector<16x1xf32>
      %160 = arith.truncf %155 : vector<16x256xf32> to vector<16x256xbf16>
      %cst_51 = arith.constant 0.000000e+00 : bf16
      %161 = vector.broadcast %cst_51 : bf16 to vector<16x17xbf16>
      %162 = tpu.concatenate %161, %160, %161 in 1 : vector<16x17xbf16>, vector<16x256xbf16>, vector<16x17xbf16> -> vector<16x290xbf16>
      %163 = tpu.iota {dimensions = array<i32: 1>} : vector<16x256xi32>
      %c16_i32_52 = arith.constant 16 : i32
      %c0_i32_53 = arith.constant 0 : i32
      %164 = arith.cmpi eq, %c16_i32_52, %c0_i32_53 : i32
      %c1_i32_54 = arith.constant 1 : i32
      %165 = arith.select %164, %c1_i32_54, %c16_i32_52 : i32
      %166 = vector.broadcast %165 : i32 to vector<16x256xi32>
      %167 = arith.remsi %163, %166 : vector<16x256xi32>
      %c0_i32_55 = arith.constant 0 : i32
      %168 = vector.broadcast %c0_i32_55 : i32 to vector<16x256xi32>
      %169 = arith.cmpi ne, %167, %168 : vector<16x256xi32>
      %c0_i32_56 = arith.constant 0 : i32
      %170 = vector.broadcast %c0_i32_56 : i32 to vector<16x256xi32>
      %171 = arith.cmpi slt, %167, %170 : vector<16x256xi32>
      %c0_i32_57 = arith.constant 0 : i32
      %172 = arith.cmpi slt, %165, %c0_i32_57 : i32
      %173 = vector.broadcast %172 : i1 to vector<16x256xi1>
      %174 = vector.broadcast %173 : vector<16x256xi1> to vector<16x256xi1>
      %175 = arith.xori %171, %174 : vector<16x256xi1>
      %176 = arith.andi %175, %169 : vector<16x256xi1>
      %177 = vector.broadcast %165 : i32 to vector<16x256xi32>
      %178 = arith.addi %167, %177 : vector<16x256xi32>
      %179 = arith.select %176, %178, %167 : vector<16x256xi1>, vector<16x256xi32>
      %c0_i32_58 = arith.constant 0 : i32
      %180 = vector.broadcast %c0_i32_58 : i32 to vector<16x256xi32>
      %181 = arith.cmpi sgt, %179, %180 : vector<16x256xi32>
      %c15_i32_59 = arith.constant 15 : i32
      %182 = vector.broadcast %c15_i32_59 : i32 to vector<16x256xi32>
      %183 = arith.cmpi slt, %179, %182 : vector<16x256xi32>
      %cst_60 = arith.constant 0.000000e+00 : bf16
      %184 = vector.broadcast %cst_60 : bf16 to vector<16x256xbf16>
      %185 = vector.extract_strided_slice %162 {offsets = [0, 0], sizes = [16, 256], strides = [1, 1]} : vector<16x290xbf16> to vector<16x256xbf16>
      %186 = arith.select %181, %185, %184 : vector<16x256xi1>, vector<16x256xbf16>
      %187 = vector.extract_strided_slice %162 {offsets = [0, 1], sizes = [16, 256], strides = [1, 1]} : vector<16x290xbf16> to vector<16x256xbf16>
      %188 = vector.extract_strided_slice %162 {offsets = [0, 2], sizes = [16, 256], strides = [1, 1]} : vector<16x290xbf16> to vector<16x256xbf16>
      %189 = arith.select %183, %188, %184 : vector<16x256xi1>, vector<16x256xbf16>
      %190 = vector.extract_strided_slice %162 {offsets = [0, 16], sizes = [16, 256], strides = [1, 1]} : vector<16x290xbf16> to vector<16x256xbf16>
      %191 = arith.select %181, %190, %184 : vector<16x256xi1>, vector<16x256xbf16>
      %192 = vector.extract_strided_slice %162 {offsets = [0, 17], sizes = [16, 256], strides = [1, 1]} : vector<16x290xbf16> to vector<16x256xbf16>
      %193 = vector.extract_strided_slice %162 {offsets = [0, 18], sizes = [16, 256], strides = [1, 1]} : vector<16x290xbf16> to vector<16x256xbf16>
      %194 = arith.select %183, %193, %184 : vector<16x256xi1>, vector<16x256xbf16>
      %195 = vector.extract_strided_slice %162 {offsets = [0, 32], sizes = [16, 256], strides = [1, 1]} : vector<16x290xbf16> to vector<16x256xbf16>
      %196 = arith.select %181, %195, %184 : vector<16x256xi1>, vector<16x256xbf16>
      %197 = vector.extract_strided_slice %162 {offsets = [0, 33], sizes = [16, 256], strides = [1, 1]} : vector<16x290xbf16> to vector<16x256xbf16>
      %198 = vector.extract_strided_slice %162 {offsets = [0, 34], sizes = [16, 256], strides = [1, 1]} : vector<16x290xbf16> to vector<16x256xbf16>
      %199 = arith.select %183, %198, %184 : vector<16x256xi1>, vector<16x256xbf16>
      %200 = tpu.concatenate %186, %187, %189, %191, %192, %194, %196, %197, %199 in 0 : vector<16x256xbf16>, vector<16x256xbf16>, vector<16x256xbf16>, vector<16x256xbf16>, vector<16x256xbf16>, vector<16x256xbf16>, vector<16x256xbf16>, vector<16x256xbf16>, vector<16x256xbf16> -> vector<144x256xbf16>
      %cst_61 = arith.constant dense<0.000000e+00> : vector<16x256xf32>
      %201 = tpu.matmul %157, %200, %cst_61 {dimension_numbers = #tpu.dot_dimension_numbers<[1], [0], [0], [1], [0, 0, 1, 1], [], []>} : vector<16x144xbf16>, vector<144x256xbf16>, vector<16x256xf32> -> vector<16x256xf32>
      %202 = vector.broadcast %159 : vector<16x1xf32> to vector<16x256xf32>
      %203 = arith.addf %201, %202 : vector<16x256xf32>
      %204 = arith.addf %203, %arg10 : vector<16x256xf32>
      scf.yield %204 : vector<16x256xf32>
    }
    %c2_i32_14 = arith.constant 2 : i32
    %c0_15 = arith.constant 0 : index
    %c0_16 = arith.constant 0 : index
    %50 = vector.load %arg6[%c0_15, %c0_16] : memref<16x144xbf16, #tpu.memory_space<vmem>>, vector<16x144xbf16>
    %c0_17 = arith.constant 0 : index
    %c0_18 = arith.constant 0 : index
    %51 = vector.load %arg7[%c0_17, %c0_18] : memref<16x1xf32, #tpu.memory_space<vmem>>, vector<16x1xf32>
    %52 = arith.truncf %49 : vector<16x256xf32> to vector<16x256xbf16>
    %cst_19 = arith.constant 0.000000e+00 : bf16
    %53 = vector.broadcast %cst_19 : bf16 to vector<16x17xbf16>
    %54 = tpu.concatenate %53, %52, %53 in 1 : vector<16x17xbf16>, vector<16x256xbf16>, vector<16x17xbf16> -> vector<16x290xbf16>
    %55 = tpu.iota {dimensions = array<i32: 1>} : vector<16x256xi32>
    %c16_i32_20 = arith.constant 16 : i32
    %c0_i32_21 = arith.constant 0 : i32
    %56 = arith.cmpi eq, %c16_i32_20, %c0_i32_21 : i32
    %c1_i32_22 = arith.constant 1 : i32
    %57 = arith.select %56, %c1_i32_22, %c16_i32_20 : i32
    %58 = vector.broadcast %57 : i32 to vector<16x256xi32>
    %59 = arith.remsi %55, %58 : vector<16x256xi32>
    %c0_i32_23 = arith.constant 0 : i32
    %60 = vector.broadcast %c0_i32_23 : i32 to vector<16x256xi32>
    %61 = arith.cmpi ne, %59, %60 : vector<16x256xi32>
    %c0_i32_24 = arith.constant 0 : i32
    %62 = vector.broadcast %c0_i32_24 : i32 to vector<16x256xi32>
    %63 = arith.cmpi slt, %59, %62 : vector<16x256xi32>
    %c0_i32_25 = arith.constant 0 : i32
    %64 = arith.cmpi slt, %57, %c0_i32_25 : i32
    %65 = vector.broadcast %64 : i1 to vector<16x256xi1>
    %66 = vector.broadcast %65 : vector<16x256xi1> to vector<16x256xi1>
    %67 = arith.xori %63, %66 : vector<16x256xi1>
    %68 = arith.andi %67, %61 : vector<16x256xi1>
    %69 = vector.broadcast %57 : i32 to vector<16x256xi32>
    %70 = arith.addi %59, %69 : vector<16x256xi32>
    %71 = arith.select %68, %70, %59 : vector<16x256xi1>, vector<16x256xi32>
    %c0_i32_26 = arith.constant 0 : i32
    %72 = vector.broadcast %c0_i32_26 : i32 to vector<16x256xi32>
    %73 = arith.cmpi sgt, %71, %72 : vector<16x256xi32>
    %c15_i32_27 = arith.constant 15 : i32
    %74 = vector.broadcast %c15_i32_27 : i32 to vector<16x256xi32>
    %75 = arith.cmpi slt, %71, %74 : vector<16x256xi32>
    %cst_28 = arith.constant 0.000000e+00 : bf16
    %76 = vector.broadcast %cst_28 : bf16 to vector<16x256xbf16>
    %77 = vector.extract_strided_slice %54 {offsets = [0, 0], sizes = [16, 256], strides = [1, 1]} : vector<16x290xbf16> to vector<16x256xbf16>
    %78 = arith.select %73, %77, %76 : vector<16x256xi1>, vector<16x256xbf16>
    %79 = vector.extract_strided_slice %54 {offsets = [0, 1], sizes = [16, 256], strides = [1, 1]} : vector<16x290xbf16> to vector<16x256xbf16>
    %80 = vector.extract_strided_slice %54 {offsets = [0, 2], sizes = [16, 256], strides = [1, 1]} : vector<16x290xbf16> to vector<16x256xbf16>
    %81 = arith.select %75, %80, %76 : vector<16x256xi1>, vector<16x256xbf16>
    %82 = vector.extract_strided_slice %54 {offsets = [0, 16], sizes = [16, 256], strides = [1, 1]} : vector<16x290xbf16> to vector<16x256xbf16>
    %83 = arith.select %73, %82, %76 : vector<16x256xi1>, vector<16x256xbf16>
    %84 = vector.extract_strided_slice %54 {offsets = [0, 17], sizes = [16, 256], strides = [1, 1]} : vector<16x290xbf16> to vector<16x256xbf16>
    %85 = vector.extract_strided_slice %54 {offsets = [0, 18], sizes = [16, 256], strides = [1, 1]} : vector<16x290xbf16> to vector<16x256xbf16>
    %86 = arith.select %75, %85, %76 : vector<16x256xi1>, vector<16x256xbf16>
    %87 = vector.extract_strided_slice %54 {offsets = [0, 32], sizes = [16, 256], strides = [1, 1]} : vector<16x290xbf16> to vector<16x256xbf16>
    %88 = arith.select %73, %87, %76 : vector<16x256xi1>, vector<16x256xbf16>
    %89 = vector.extract_strided_slice %54 {offsets = [0, 33], sizes = [16, 256], strides = [1, 1]} : vector<16x290xbf16> to vector<16x256xbf16>
    %90 = vector.extract_strided_slice %54 {offsets = [0, 34], sizes = [16, 256], strides = [1, 1]} : vector<16x290xbf16> to vector<16x256xbf16>
    %91 = arith.select %75, %90, %76 : vector<16x256xi1>, vector<16x256xbf16>
    %92 = tpu.concatenate %78, %79, %81, %83, %84, %86, %88, %89, %91 in 0 : vector<16x256xbf16>, vector<16x256xbf16>, vector<16x256xbf16>, vector<16x256xbf16>, vector<16x256xbf16>, vector<16x256xbf16>, vector<16x256xbf16>, vector<16x256xbf16>, vector<16x256xbf16> -> vector<144x256xbf16>
    %cst_29 = arith.constant dense<0.000000e+00> : vector<16x256xf32>
    %93 = tpu.matmul %50, %92, %cst_29 {dimension_numbers = #tpu.dot_dimension_numbers<[1], [0], [0], [1], [0, 0, 1, 1], [], []>} : vector<16x144xbf16>, vector<144x256xbf16>, vector<16x256xf32> -> vector<16x256xf32>
    %94 = vector.broadcast %51 : vector<16x1xf32> to vector<16x256xf32>
    %95 = arith.addf %93, %94 : vector<16x256xf32>
    %96 = arith.addf %95, %47 : vector<16x256xf32>
    %c0_30 = arith.constant 0 : index
    %c0_31 = arith.constant 0 : index
    %c0_32 = arith.constant 0 : index
    %97 = vector.load %arg8[%c0_30, %c0_31, %c0_32] : memref<1x16x256xf32, #tpu.memory_space<vmem>>, vector<1x16x256xf32>
    %98 = vector.shape_cast %97 : vector<1x16x256xf32> to vector<16x256xf32>
    %99 = vector.shape_cast %96 : vector<16x256xf32> to vector<1x16x256xf32>
    tpu.vector_store %arg8[%c0_30, %c0_31, %c0_32], %99 {strides = array<i32>} : memref<1x16x256xf32, #tpu.memory_space<vmem>>, vector<1x16x256xf32>,
    return
  }
  func.func @transform_0(%arg0: i32) -> (i32, i32, i32) {
    %c0_i32 = arith.constant 0 : i32
    %c0_i32_0 = arith.constant 0 : i32
    %c0_i32_1 = arith.constant 0 : i32
    return %arg0, %c0_i32, %c0_i32_0 : i32, i32, i32
  }
  func.func @transform_1(%arg0: i32) -> (i32, i32) {
    %c0_i32 = arith.constant 0 : i32
    %c0_i32_0 = arith.constant 0 : i32
    %c0_i32_1 = arith.constant 0 : i32
    return %c0_i32, %c0_i32_0 : i32, i32
  }
  func.func @transform_2(%arg0: i32) -> (i32, i32) {
    %c0_i32 = arith.constant 0 : i32
    %c0_i32_0 = arith.constant 0 : i32
    %c0_i32_1 = arith.constant 0 : i32
    return %c0_i32, %c0_i32_0 : i32, i32
  }
  func.func @transform_3(%arg0: i32) -> (i32, i32, i32, i32) {
    %c0_i32 = arith.constant 0 : i32
    %c0_i32_0 = arith.constant 0 : i32
    %c0_i32_1 = arith.constant 0 : i32
    %c0_i32_2 = arith.constant 0 : i32
    %c0_i32_3 = arith.constant 0 : i32
    return %c0_i32, %c0_i32_0, %c0_i32_1, %c0_i32_2 : i32, i32, i32, i32
  }
  func.func @transform_4(%arg0: i32) -> (i32, i32, i32, i32) {
    %c0_i32 = arith.constant 0 : i32
    %c0_i32_0 = arith.constant 0 : i32
    %c0_i32_1 = arith.constant 0 : i32
    %c0_i32_2 = arith.constant 0 : i32
    %c0_i32_3 = arith.constant 0 : i32
    return %c0_i32, %c0_i32_0, %c0_i32_1, %c0_i32_2 : i32, i32, i32, i32
  }
  func.func @transform_5(%arg0: i32) -> (i32, i32) {
    %c0_i32 = arith.constant 0 : i32
    %c0_i32_0 = arith.constant 0 : i32
    %c0_i32_1 = arith.constant 0 : i32
    return %c0_i32, %c0_i32_0 : i32, i32
  }
  func.func @transform_6(%arg0: i32) -> (i32, i32) {
    %c0_i32 = arith.constant 0 : i32
    %c0_i32_0 = arith.constant 0 : i32
    %c0_i32_1 = arith.constant 0 : i32
    return %c0_i32, %c0_i32_0 : i32, i32
  }
  func.func @transform_7(%arg0: i32) -> (i32, i32, i32) {
    %c0_i32 = arith.constant 0 : i32
    %c0_i32_0 = arith.constant 0 : i32
    %c0_i32_1 = arith.constant 0 : i32
    return %arg0, %c0_i32, %c0_i32_0 : i32, i32, i32
  }
}

module attributes {stable_mosaic.version = 11 : i64} {
  func.func @kernel(%arg0: i32, %arg1: memref<1x16x256xf32, #tpu.memory_space<vmem>>, %arg2: memref<64x144xbf16, #tpu.memory_space<vmem>>, %arg3: memref<64x1xf32, #tpu.memory_space<vmem>>, %arg4: memref<1x64x256xf32, #tpu.memory_space<vmem>>) attributes {dimension_semantics = [#tpu.dimension_semantics<parallel>], iteration_bounds = array<i64: 2>, scalar_prefetch = 0 : i64, scratch_operands = 0 : i64, tpu.core_type = #tpu.core_type<tc>, window_params = [{transform_indices = @transform_0, window_bounds = array<i64: 1, 16, 256>}, {pipeline_mode = #tpu.pipeline_mode<synchronous>, transform_indices = @transform_1, window_bounds = array<i64: 64, 144>}, {pipeline_mode = #tpu.pipeline_mode<synchronous>, transform_indices = @transform_2, window_bounds = array<i64: 64, 1>}, {transform_indices = @transform_3, window_bounds = array<i64: 1, 64, 256>}]} {
    %c0 = arith.constant 0 : index
    %c0_0 = arith.constant 0 : index
    %c0_1 = arith.constant 0 : index
    %0 = vector.load %arg1[%c0, %c0_0, %c0_1] : memref<1x16x256xf32, #tpu.memory_space<vmem>>, vector<1x16x256xf32>
    %1 = vector.shape_cast %0 : vector<1x16x256xf32> to vector<16x256xf32>
    %c0_2 = arith.constant 0 : index
    %c0_3 = arith.constant 0 : index
    %2 = vector.load %arg2[%c0_2, %c0_3] : memref<64x144xbf16, #tpu.memory_space<vmem>>, vector<64x144xbf16>
    %c0_4 = arith.constant 0 : index
    %c0_5 = arith.constant 0 : index
    %3 = vector.load %arg3[%c0_4, %c0_5] : memref<64x1xf32, #tpu.memory_space<vmem>>, vector<64x1xf32>
    %4 = arith.truncf %1 : vector<16x256xf32> to vector<16x256xbf16>
    %cst = arith.constant 0.000000e+00 : bf16
    %5 = vector.broadcast %cst : bf16 to vector<16x17xbf16>
    %6 = tpu.concatenate %5, %4, %5 in 1 : vector<16x17xbf16>, vector<16x256xbf16>, vector<16x17xbf16> -> vector<16x290xbf16>
    %7 = tpu.iota {dimensions = array<i32: 1>} : vector<16x256xi32>
    %c16_i32 = arith.constant 16 : i32
    %c0_i32 = arith.constant 0 : i32
    %8 = arith.cmpi eq, %c16_i32, %c0_i32 : i32
    %c1_i32 = arith.constant 1 : i32
    %9 = arith.select %8, %c1_i32, %c16_i32 : i32
    %10 = vector.broadcast %9 : i32 to vector<16x256xi32>
    %11 = arith.remsi %7, %10 : vector<16x256xi32>
    %c0_i32_6 = arith.constant 0 : i32
    %12 = vector.broadcast %c0_i32_6 : i32 to vector<16x256xi32>
    %13 = arith.cmpi ne, %11, %12 : vector<16x256xi32>
    %c0_i32_7 = arith.constant 0 : i32
    %14 = vector.broadcast %c0_i32_7 : i32 to vector<16x256xi32>
    %15 = arith.cmpi slt, %11, %14 : vector<16x256xi32>
    %c0_i32_8 = arith.constant 0 : i32
    %16 = arith.cmpi slt, %9, %c0_i32_8 : i32
    %17 = vector.broadcast %16 : i1 to vector<16x256xi1>
    %18 = vector.broadcast %17 : vector<16x256xi1> to vector<16x256xi1>
    %19 = arith.xori %15, %18 : vector<16x256xi1>
    %20 = arith.andi %19, %13 : vector<16x256xi1>
    %21 = vector.broadcast %9 : i32 to vector<16x256xi32>
    %22 = arith.addi %11, %21 : vector<16x256xi32>
    %23 = arith.select %20, %22, %11 : vector<16x256xi1>, vector<16x256xi32>
    %c0_i32_9 = arith.constant 0 : i32
    %24 = vector.broadcast %c0_i32_9 : i32 to vector<16x256xi32>
    %25 = arith.cmpi sgt, %23, %24 : vector<16x256xi32>
    %c15_i32 = arith.constant 15 : i32
    %26 = vector.broadcast %c15_i32 : i32 to vector<16x256xi32>
    %27 = arith.cmpi slt, %23, %26 : vector<16x256xi32>
    %cst_10 = arith.constant 0.000000e+00 : bf16
    %28 = vector.broadcast %cst_10 : bf16 to vector<16x256xbf16>
    %29 = vector.extract_strided_slice %6 {offsets = [0, 0], sizes = [16, 256], strides = [1, 1]} : vector<16x290xbf16> to vector<16x256xbf16>
    %30 = arith.select %25, %29, %28 : vector<16x256xi1>, vector<16x256xbf16>
    %31 = vector.extract_strided_slice %6 {offsets = [0, 1], sizes = [16, 256], strides = [1, 1]} : vector<16x290xbf16> to vector<16x256xbf16>
    %32 = vector.extract_strided_slice %6 {offsets = [0, 2], sizes = [16, 256], strides = [1, 1]} : vector<16x290xbf16> to vector<16x256xbf16>
    %33 = arith.select %27, %32, %28 : vector<16x256xi1>, vector<16x256xbf16>
    %34 = vector.extract_strided_slice %6 {offsets = [0, 16], sizes = [16, 256], strides = [1, 1]} : vector<16x290xbf16> to vector<16x256xbf16>
    %35 = arith.select %25, %34, %28 : vector<16x256xi1>, vector<16x256xbf16>
    %36 = vector.extract_strided_slice %6 {offsets = [0, 17], sizes = [16, 256], strides = [1, 1]} : vector<16x290xbf16> to vector<16x256xbf16>
    %37 = vector.extract_strided_slice %6 {offsets = [0, 18], sizes = [16, 256], strides = [1, 1]} : vector<16x290xbf16> to vector<16x256xbf16>
    %38 = arith.select %27, %37, %28 : vector<16x256xi1>, vector<16x256xbf16>
    %39 = vector.extract_strided_slice %6 {offsets = [0, 32], sizes = [16, 256], strides = [1, 1]} : vector<16x290xbf16> to vector<16x256xbf16>
    %40 = arith.select %25, %39, %28 : vector<16x256xi1>, vector<16x256xbf16>
    %41 = vector.extract_strided_slice %6 {offsets = [0, 33], sizes = [16, 256], strides = [1, 1]} : vector<16x290xbf16> to vector<16x256xbf16>
    %42 = vector.extract_strided_slice %6 {offsets = [0, 34], sizes = [16, 256], strides = [1, 1]} : vector<16x290xbf16> to vector<16x256xbf16>
    %43 = arith.select %27, %42, %28 : vector<16x256xi1>, vector<16x256xbf16>
    %44 = tpu.concatenate %30, %31, %33, %35, %36, %38, %40, %41, %43 in 0 : vector<16x256xbf16>, vector<16x256xbf16>, vector<16x256xbf16>, vector<16x256xbf16>, vector<16x256xbf16>, vector<16x256xbf16>, vector<16x256xbf16>, vector<16x256xbf16>, vector<16x256xbf16> -> vector<144x256xbf16>
    %cst_11 = arith.constant dense<0.000000e+00> : vector<64x256xf32>
    %45 = tpu.matmul %2, %44, %cst_11 {dimension_numbers = #tpu.dot_dimension_numbers<[1], [0], [0], [1], [0, 0, 1, 1], [], []>} : vector<64x144xbf16>, vector<144x256xbf16>, vector<64x256xf32> -> vector<64x256xf32>
    %46 = vector.broadcast %3 : vector<64x1xf32> to vector<64x256xf32>
    %47 = arith.addf %45, %46 : vector<64x256xf32>
    %c0_12 = arith.constant 0 : index
    %c0_13 = arith.constant 0 : index
    %c0_14 = arith.constant 0 : index
    %48 = vector.load %arg4[%c0_12, %c0_13, %c0_14] : memref<1x64x256xf32, #tpu.memory_space<vmem>>, vector<1x64x256xf32>
    %49 = vector.shape_cast %48 : vector<1x64x256xf32> to vector<64x256xf32>
    %50 = vector.shape_cast %47 : vector<64x256xf32> to vector<1x64x256xf32>
    tpu.vector_store %arg4[%c0_12, %c0_13, %c0_14], %50 {strides = array<i32>} : memref<1x64x256xf32, #tpu.memory_space<vmem>>, vector<1x64x256xf32>,
    return
  }
  func.func @transform_0(%arg0: i32) -> (i32, i32, i32) {
    %c0_i32 = arith.constant 0 : i32
    %c0_i32_0 = arith.constant 0 : i32
    %c0_i32_1 = arith.constant 0 : i32
    return %arg0, %c0_i32, %c0_i32_0 : i32, i32, i32
  }
  func.func @transform_1(%arg0: i32) -> (i32, i32) {
    %c0_i32 = arith.constant 0 : i32
    %c0_i32_0 = arith.constant 0 : i32
    %c0_i32_1 = arith.constant 0 : i32
    return %c0_i32, %c0_i32_0 : i32, i32
  }
  func.func @transform_2(%arg0: i32) -> (i32, i32) {
    %c0_i32 = arith.constant 0 : i32
    %c0_i32_0 = arith.constant 0 : i32
    %c0_i32_1 = arith.constant 0 : i32
    return %c0_i32, %c0_i32_0 : i32, i32
  }
  func.func @transform_3(%arg0: i32) -> (i32, i32, i32) {
    %c0_i32 = arith.constant 0 : i32
    %c0_i32_0 = arith.constant 0 : i32
    %c0_i32_1 = arith.constant 0 : i32
    return %arg0, %c0_i32, %c0_i32_0 : i32, i32, i32
  }
}

module attributes {stable_mosaic.version = 11 : i64} {
  func.func @kernel(%arg0: i32, %arg1: memref<1x16x1024xf32, #tpu.memory_space<vmem>>, %arg2: memref<4x144xbf16, #tpu.memory_space<vmem>>, %arg3: memref<4x1xf32, #tpu.memory_space<vmem>>, %arg4: memref<1x4x1024xf32, #tpu.memory_space<vmem>>) attributes {dimension_semantics = [#tpu.dimension_semantics<parallel>], iteration_bounds = array<i64: 2>, scalar_prefetch = 0 : i64, scratch_operands = 0 : i64, tpu.core_type = #tpu.core_type<tc>, window_params = [{transform_indices = @transform_0, window_bounds = array<i64: 1, 16, 1024>}, {pipeline_mode = #tpu.pipeline_mode<synchronous>, transform_indices = @transform_1, window_bounds = array<i64: 4, 144>}, {pipeline_mode = #tpu.pipeline_mode<synchronous>, transform_indices = @transform_2, window_bounds = array<i64: 4, 1>}, {transform_indices = @transform_3, window_bounds = array<i64: 1, 4, 1024>}]} {
    %c0 = arith.constant 0 : index
    %c0_0 = arith.constant 0 : index
    %c0_1 = arith.constant 0 : index
    %0 = vector.load %arg1[%c0, %c0_0, %c0_1] : memref<1x16x1024xf32, #tpu.memory_space<vmem>>, vector<1x16x1024xf32>
    %1 = vector.shape_cast %0 : vector<1x16x1024xf32> to vector<16x1024xf32>
    %c0_2 = arith.constant 0 : index
    %c0_3 = arith.constant 0 : index
    %2 = vector.load %arg2[%c0_2, %c0_3] : memref<4x144xbf16, #tpu.memory_space<vmem>>, vector<4x144xbf16>
    %c0_4 = arith.constant 0 : index
    %c0_5 = arith.constant 0 : index
    %3 = vector.load %arg3[%c0_4, %c0_5] : memref<4x1xf32, #tpu.memory_space<vmem>>, vector<4x1xf32>
    %4 = arith.truncf %1 : vector<16x1024xf32> to vector<16x1024xbf16>
    %cst = arith.constant 0.000000e+00 : bf16
    %5 = vector.broadcast %cst : bf16 to vector<16x33xbf16>
    %6 = tpu.concatenate %5, %4, %5 in 1 : vector<16x33xbf16>, vector<16x1024xbf16>, vector<16x33xbf16> -> vector<16x1090xbf16>
    %7 = tpu.iota {dimensions = array<i32: 1>} : vector<16x1024xi32>
    %c32_i32 = arith.constant 32 : i32
    %c0_i32 = arith.constant 0 : i32
    %8 = arith.cmpi eq, %c32_i32, %c0_i32 : i32
    %c1_i32 = arith.constant 1 : i32
    %9 = arith.select %8, %c1_i32, %c32_i32 : i32
    %10 = vector.broadcast %9 : i32 to vector<16x1024xi32>
    %11 = arith.remsi %7, %10 : vector<16x1024xi32>
    %c0_i32_6 = arith.constant 0 : i32
    %12 = vector.broadcast %c0_i32_6 : i32 to vector<16x1024xi32>
    %13 = arith.cmpi ne, %11, %12 : vector<16x1024xi32>
    %c0_i32_7 = arith.constant 0 : i32
    %14 = vector.broadcast %c0_i32_7 : i32 to vector<16x1024xi32>
    %15 = arith.cmpi slt, %11, %14 : vector<16x1024xi32>
    %c0_i32_8 = arith.constant 0 : i32
    %16 = arith.cmpi slt, %9, %c0_i32_8 : i32
    %17 = vector.broadcast %16 : i1 to vector<16x1024xi1>
    %18 = vector.broadcast %17 : vector<16x1024xi1> to vector<16x1024xi1>
    %19 = arith.xori %15, %18 : vector<16x1024xi1>
    %20 = arith.andi %19, %13 : vector<16x1024xi1>
    %21 = vector.broadcast %9 : i32 to vector<16x1024xi32>
    %22 = arith.addi %11, %21 : vector<16x1024xi32>
    %23 = arith.select %20, %22, %11 : vector<16x1024xi1>, vector<16x1024xi32>
    %c0_i32_9 = arith.constant 0 : i32
    %24 = vector.broadcast %c0_i32_9 : i32 to vector<16x1024xi32>
    %25 = arith.cmpi sgt, %23, %24 : vector<16x1024xi32>
    %c31_i32 = arith.constant 31 : i32
    %26 = vector.broadcast %c31_i32 : i32 to vector<16x1024xi32>
    %27 = arith.cmpi slt, %23, %26 : vector<16x1024xi32>
    %cst_10 = arith.constant 0.000000e+00 : bf16
    %28 = vector.broadcast %cst_10 : bf16 to vector<16x1024xbf16>
    %29 = vector.extract_strided_slice %6 {offsets = [0, 0], sizes = [16, 1024], strides = [1, 1]} : vector<16x1090xbf16> to vector<16x1024xbf16>
    %30 = arith.select %25, %29, %28 : vector<16x1024xi1>, vector<16x1024xbf16>
    %31 = vector.extract_strided_slice %6 {offsets = [0, 1], sizes = [16, 1024], strides = [1, 1]} : vector<16x1090xbf16> to vector<16x1024xbf16>
    %32 = vector.extract_strided_slice %6 {offsets = [0, 2], sizes = [16, 1024], strides = [1, 1]} : vector<16x1090xbf16> to vector<16x1024xbf16>
    %33 = arith.select %27, %32, %28 : vector<16x1024xi1>, vector<16x1024xbf16>
    %34 = vector.extract_strided_slice %6 {offsets = [0, 32], sizes = [16, 1024], strides = [1, 1]} : vector<16x1090xbf16> to vector<16x1024xbf16>
    %35 = arith.select %25, %34, %28 : vector<16x1024xi1>, vector<16x1024xbf16>
    %36 = vector.extract_strided_slice %6 {offsets = [0, 33], sizes = [16, 1024], strides = [1, 1]} : vector<16x1090xbf16> to vector<16x1024xbf16>
    %37 = vector.extract_strided_slice %6 {offsets = [0, 34], sizes = [16, 1024], strides = [1, 1]} : vector<16x1090xbf16> to vector<16x1024xbf16>
    %38 = arith.select %27, %37, %28 : vector<16x1024xi1>, vector<16x1024xbf16>
    %39 = vector.extract_strided_slice %6 {offsets = [0, 64], sizes = [16, 1024], strides = [1, 1]} : vector<16x1090xbf16> to vector<16x1024xbf16>
    %40 = arith.select %25, %39, %28 : vector<16x1024xi1>, vector<16x1024xbf16>
    %41 = vector.extract_strided_slice %6 {offsets = [0, 65], sizes = [16, 1024], strides = [1, 1]} : vector<16x1090xbf16> to vector<16x1024xbf16>
    %42 = vector.extract_strided_slice %6 {offsets = [0, 66], sizes = [16, 1024], strides = [1, 1]} : vector<16x1090xbf16> to vector<16x1024xbf16>
    %43 = arith.select %27, %42, %28 : vector<16x1024xi1>, vector<16x1024xbf16>
    %44 = tpu.concatenate %30, %31, %33, %35, %36, %38, %40, %41, %43 in 0 : vector<16x1024xbf16>, vector<16x1024xbf16>, vector<16x1024xbf16>, vector<16x1024xbf16>, vector<16x1024xbf16>, vector<16x1024xbf16>, vector<16x1024xbf16>, vector<16x1024xbf16>, vector<16x1024xbf16> -> vector<144x1024xbf16>
    %cst_11 = arith.constant dense<0.000000e+00> : vector<4x1024xf32>
    %45 = tpu.matmul %2, %44, %cst_11 {dimension_numbers = #tpu.dot_dimension_numbers<[1], [0], [0], [1], [0, 0, 1, 1], [], []>} : vector<4x144xbf16>, vector<144x1024xbf16>, vector<4x1024xf32> -> vector<4x1024xf32>
    %46 = vector.broadcast %3 : vector<4x1xf32> to vector<4x1024xf32>
    %47 = arith.addf %45, %46 : vector<4x1024xf32>
    %c0_12 = arith.constant 0 : index
    %c0_13 = arith.constant 0 : index
    %c0_14 = arith.constant 0 : index
    %48 = vector.load %arg4[%c0_12, %c0_13, %c0_14] : memref<1x4x1024xf32, #tpu.memory_space<vmem>>, vector<1x4x1024xf32>
    %49 = vector.shape_cast %48 : vector<1x4x1024xf32> to vector<4x1024xf32>
    %50 = vector.shape_cast %47 : vector<4x1024xf32> to vector<1x4x1024xf32>
    tpu.vector_store %arg4[%c0_12, %c0_13, %c0_14], %50 {strides = array<i32>} : memref<1x4x1024xf32, #tpu.memory_space<vmem>>, vector<1x4x1024xf32>,
    return
  }
  func.func @transform_0(%arg0: i32) -> (i32, i32, i32) {
    %c0_i32 = arith.constant 0 : i32
    %c0_i32_0 = arith.constant 0 : i32
    %c0_i32_1 = arith.constant 0 : i32
    return %arg0, %c0_i32, %c0_i32_0 : i32, i32, i32
  }
  func.func @transform_1(%arg0: i32) -> (i32, i32) {
    %c0_i32 = arith.constant 0 : i32
    %c0_i32_0 = arith.constant 0 : i32
    %c0_i32_1 = arith.constant 0 : i32
    return %c0_i32, %c0_i32_0 : i32, i32
  }
  func.func @transform_2(%arg0: i32) -> (i32, i32) {
    %c0_i32 = arith.constant 0 : i32
    %c0_i32_0 = arith.constant 0 : i32
    %c0_i32_1 = arith.constant 0 : i32
    return %c0_i32, %c0_i32_0 : i32, i32
  }
  func.func @transform_3(%arg0: i32) -> (i32, i32, i32) {
    %c0_i32 = arith.constant 0 : i32
    %c0_i32_0 = arith.constant 0 : i32
    %c0_i32_1 = arith.constant 0 : i32
    return %arg0, %c0_i32, %c0_i32_0 : i32, i32, i32
  }
}

</mosaic_0001>

<llo_original>
// kernel: _lambda_.4
$region0: #{_lambda_.4}
  #allocation0 [shape = 'u32[]', space=smem, size = 0x4, offset = 0x4, fixed_abs, tag = 'smem constant byte address 0x4 - core index']
  #allocation1 [shape = 'u32[144,128]{1,0:T(1,128)}', space=vmem, size = 0x12000, scoped, tag = 'internal scratch']
  %s0 = inlined_call_operand.vmem [shape: f32[2,16,256], index: 0, kind: input, shape index: {}]
  %s1 = inlined_call_operand.vmem [shape: bf16[64,144], index: 1, kind: input, shape index: {}]
  %s2 = inlined_call_operand.vmem [shape: f32[64,1], index: 2, kind: input, shape index: {}]
  %s3 = inlined_call_operand.vmem [shape: f32[2,64,256], index: 3, kind: output, shape index: {}]
  %s4 = sld [smem:[#allocation0]]
  $region45: #{_lambda_.4} parent=0
    _
  %s6 = ssub.s32 1, %s4
  %s7 = scalar_select 0, %s6, %s4
  loop: start=0, step=1, limit=4
  $region2: #{_lambda_.4} parent=0 // loop_pre_header
    _
  $region3: #{_lambda_.4} parent=0 // loop_header
    %s9 = sphi 0, %s13
    %p10 = scmp.ge.s32.totalorder %s9, 4
    %s19 = sphi 0, %s21
    %s22 = sphi 0, %s19
    %s23 = sphi 0, %s22
    %s39 = sphi 0, %s23
    %s43 = sphi 0, %s43
    %s45 = sphi 0, %s43
    %s46 = sphi 0, %s45
    %s60 = sphi 0, %s46
    %s64 = sphi 0, %s64
    %s66 = sphi 0, %s64
    %s67 = sphi 0, %s66
    %s81 = sphi 0, %s67
    %s87 = sphi 0, %s89
    %s90 = sphi 0, %s87
    %s91 = sphi 0, %s90
    %s107 = sphi 0, %s91
  $region4: #{_lambda_.4} parent=0 // loop_header_branch
    %12 = sbr.rel (%p10) target = $region8
  $region5: #{_lambda_.4} parent=0 // loop_body
    %s14 = ssub.s32 %s9, 1
    %s15 = ssub.s32 %s9, 2
    %s16 = sadd.s32 %s9, 1
    %s17 = ssub.s32 %s9, %s16
    %p18 = scmp.eq.s32.totalorder %s17, 0
    %s20 = sadd.s32 %s19, 1
    %s21 = scalar_select %p18, %s19, %s20
    %p24 = pneg %p18
    %p25 = scmp.eq.s32.totalorder %s9, 1
    %p26 = por %p24, %p25
    %p27 = scmp.ne.s32.totalorder %s19, %s22
    %p28 = scmp.eq.s32.totalorder %s9, 0
    %p29 = por %p27, %p28
    %p30 = scmp.ne.s32.totalorder %s19, %s22
    %p31 = scmp.eq.s32.totalorder %s14, 1
    %p32 = por %p30, %p31
    %p33 = scmp.ne.s32.totalorder %s22, %s23
    %p34 = scmp.eq.s32.totalorder %s14, 0
    %p35 = por %p33, %p34
    %p36 = scmp.ne.s32.totalorder %s22, %s23
    %p37 = scmp.eq.s32.totalorder %s15, 1
    %p38 = por %p36, %p37
    %p40 = scmp.ne.s32.totalorder %s23, %s39
    %p41 = scmp.eq.s32.totalorder %s15, 0
    %p42 = por %p40, %p41
    %s44 = sadd.s32 %s43, 1
    %p47 = scmp.eq.s32.totalorder %s9, 1
    %p48 = scmp.ne.s32.totalorder %s43, %s45
    %p49 = scmp.eq.s32.totalorder %s9, 0
    %p50 = por %p48, %p49
    %p51 = scmp.ne.s32.totalorder %s43, %s45
    %p52 = scmp.eq.s32.totalorder %s14, 1
    %p53 = por %p51, %p52
    %p54 = scmp.ne.s32.totalorder %s45, %s46
    %p55 = scmp.eq.s32.totalorder %s14, 0
    %p56 = por %p54, %p55
    %p57 = scmp.ne.s32.totalorder %s45, %s46
    %p58 = scmp.eq.s32.totalorder %s15, 1
    %p59 = por %p57, %p58
    %p61 = scmp.ne.s32.totalorder %s46, %s60
    %p62 = scmp.eq.s32.totalorder %s15, 0
    %p63 = por %p61, %p62
    %s65 = sadd.s32 %s64, 1
    %p68 = scmp.eq.s32.totalorder %s9, 1
    %p69 = scmp.ne.s32.totalorder %s64, %s66
    %p70 = scmp.eq.s32.totalorder %s9, 0
    %p71 = por %p69, %p70
    %p72 = scmp.ne.s32.totalorder %s64, %s66
    %p73 = scmp.eq.s32.totalorder %s14, 1
    %p74 = por %p72, %p73
    %p75 = scmp.ne.s32.totalorder %s66, %s67
    %p76 = scmp.eq.s32.totalorder %s14, 0
    %p77 = por %p75, %p76
    %p78 = scmp.ne.s32.totalorder %s66, %s67
    %p79 = scmp.eq.s32.totalorder %s15, 1
    %p80 = por %p78, %p79
    %p82 = scmp.ne.s32.totalorder %s67, %s81
    %p83 = scmp.eq.s32.totalorder %s15, 0
    %p84 = por %p82, %p83
    %s85 = ssub.s32 %s9, %s16
    %p86 = scmp.eq.s32.totalorder %s85, 0
    %s88 = sadd.s32 %s87, 1
    %s89 = scalar_select %p86, %s87, %s88
    %p92 = pneg %p86
    %p93 = scmp.eq.s32.totalorder %s9, 1
    %p94 = por %p92, %p93
    %p95 = scmp.ne.s32.totalorder %s87, %s90
    %p96 = scmp.eq.s32.totalorder %s9, 0
    %p97 = por %p95, %p96
    %p98 = scmp.ne.s32.totalorder %s87, %s90
    %p99 = scmp.eq.s32.totalorder %s14, 1
    %p100 = por %p98, %p99
    %p101 = scmp.ne.s32.totalorder %s90, %s91
    %p102 = scmp.eq.s32.totalorder %s14, 0
    %p103 = por %p101, %p102
    %p104 = scmp.ne.s32.totalorder %s90, %s91
    %p105 = scmp.eq.s32.totalorder %s15, 1
    %p106 = por %p104, %p105
    %p108 = scmp.ne.s32.totalorder %s91, %s107
    %p109 = scmp.eq.s32.totalorder %s15, 0
    %p110 = por %p108, %p109
    %p111 = scmp.le.s32.totalorder 1, %s9
    %p112 = scmp.lt.s32.totalorder %s9, 3
    %p113 = pnand %p111, %p112
    %p114 = pneg %p113
    // Predicated region
    $region9: #{_lambda_.4} parent=5 // pred_check
      _
    $region10: #{_lambda_.4} parent=5 // pred_check_branch
      %116 = sbr.rel (%p113) target = $region12
    $region11: #{_lambda_.4} parent=5 // pred_region
      %s117 = ssub.s32 %s9, 1
      // Predicated region
      $region13: #{_lambda_.4} parent=11 // pred_check
        %p118 = pneg %p56
      $region14: #{_lambda_.4} parent=11 // pred_check_branch
        %120 = sbr.rel (%p118) target = $region16
      $region15: #{_lambda_.4} parent=11 // pred_region
        _
      $region16: #{_lambda_.4} parent=11 // pred_fallthru
        _
      // Predicated region
      $region17: #{_lambda_.4} parent=11 // pred_check
        %p121 = pneg %p77
      $region18: #{_lambda_.4} parent=11 // pred_check_branch
        %123 = sbr.rel (%p121) target = $region20
      $region19: #{_lambda_.4} parent=11 // pred_region
        _
      $region20: #{_lambda_.4} parent=11 // pred_fallthru
        _
    $region12: #{_lambda_.4} parent=5 // pred_fallthru
      _
    %p124 = scmp.lt.s32.totalorder %s9, 2
    // Predicated region
    $region21: #{_lambda_.4} parent=5 // pred_check
      %p125 = pneg %p124
    $region22: #{_lambda_.4} parent=5 // pred_check_branch
      %127 = sbr.rel (%p125) target = $region24
    $region23: #{_lambda_.4} parent=5 // pred_region
      // Predicated region
      $region25: #{_lambda_.4} parent=23 // pred_check
        %p128 = pneg %p29
      $region26: #{_lambda_.4} parent=23 // pred_check_branch
        %130 = sbr.rel (%p128) target = $region28
      $region27: #{_lambda_.4} parent=23 // pred_region
        %p131 = scmp.lt.s32.totalorder %s9, 1
        %s132 = scalar_select %p131, %s9, 1
        %s133 = smul.addr %s132, 4
        %s134 = smul.addr %s133, 8
        %s135 = scalar_lea.vmem %s0, %s134
      $region28: #{_lambda_.4} parent=23 // pred_fallthru
        _
    $region24: #{_lambda_.4} parent=5 // pred_fallthru
      _
    %p136 = scmp.le.s32.totalorder 1, %s9
    %p137 = scmp.lt.s32.totalorder %s9, 3
    %p138 = pnand %p136, %p137
    %p139 = pneg %p138
    // Predicated region
    $region29: #{_lambda_.4} parent=5 // pred_check
      _
    $region30: #{_lambda_.4} parent=5 // pred_check_branch
      %141 = sbr.rel (%p138) target = $region32
    $region31: #{_lambda_.4} parent=5 // pred_region
      %s142 = ssub.s32 %s9, 1
      %p143 = scmp.lt.s32.totalorder %s14, 1
      %s144 = scalar_select %p143, %s14, 1
      %s145 = smul.addr %s144, 4
      %s146 = smul.addr %s145, 8
      %s147 = scalar_lea.vmem %s0, %s146
      %p148 = pneg %p35
      %p149 = pneg %p32
      %p150 = pneg %p56
      %p151 = pneg %p53
      %p152 = pneg %p77
      %p153 = pneg %p74
      %p154 = pneg %p103
      %p155 = pneg %p100
      %p156 = scmp.lt.s32.totalorder %s14, 1
      %s157 = scalar_select %p156, %s14, 1
      %s158 = smul.addr %s157, 16
      %s159 = smul.addr %s158, 8
      %s160 = scalar_lea.vmem %s3, %s159
      %p161 = scmp.lt.s32.totalorder %s14, 1
      %s162 = scalar_select %p161, %s14, 1
      %s163 = smul.addr %s162, 4
      %s164 = smul.addr %s163, 8
      %s165 = scalar_lea.vmem %s0, %s164
      %p166 = scmp.lt.s32.totalorder %s14, 1
      %s167 = scalar_select %p166, %s14, 1
      %s168 = smul.addr %s167, 16
      %s169 = smul.addr %s168, 8
      %s170 = scalar_lea.vmem %s3, %s169
      %v174 = vld [vmem:[%s165] sm:$0xff]
      %v175 = vld [vmem:[%s165 + $0x8] sm:$0xff]
      %v176 = vld [vmem:[%s165 + $0x10] sm:$0xff]
      %v177 = vld [vmem:[%s165 + $0x18] sm:$0xff]
      %v178 = vld [vmem:[%s1] sm:$0xff]
      %v179 = vld [vmem:[%s1 + $0x8] sm:$0xff]
      %v180 = vld [vmem:[%s1 + $0x10] sm:$0xff]
      %v181 = vld [vmem:[%s1 + $0x18] sm:$0xff]
      %v182 = vld [vmem:[%s1 + $0x20] sm:$0xff]
      %v183 = vld [vmem:[%s1 + $0x28] sm:$0xff]
      %v184 = vld [vmem:[%s1 + $0x30] sm:$0xff]
      %v185 = vld [vmem:[%s1 + $0x38] sm:$0xff]
      %v186 = vld [vmem:[%s2] sm:$0xff]
      %v187 = vld [vmem:[%s2 + $0x8] sm:$0xff]
      %v188 = vld [vmem:[%s2 + $0x10] sm:$0xff]
      %v189 = vld [vmem:[%s2 + $0x18] sm:$0xff]
      %v190 = vld [vmem:[%s2 + $0x20] sm:$0xff]
      %v191 = vld [vmem:[%s2 + $0x28] sm:$0xff]
      %v192 = vld [vmem:[%s2 + $0x30] sm:$0xff]
      %v193 = vld [vmem:[%s2 + $0x38] sm:$0xff]
      %v194 = vpack.c.bf16 %v176, %v174
      %v195 = vpack.c.bf16 %v177, %v175
      %198 = vrot.lane.b32.xlu0 %v194, 17
      %v199 = vpop.permute.xlu0 %198
      %200 = vrot.lane.b32.xlu0 %v195, 17
      %v201 = vpop.permute.xlu0 %200
      %vm202 = vcmask 138240
      %v203 = vsel %vm202, %v199, %v201
      %vm205 = vcmask 138240
      %v208 = vsel %vm205, 0, %v199
      %v211 = vsel %vm205, %v201, 0
      %v213 = vlaneseq
      %v214 = vand.u32 %v213, 127
      %v215 = vadd.s32 %v214, 128
      %vm216 = vcmp.lt.s32.totalorder %v214, 0
      %v217 = vsub.s32 0, %v214
      %v218 = vsel %vm216, %v217, %v214
      %v219 = vshrl.u32 %v218, 4
      %v220 = vand.u32 %v218, 15
      %v221 = vsub.s32 0, %v220
      %v222 = vsel %vm216, %v221, %v220
      %vm223 = vcmp.lt.s32.totalorder %v215, 0
      %v224 = vsub.s32 0, %v215
      %v225 = vsel %vm223, %v224, %v215
      %v226 = vshrl.u32 %v225, 4
      %v227 = vand.u32 %v225, 15
      %v228 = vsub.s32 0, %v227
      %v229 = vsel %vm223, %v228, %v227
      %vm230 = vcmp.ne.s32.totalorder %v222, 0
      %vm231 = vcmp.ne.s32.totalorder %v229, 0
      %vm232 = vcmp.lt.s32.totalorder %v222, 0
      %vm233 = vcmp.lt.s32.totalorder %v229, 0
      %vm234 = vmand %vm232, %vm230
      %vm235 = vmand %vm233, %vm231
      %v236 = vadd.s32 %v222, 16
      %v237 = vadd.s32 %v229, 16
      %v238 = vsel %vm234, %v236, %v222
      %v239 = vsel %vm235, %v237, %v229
      %vm240 = vcmp.gt.s32.totalorder %v238, 0
      %vm241 = vcmp.gt.s32.totalorder %v239, 0
      %vm242 = vcmp.lt.s32.totalorder %v238, 15
      %vm243 = vcmp.lt.s32.totalorder %v239, 15
      %vm244 = vmpackc.low %vm241, %vm240
      %v245 = vsel %vm244, 65537, 0
      %v246 = vlaneseq
      %v247 = vshrl.u32 %v246, 7
      %v248 = vsub.s32 0, %v247
      %v249 = vrot.slane %v245, %v248
      %v250 = vlaneseq
      %v251 = vshrl.u32 %v250, 7
      %v252 = vsub.s32 4, %v251
      %v253 = vrot.slane %v245, %v252
      %vm254 = vcmp.ne.s16.totalorder %v249, 0
      %vm255 = vcmp.ne.s16.totalorder %v253, 0
      %v256 = vsel %vm254, %v208, 0
      %v257 = vsel %vm255, %v203, 0
      %vm258 = vmpackc.low %vm243, %vm242
      %v259 = vsel %vm258, 65537, 0
      %v260 = vlaneseq
      %v261 = vshrl.u32 %v260, 7
      %v262 = vsub.s32 0, %v261
      %v263 = vrot.slane %v259, %v262
      %v264 = vlaneseq
      %v265 = vshrl.u32 %v264, 7
      %v266 = vsub.s32 4, %v265
      %v267 = vrot.slane %v259, %v266
      %268 = vrot.lane.b32.xlu0 %v263, 2
      %v269 = vpop.permute.xlu0 %268
      %270 = vrot.lane.b32.xlu0 %v267, 2
      %v271 = vpop.permute.xlu0 %270
      %vm272 = vcmask 15360
      %v273 = vsel %vm272, %v269, %v271
      %vm274 = vcmp.ne.s16.totalorder %v269, 0
      %vm275 = vcmp.ne.s16.totalorder %v273, 0
      %vm276 = vcmp.ne.s16.totalorder %v271, 0
      %v277 = vsel %vm274, %v208, 0
      %v278 = vsel %vm275, %v203, 0
      %v279 = vsel %vm276, %v211, 0
      %280 = vrot.lane.b32.xlu0 %v249, 16
      %v281 = vpop.permute.xlu0 %280
      %282 = vrot.lane.b32.xlu0 %v253, 16
      %v283 = vpop.permute.xlu0 %282
      %vm284 = vcmask 130048
      %v285 = vsel %vm284, %v281, %v283
      %vm286 = vcmp.ne.s16.totalorder %v281, 0
      %vm287 = vcmp.ne.s16.totalorder %v285, 0
      %vm288 = vcmp.ne.s16.totalorder %v283, 0
      %v289 = vsel %vm286, %v208, 0
      %v290 = vsel %vm287, %v203, 0
      %v291 = vsel %vm288, %v211, 0
      %292 = vrot.lane.b32.xlu0 %v263, 18
      %v293 = vpop.permute.xlu0 %292
      %294 = vrot.lane.b32.xlu0 %v267, 18
      %v295 = vpop.permute.xlu0 %294
      %vm296 = vcmask 146432
      %v297 = vsel %vm296, %v293, %v295
      %vm298 = vcmp.ne.s16.totalorder %v293, 0
      %vm299 = vcmp.ne.s16.totalorder %v297, 0
      %vm300 = vcmp.ne.s16.totalorder %v295, 0
      %v301 = vsel %vm298, %v208, 0
      %v302 = vsel %vm299, %v203, 0
      %v303 = vsel %vm300, %v211, 0
      %304 = vrot.lane.b32.xlu0 %v249, 32
      %v305 = vpop.permute.xlu0 %304
      %306 = vrot.lane.b32.xlu0 %v253, 32
      %v307 = vpop.permute.xlu0 %306
      %vm308 = vcmask 261120
      %v309 = vsel %vm308, %v305, %v307
      %vm310 = vcmp.ne.s16.totalorder %v305, 0
      %vm311 = vcmp.ne.s16.totalorder %v309, 0
      %vm312 = vcmp.ne.s16.totalorder %v307, 0
      %v313 = vsel %vm310, %v208, 0
      %v314 = vsel %vm311, %v203, 0
      %v315 = vsel %vm312, %v211, 0
      %316 = vrot.lane.b32.xlu0 %v263, 34
      %v317 = vpop.permute.xlu0 %316
      %318 = vrot.lane.b32.xlu0 %v267, 34
      %v319 = vpop.permute.xlu0 %318
      %vm320 = vcmask 277504
      %v321 = vsel %vm320, %v317, %v319
      %vm322 = vcmp.ne.s16.totalorder %v317, 0
      %vm323 = vcmp.ne.s16.totalorder %v321, 0
      %vm324 = vcmp.ne.s16.totalorder %v319, 0
      %v325 = vsel %vm322, %v208, 0
      %v326 = vsel %vm323, %v203, 0
      %v327 = vsel %vm324, %v211, 0
      %330 = vrot.lane.b32.xlu0 %v208, 127
      %v331 = vpop.permute.xlu0 %330
      %332 = vrot.lane.b32.xlu0 %v203, 127
      %v333 = vpop.permute.xlu0 %332
      %334 = vrot.lane.b32.xlu0 %v211, 127
      %v335 = vpop.permute.xlu0 %334
      %vm336 = vcmask 1039360
      %v337 = vsel %vm336, %v331, %v333
      %v338 = vsel %vm336, %v333, %v335
      %344 = vrot.lane.b32.xlu0 %v277, 126
      %v345 = vpop.permute.xlu0 %344
      %346 = vrot.lane.b32.xlu0 %v278, 126
      %v347 = vpop.permute.xlu0 %346
      %348 = vrot.lane.b32.xlu0 %v279, 126
      %v349 = vpop.permute.xlu0 %348
      %vm350 = vcmask 1031168
      %v351 = vsel %vm350, %v345, %v347
      %v352 = vsel %vm350, %v347, %v349
      %358 = vrot.lane.b32.xlu0 %v289, 112
      %v359 = vpop.permute.xlu0 %358
      %360 = vrot.lane.b32.xlu0 %v290, 112
      %v361 = vpop.permute.xlu0 %360
      %362 = vrot.lane.b32.xlu0 %v291, 112
      %v363 = vpop.permute.xlu0 %362
      %vm364 = vcmask 916480
      %v365 = vsel %vm364, %v359, %v361
      %v366 = vsel %vm364, %v361, %v363
      %369 = vrot.lane.b32.xlu0 %v208, 111
      %v370 = vpop.permute.xlu0 %369
      %371 = vrot.lane.b32.xlu0 %v203, 111
      %v372 = vpop.permute.xlu0 %371
      %373 = vrot.lane.b32.xlu0 %v211, 111
      %v374 = vpop.permute.xlu0 %373
      %vm375 = vcmask 908288
      %v376 = vsel %vm375, %v370, %v372
      %v377 = vsel %vm375, %v372, %v374
      %383 = vrot.lane.b32.xlu0 %v301, 110
      %v384 = vpop.permute.xlu0 %383
      %385 = vrot.lane.b32.xlu0 %v302, 110
      %v386 = vpop.permute.xlu0 %385
      %387 = vrot.lane.b32.xlu0 %v303, 110
      %v388 = vpop.permute.xlu0 %387
      %vm389 = vcmask 900096
      %v390 = vsel %vm389, %v384, %v386
      %v391 = vsel %vm389, %v386, %v388
      %397 = vrot.lane.b32.xlu0 %v313, 96
      %v398 = vpop.permute.xlu0 %397
      %399 = vrot.lane.b32.xlu0 %v314, 96
      %v400 = vpop.permute.xlu0 %399
      %401 = vrot.lane.b32.xlu0 %v315, 96
      %v402 = vpop.permute.xlu0 %401
      %vm403 = vcmask 785408
      %v404 = vsel %vm403, %v398, %v400
      %v405 = vsel %vm403, %v400, %v402
      %408 = vrot.lane.b32.xlu0 %v208, 95
      %v409 = vpop.permute.xlu0 %408
      %410 = vrot.lane.b32.xlu0 %v203, 95
      %v411 = vpop.permute.xlu0 %410
      %412 = vrot.lane.b32.xlu0 %v211, 95
      %v413 = vpop.permute.xlu0 %412
      %vm414 = vcmask 777216
      %v415 = vsel %vm414, %v409, %v411
      %v416 = vsel %vm414, %v411, %v413
      %422 = vrot.lane.b32.xlu0 %v325, 94
      %v423 = vpop.permute.xlu0 %422
      %424 = vrot.lane.b32.xlu0 %v326, 94
      %v425 = vpop.permute.xlu0 %424
      %426 = vrot.lane.b32.xlu0 %v327, 94
      %v427 = vpop.permute.xlu0 %426
      %vm428 = vcmask 769024
      %v429 = vsel %vm428, %v423, %v425
      %v430 = vsel %vm428, %v425, %v427
      %434 = vset.pattern.permute.xlu0 0
      %435 = vperm.xlu0 %434, %v186
      %v436 = vpop.permute.xlu0 %435
      %439 = vset.pattern.permute.xlu0 0
      %440 = vperm.xlu0 %439, %v187
      %v441 = vpop.permute.xlu0 %440
      %444 = vset.pattern.permute.xlu0 0
      %445 = vperm.xlu0 %444, %v188
      %v446 = vpop.permute.xlu0 %445
      %449 = vset.pattern.permute.xlu0 0
      %450 = vperm.xlu0 %449, %v189
      %v451 = vpop.permute.xlu0 %450
      %454 = vset.pattern.permute.xlu0 0
      %455 = vperm.xlu0 %454, %v190
      %v456 = vpop.permute.xlu0 %455
      %459 = vset.pattern.permute.xlu0 0
      %460 = vperm.xlu0 %459, %v191
      %v461 = vpop.permute.xlu0 %460
      %464 = vset.pattern.permute.xlu0 0
      %465 = vperm.xlu0 %464, %v192
      %v466 = vpop.permute.xlu0 %465
      %469 = vset.pattern.permute.xlu0 0
      %470 = vperm.xlu0 %469, %v193
      %v471 = vpop.permute.xlu0 %470
      %v481 = vunpack.c.l.b16 %v178
      %v482 = vunpack.c.h.b16 %v178
      %v483 = vunpack.c.l.b16 %v179
      %v484 = vunpack.c.h.b16 %v179
      %v485 = vunpack.c.l.b16 %v180
      %v486 = vunpack.c.h.b16 %v180
      %v487 = vunpack.c.l.b16 %v181
      %v488 = vunpack.c.h.b16 %v181
      %v489 = vunpack.c.l.b16 %v182
      %v490 = vunpack.c.h.b16 %v182
      %v491 = vunpack.c.l.b16 %v183
      %v492 = vunpack.c.h.b16 %v183
      %v493 = vunpack.c.l.b16 %v184
      %v494 = vunpack.c.h.b16 %v184
      %v495 = vunpack.c.l.b16 %v185
      %v496 = vunpack.c.h.b16 %v185
      %v497 = vpack.c.b16 %v483, %v481
      %v498 = vpack.c.b16 %v484, %v482
      %v499 = vpack.c.b16 %v487, %v485
      %v500 = vpack.c.b16 %v488, %v486
      %v501 = vpack.c.b16 %v491, %v489
      %v502 = vpack.c.b16 %v492, %v490
      %v503 = vpack.c.b16 %v495, %v493
      %v504 = vpack.c.b16 %v496, %v494
      %vm509 = vcmask 130048
      %v511 = vsel %vm509, %v498, 0
      %v514 = vsel %vm509, %v500, 0
      %v517 = vsel %vm509, %v502, 0
      %v520 = vsel %vm509, %v504, 0
      %522 = vmatprep.subr.bf16.mxu0 %v257
      %523 = vmatpush1.bf16.msra.mxu0 %v256
      %524 = vmatprep.subr.bf16.mxu0 %v338
      %525 = vmatpush1.bf16.msra.mxu0 %v337
      %526 = vmatprep.subr.bf16.mxu0 %v352
      %527 = vmatpush1.bf16.msra.mxu0 %v351
      %528 = vmatprep.subr.bf16.mxu0 %v366
      %529 = vmatpush1.bf16.msra.mxu0 %v365
      %530 = vmatprep.subr.bf16.mxu0 %v377
      %531 = vmatpush1.bf16.msra.mxu0 %v376
      %532 = vmatprep.subr.bf16.mxu0 %v391
      %533 = vmatpush1.bf16.msra.mxu0 %v390
      %534 = vmatprep.subr.bf16.mxu0 %v405
      %535 = vmatpush1.bf16.msra.mxu0 %v404
      %536 = vmatprep.subr.bf16.mxu0 %v416
      %537 = vmatpush1.bf16.msra.mxu0 %v415
      %538 = vmatprep.subr.bf16.mxu0 %v430
      %539 = vmatpush1.bf16.msra.mxu0 %v429
      %540 = vmatprep.subr.bf16.mxu0 0
      %541 = vmatpush1.bf16.msra.mxu0 0
      %542 = vmatprep.subr.bf16.mxu0 0
      %543 = vmatpush1.bf16.msra.mxu0 0
      %544 = vmatprep.subr.bf16.mxu0 0
      %545 = vmatpush1.bf16.msra.mxu0 0
      %546 = vmatprep.subr.bf16.mxu0 0
      %547 = vmatpush1.bf16.msra.mxu0 0
      %548 = vmatprep.subr.bf16.mxu0 0
      %549 = vmatpush1.bf16.msra.mxu0 0
      %550 = vmatprep.subr.bf16.mxu0 0
      %551 = vmatpush1.bf16.msra.mxu0 0
      %552 = vmatprep.subr.bf16.mxu0 0
      %553 = vmatpush1.bf16.msra.mxu0 0
      %554 = vmatprep.mubr.bf16.mxu0 %v511
      %555 = vmatmul.mubr.bf16.gmra.mrb[0].mxu0 %v497
      %v556 = vpop.f32.mrb[0].mxu0
      %v557 = vadd.f32 %v436, %v556
      %v558 = vpop.f32.mrb[0].mxu0
      %v559 = vadd.f32 %v436, %v558
      %v560 = vpop.f32.mrb[0].mxu0
      %v561 = vadd.f32 %v441, %v560
      %v562 = vpop.f32.mrb[0].mxu0
      %v563 = vadd.f32 %v441, %v562
      %564 = vmatprep.mubr.bf16.mxu0 %v514
      %565 = vmatmul.mubr.bf16.gmra.mrb[0].mxu0 %v499
      %v566 = vpop.f32.mrb[0].mxu0
      %v567 = vadd.f32 %v446, %v566
      %v568 = vpop.f32.mrb[0].mxu0
      %v569 = vadd.f32 %v446, %v568
      %v570 = vpop.f32.mrb[0].mxu0
      %v571 = vadd.f32 %v451, %v570
      %v572 = vpop.f32.mrb[0].mxu0
      %v573 = vadd.f32 %v451, %v572
      %574 = vmatprep.mubr.bf16.mxu0 %v517
      %575 = vmatmul.mubr.bf16.gmra.mrb[0].mxu0 %v501
      %v576 = vpop.f32.mrb[0].mxu0
      %v577 = vadd.f32 %v456, %v576
      %v578 = vpop.f32.mrb[0].mxu0
      %v579 = vadd.f32 %v456, %v578
      %v580 = vpop.f32.mrb[0].mxu0
      %v581 = vadd.f32 %v461, %v580
      %v582 = vpop.f32.mrb[0].mxu0
      %v583 = vadd.f32 %v461, %v582
      %584 = vmatprep.mubr.bf16.mxu0 %v520
      %585 = vmatmul.mubr.bf16.gmra.mrb[0].mxu0 %v503
      %v586 = vpop.f32.mrb[0].mxu0
      %v587 = vadd.f32 %v466, %v586
      %v588 = vpop.f32.mrb[0].mxu0
      %v589 = vadd.f32 %v466, %v588
      %v590 = vpop.f32.mrb[0].mxu0
      %v591 = vadd.f32 %v471, %v590
      %v592 = vpop.f32.mrb[0].mxu0
      %v593 = vadd.f32 %v471, %v592
      %594 = vdwg.mxu0
      %595 = vst [vmem:[%s170] sm:$0xff] %v557
      %596 = vst [vmem:[%s170 + $0x8] sm:$0xff] %v559
      %597 = vst [vmem:[%s170 + $0x10] sm:$0xff] %v561
      %598 = vst [vmem:[%s170 + $0x18] sm:$0xff] %v563
      %599 = vst [vmem:[%s170 + $0x20] sm:$0xff] %v567
      %600 = vst [vmem:[%s170 + $0x28] sm:$0xff] %v569
      %601 = vst [vmem:[%s170 + $0x30] sm:$0xff] %v571
      %602 = vst [vmem:[%s170 + $0x38] sm:$0xff] %v573
      %603 = vst [vmem:[%s170 + $0x40] sm:$0xff] %v577
      %604 = vst [vmem:[%s170 + $0x48] sm:$0xff] %v579
      %605 = vst [vmem:[%s170 + $0x50] sm:$0xff] %v581
      %606 = vst [vmem:[%s170 + $0x58] sm:$0xff] %v583
      %607 = vst [vmem:[%s170 + $0x60] sm:$0xff] %v587
      %608 = vst [vmem:[%s170 + $0x68] sm:$0xff] %v589
      %609 = vst [vmem:[%s170 + $0x70] sm:$0xff] %v591
      %610 = vst [vmem:[%s170 + $0x78] sm:$0xff] %v593
      %p611 = scmp.lt.s32.totalorder %s14, 1
      %s612 = scalar_select %p611, %s14, 1
      %s613 = smul.addr %s612, 16
      %s614 = smul.addr %s613, 8
      %s615 = scalar_lea.vmem %s3, %s614
      // Predicated region
      $region33: #{_lambda_.4} parent=31 // pred_check
        %p616 = pneg %p100
      $region34: #{_lambda_.4} parent=31 // pred_check_branch
        %618 = sbr.rel (%p616) target = $region36
      $region35: #{_lambda_.4} parent=31 // pred_region
        _
      $region36: #{_lambda_.4} parent=31 // pred_fallthru
        _
    $region32: #{_lambda_.4} parent=5 // pred_fallthru
      _
    %p619 = scmp.le.s32.totalorder 2, %s9
    // Predicated region
    $region37: #{_lambda_.4} parent=5 // pred_check
      %p620 = pneg %p619
    $region38: #{_lambda_.4} parent=5 // pred_check_branch
      %622 = sbr.rel (%p620) target = $region40
    $region39: #{_lambda_.4} parent=5 // pred_region
      %s623 = ssub.s32 %s9, 2
      // Predicated region
      $region41: #{_lambda_.4} parent=39 // pred_check
        %p624 = pneg %p106
      $region42: #{_lambda_.4} parent=39 // pred_check_branch
        %626 = sbr.rel (%p624) target = $region44
      $region43: #{_lambda_.4} parent=39 // pred_region
        %p627 = scmp.lt.s32.totalorder %s15, 1
        %s628 = scalar_select %p627, %s15, 1
        %s629 = smul.addr %s628, 16
        %s630 = smul.addr %s629, 8
        %s631 = scalar_lea.vmem %s3, %s630
      $region44: #{_lambda_.4} parent=39 // pred_fallthru
        _
    $region40: #{_lambda_.4} parent=5 // pred_fallthru
      _
  $region6: #{_lambda_.4} parent=0 // loop_footer
    %s13 = sadd.s32 1, %s9
  $region7: #{_lambda_.4} parent=0 // loop_footer_branch
    %8 = sbr.rel target = $region3
  $region8: #{_lambda_.4} parent=0 // loop_exit
    _

// kernel: _lambda_.3
$region0: #{_lambda_.3}
  #allocation0 [shape = 'u32[]', space=smem, size = 0x4, offset = 0x4, fixed_abs, tag = 'smem constant byte address 0x4 - core index']
  #allocation1 [shape = 'u32[144,128]{1,0:T(1,128)}', space=vmem, size = 0x12000, scoped, tag = 'internal scratch']
  %s0 = inlined_call_operand.vmem [shape: f32[2,4,256], index: 0, kind: input, shape index: {}]
  %s1 = inlined_call_operand.vmem [shape: bf16[16,36], index: 1, kind: input, shape index: {}]
  %s2 = inlined_call_operand.vmem [shape: f32[16,1], index: 2, kind: input, shape index: {}]
  %s3 = inlined_call_operand.vmem [shape: bf16[2,2,16,144], index: 3, kind: input, shape index: {}]
  %s4 = inlined_call_operand.vmem [shape: f32[2,2,16,1], index: 4, kind: input, shape index: {}]
  %s5 = inlined_call_operand.vmem [shape: bf16[16,144], index: 5, kind: input, shape index: {}]
  %s6 = inlined_call_operand.vmem [shape: f32[16,1], index: 6, kind: input, shape index: {}]
  %s7 = inlined_call_operand.vmem [shape: f32[2,16,256], index: 7, kind: output, shape index: {}]
  %s8 = sld [smem:[#allocation0]]
  $region68: #{_lambda_.3} parent=0
    _
  %s10 = ssub.s32 1, %s8
  %s11 = scalar_select 0, %s10, %s8
  loop: start=0, step=1, limit=4
  $region2: #{_lambda_.3} parent=0 // loop_pre_header
    _
  $region3: #{_lambda_.3} parent=0 // loop_header
    %s13 = sphi 0, %s17
    %p14 = scmp.ge.s32.totalorder %s13, 4
    %s23 = sphi 0, %s25
    %s26 = sphi 0, %s23
    %s27 = sphi 0, %s26
    %s43 = sphi 0, %s27
    %s47 = sphi 0, %s47
    %s49 = sphi 0, %s47
    %s50 = sphi 0, %s49
    %s64 = sphi 0, %s50
    %s68 = sphi 0, %s68
    %s70 = sphi 0, %s68
    %s71 = sphi 0, %s70
    %s85 = sphi 0, %s71
    %s89 = sphi 0, %s89
    %s91 = sphi 0, %s89
    %s92 = sphi 0, %s91
    %s106 = sphi 0, %s92
    %s110 = sphi 0, %s110
    %s112 = sphi 0, %s110
    %s113 = sphi 0, %s112
    %s127 = sphi 0, %s113
    %s131 = sphi 0, %s131
    %s133 = sphi 0, %s131
    %s134 = sphi 0, %s133
    %s148 = sphi 0, %s134
    %s152 = sphi 0, %s152
    %s154 = sphi 0, %s152
    %s155 = sphi 0, %s154
    %s169 = sphi 0, %s155
    %s175 = sphi 0, %s177
    %s178 = sphi 0, %s175
    %s179 = sphi 0, %s178
    %s195 = sphi 0, %s179
  $region4: #{_lambda_.3} parent=0 // loop_header_branch
    %16 = sbr.rel (%p14) target = $region8
  $region5: #{_lambda_.3} parent=0 // loop_body
    %s18 = ssub.s32 %s13, 1
    %s19 = ssub.s32 %s13, 2
    %s20 = sadd.s32 %s13, 1
    %s21 = ssub.s32 %s13, %s20
    %p22 = scmp.eq.s32.totalorder %s21, 0
    %s24 = sadd.s32 %s23, 1
    %s25 = scalar_select %p22, %s23, %s24
    %p28 = pneg %p22
    %p29 = scmp.eq.s32.totalorder %s13, 1
    %p30 = por %p28, %p29
    %p31 = scmp.ne.s32.totalorder %s23, %s26
    %p32 = scmp.eq.s32.totalorder %s13, 0
    %p33 = por %p31, %p32
    %p34 = scmp.ne.s32.totalorder %s23, %s26
    %p35 = scmp.eq.s32.totalorder %s18, 1
    %p36 = por %p34, %p35
    %p37 = scmp.ne.s32.totalorder %s26, %s27
    %p38 = scmp.eq.s32.totalorder %s18, 0
    %p39 = por %p37, %p38
    %p40 = scmp.ne.s32.totalorder %s26, %s27
    %p41 = scmp.eq.s32.totalorder %s19, 1
    %p42 = por %p40, %p41
    %p44 = scmp.ne.s32.totalorder %s27, %s43
    %p45 = scmp.eq.s32.totalorder %s19, 0
    %p46 = por %p44, %p45
    %s48 = sadd.s32 %s47, 1
    %p51 = scmp.eq.s32.totalorder %s13, 1
    %p52 = scmp.ne.s32.totalorder %s47, %s49
    %p53 = scmp.eq.s32.totalorder %s13, 0
    %p54 = por %p52, %p53
    %p55 = scmp.ne.s32.totalorder %s47, %s49
    %p56 = scmp.eq.s32.totalorder %s18, 1
    %p57 = por %p55, %p56
    %p58 = scmp.ne.s32.totalorder %s49, %s50
    %p59 = scmp.eq.s32.totalorder %s18, 0
    %p60 = por %p58, %p59
    %p61 = scmp.ne.s32.totalorder %s49, %s50
    %p62 = scmp.eq.s32.totalorder %s19, 1
    %p63 = por %p61, %p62
    %p65 = scmp.ne.s32.totalorder %s50, %s64
    %p66 = scmp.eq.s32.totalorder %s19, 0
    %p67 = por %p65, %p66
    %s69 = sadd.s32 %s68, 1
    %p72 = scmp.eq.s32.totalorder %s13, 1
    %p73 = scmp.ne.s32.totalorder %s68, %s70
    %p74 = scmp.eq.s32.totalorder %s13, 0
    %p75 = por %p73, %p74
    %p76 = scmp.ne.s32.totalorder %s68, %s70
    %p77 = scmp.eq.s32.totalorder %s18, 1
    %p78 = por %p76, %p77
    %p79 = scmp.ne.s32.totalorder %s70, %s71
    %p80 = scmp.eq.s32.totalorder %s18, 0
    %p81 = por %p79, %p80
    %p82 = scmp.ne.s32.totalorder %s70, %s71
    %p83 = scmp.eq.s32.totalorder %s19, 1
    %p84 = por %p82, %p83
    %p86 = scmp.ne.s32.totalorder %s71, %s85
    %p87 = scmp.eq.s32.totalorder %s19, 0
    %p88 = por %p86, %p87
    %s90 = sadd.s32 %s89, 1
    %p93 = scmp.eq.s32.totalorder %s13, 1
    %p94 = scmp.ne.s32.totalorder %s89, %s91
    %p95 = scmp.eq.s32.totalorder %s13, 0
    %p96 = por %p94, %p95
    %p97 = scmp.ne.s32.totalorder %s89, %s91
    %p98 = scmp.eq.s32.totalorder %s18, 1
    %p99 = por %p97, %p98
    %p100 = scmp.ne.s32.totalorder %s91, %s92
    %p101 = scmp.eq.s32.totalorder %s18, 0
    %p102 = por %p100, %p101
    %p103 = scmp.ne.s32.totalorder %s91, %s92
    %p104 = scmp.eq.s32.totalorder %s19, 1
    %p105 = por %p103, %p104
    %p107 = scmp.ne.s32.totalorder %s92, %s106
    %p108 = scmp.eq.s32.totalorder %s19, 0
    %p109 = por %p107, %p108
    %s111 = sadd.s32 %s110, 1
    %p114 = scmp.eq.s32.totalorder %s13, 1
    %p115 = scmp.ne.s32.totalorder %s110, %s112
    %p116 = scmp.eq.s32.totalorder %s13, 0
    %p117 = por %p115, %p116
    %p118 = scmp.ne.s32.totalorder %s110, %s112
    %p119 = scmp.eq.s32.totalorder %s18, 1
    %p120 = por %p118, %p119
    %p121 = scmp.ne.s32.totalorder %s112, %s113
    %p122 = scmp.eq.s32.totalorder %s18, 0
    %p123 = por %p121, %p122
    %p124 = scmp.ne.s32.totalorder %s112, %s113
    %p125 = scmp.eq.s32.totalorder %s19, 1
    %p126 = por %p124, %p125
    %p128 = scmp.ne.s32.totalorder %s113, %s127
    %p129 = scmp.eq.s32.totalorder %s19, 0
    %p130 = por %p128, %p129
    %s132 = sadd.s32 %s131, 1
    %p135 = scmp.eq.s32.totalorder %s13, 1
    %p136 = scmp.ne.s32.totalorder %s131, %s133
    %p137 = scmp.eq.s32.totalorder %s13, 0
    %p138 = por %p136, %p137
    %p139 = scmp.ne.s32.totalorder %s131, %s133
    %p140 = scmp.eq.s32.totalorder %s18, 1
    %p141 = por %p139, %p140
    %p142 = scmp.ne.s32.totalorder %s133, %s134
    %p143 = scmp.eq.s32.totalorder %s18, 0
    %p144 = por %p142, %p143
    %p145 = scmp.ne.s32.totalorder %s133, %s134
    %p146 = scmp.eq.s32.totalorder %s19, 1
    %p147 = por %p145, %p146
    %p149 = scmp.ne.s32.totalorder %s134, %s148
    %p150 = scmp.eq.s32.totalorder %s19, 0
    %p151 = por %p149, %p150
    %s153 = sadd.s32 %s152, 1
    %p156 = scmp.eq.s32.totalorder %s13, 1
    %p157 = scmp.ne.s32.totalorder %s152, %s154
    %p158 = scmp.eq.s32.totalorder %s13, 0
    %p159 = por %p157, %p158
    %p160 = scmp.ne.s32.totalorder %s152, %s154
    %p161 = scmp.eq.s32.totalorder %s18, 1
    %p162 = por %p160, %p161
    %p163 = scmp.ne.s32.totalorder %s154, %s155
    %p164 = scmp.eq.s32.totalorder %s18, 0
    %p165 = por %p163, %p164
    %p166 = scmp.ne.s32.totalorder %s154, %s155
    %p167 = scmp.eq.s32.totalorder %s19, 1
    %p168 = por %p166, %p167
    %p170 = scmp.ne.s32.totalorder %s155, %s169
    %p171 = scmp.eq.s32.totalorder %s19, 0
    %p172 = por %p170, %p171
    %s173 = ssub.s32 %s13, %s20
    %p174 = scmp.eq.s32.totalorder %s173, 0
    %s176 = sadd.s32 %s175, 1
    %s177 = scalar_select %p174, %s175, %s176
    %p180 = pneg %p174
    %p181 = scmp.eq.s32.totalorder %s13, 1
    %p182 = por %p180, %p181
    %p183 = scmp.ne.s32.totalorder %s175, %s178
    %p184 = scmp.eq.s32.totalorder %s13, 0
    %p185 = por %p183, %p184
    %p186 = scmp.ne.s32.totalorder %s175, %s178
    %p187 = scmp.eq.s32.totalorder %s18, 1
    %p188 = por %p186, %p187
    %p189 = scmp.ne.s32.totalorder %s178, %s179
    %p190 = scmp.eq.s32.totalorder %s18, 0
    %p191 = por %p189, %p190
    %p192 = scmp.ne.s32.totalorder %s178, %s179
    %p193 = scmp.eq.s32.totalorder %s19, 1
    %p194 = por %p192, %p193
    %p196 = scmp.ne.s32.totalorder %s179, %s195
    %p197 = scmp.eq.s32.totalorder %s19, 0
    %p198 = por %p196, %p197
    %p199 = scmp.le.s32.totalorder 1, %s13
    %p200 = scmp.lt.s32.totalorder %s13, 3
    %p201 = pnand %p199, %p200
    %p202 = pneg %p201
    // Predicated region
    $region9: #{_lambda_.3} parent=5 // pred_check
      _
    $region10: #{_lambda_.3} parent=5 // pred_check_branch
      %204 = sbr.rel (%p201) target = $region12
    $region11: #{_lambda_.3} parent=5 // pred_region
      %s205 = ssub.s32 %s13, 1
      // Predicated region
      $region13: #{_lambda_.3} parent=11 // pred_check
        %p206 = pneg %p60
      $region14: #{_lambda_.3} parent=11 // pred_check_branch
        %208 = sbr.rel (%p206) target = $region16
      $region15: #{_lambda_.3} parent=11 // pred_region
        _
      $region16: #{_lambda_.3} parent=11 // pred_fallthru
        _
      // Predicated region
      $region17: #{_lambda_.3} parent=11 // pred_check
        %p209 = pneg %p81
      $region18: #{_lambda_.3} parent=11 // pred_check_branch
        %211 = sbr.rel (%p209) target = $region20
      $region19: #{_lambda_.3} parent=11 // pred_region
        _
      $region20: #{_lambda_.3} parent=11 // pred_fallthru
        _
      // Predicated region
      $region21: #{_lambda_.3} parent=11 // pred_check
        %p212 = pneg %p102
      $region22: #{_lambda_.3} parent=11 // pred_check_branch
        %214 = sbr.rel (%p212) target = $region24
      $region23: #{_lambda_.3} parent=11 // pred_region
        _
      $region24: #{_lambda_.3} parent=11 // pred_fallthru
        _
      // Predicated region
      $region25: #{_lambda_.3} parent=11 // pred_check
        %p215 = pneg %p123
      $region26: #{_lambda_.3} parent=11 // pred_check_branch
        %217 = sbr.rel (%p215) target = $region28
      $region27: #{_lambda_.3} parent=11 // pred_region
        _
      $region28: #{_lambda_.3} parent=11 // pred_fallthru
        _
      // Predicated region
      $region29: #{_lambda_.3} parent=11 // pred_check
        %p218 = pneg %p144
      $region30: #{_lambda_.3} parent=11 // pred_check_branch
        %220 = sbr.rel (%p218) target = $region32
      $region31: #{_lambda_.3} parent=11 // pred_region
        _
      $region32: #{_lambda_.3} parent=11 // pred_fallthru
        _
      // Predicated region
      $region33: #{_lambda_.3} parent=11 // pred_check
        %p221 = pneg %p165
      $region34: #{_lambda_.3} parent=11 // pred_check_branch
        %223 = sbr.rel (%p221) target = $region36
      $region35: #{_lambda_.3} parent=11 // pred_region
        _
      $region36: #{_lambda_.3} parent=11 // pred_fallthru
        _
    $region12: #{_lambda_.3} parent=5 // pred_fallthru
      _
    %p224 = scmp.lt.s32.totalorder %s13, 2
    // Predicated region
    $region37: #{_lambda_.3} parent=5 // pred_check
      %p225 = pneg %p224
    $region38: #{_lambda_.3} parent=5 // pred_check_branch
      %227 = sbr.rel (%p225) target = $region40
    $region39: #{_lambda_.3} parent=5 // pred_region
      // Predicated region
      $region41: #{_lambda_.3} parent=39 // pred_check
        %p228 = pneg %p33
      $region42: #{_lambda_.3} parent=39 // pred_check_branch
        %230 = sbr.rel (%p228) target = $region44
      $region43: #{_lambda_.3} parent=39 // pred_region
        %p231 = scmp.lt.s32.totalorder %s13, 1
        %s232 = scalar_select %p231, %s13, 1
        %s233 = smul.addr %s232, 2
        %s234 = smul.addr %s233, 4
        %s235 = scalar_lea.vmem %s0, %s234
      $region44: #{_lambda_.3} parent=39 // pred_fallthru
        _
    $region40: #{_lambda_.3} parent=5 // pred_fallthru
      _
    %p236 = scmp.le.s32.totalorder 1, %s13
    %p237 = scmp.lt.s32.totalorder %s13, 3
    %p238 = pnand %p236, %p237
    %p239 = pneg %p238
    // Predicated region
    $region45: #{_lambda_.3} parent=5 // pred_check
      _
    $region46: #{_lambda_.3} parent=5 // pred_check_branch
      %241 = sbr.rel (%p238) target = $region48
    $region47: #{_lambda_.3} parent=5 // pred_region
      %s242 = ssub.s32 %s13, 1
      %p243 = scmp.lt.s32.totalorder %s18, 1
      %s244 = scalar_select %p243, %s18, 1
      %s245 = smul.addr %s244, 2
      %s246 = smul.addr %s245, 4
      %s247 = scalar_lea.vmem %s0, %s246
      %p248 = pneg %p39
      %p249 = pneg %p36
      %p250 = pneg %p60
      %p251 = pneg %p57
      %p252 = pneg %p81
      %p253 = pneg %p78
      %p254 = pneg %p102
      %p255 = pneg %p99
      %p256 = pneg %p123
      %p257 = pneg %p120
      %p258 = pneg %p144
      %p259 = pneg %p141
      %p260 = pneg %p165
      %p261 = pneg %p162
      %p262 = pneg %p191
      %p263 = pneg %p188
      %p264 = scmp.lt.s32.totalorder %s18, 1
      %s265 = scalar_select %p264, %s18, 1
      %s266 = smul.addr %s265, 4
      %s267 = smul.addr %s266, 8
      %s268 = scalar_lea.vmem %s7, %s267
      %p269 = scmp.lt.s32.totalorder %s18, 1
      %s270 = scalar_select %p269, %s18, 1
      %s271 = smul.addr %s270, 2
      %s272 = smul.addr %s271, 4
      %s273 = scalar_lea.vmem %s0, %s272
      %p274 = scmp.lt.s32.totalorder %s18, 1
      %s275 = scalar_select %p274, %s18, 1
      %s276 = smul.addr %s275, 4
      %s277 = smul.addr %s276, 8
      %s278 = scalar_lea.vmem %s7, %s277
      %v282 = vld [vmem:[%s273] sm:$0xff]
      %v283 = vld [vmem:[%s1] sm:$0xf]
      %v284 = vld [vmem:[%s1 + $0x4] sm:$0xf]
      %v285 = vld [vmem:[%s2] sm:$0xff]
      %v286 = vld [vmem:[%s2 + $0x8] sm:$0xff]
      %v288 = vcombine.high %v282, %v282
      %v290 = vpack.c.bf16 %v282, %v282
      %v291 = vpack.c.bf16 %v288, %v288
      %294 = vrot.lane.b32.xlu0 %v290, 17
      %v295 = vpop.permute.xlu0 %294
      %296 = vrot.lane.b32.xlu0 %v291, 17
      %v297 = vpop.permute.xlu0 %296
      %vm298 = vcmask 138240
      %v299 = vsel %vm298, %v295, %v297
      %vm301 = vcmask 138240
      %v304 = vsel %vm301, 0, %v295
      %v307 = vsel %vm301, %v297, 0
      %v309 = vlaneseq
      %v310 = vand.u32 %v309, 127
      %v311 = vadd.s32 %v310, 128
      %vm312 = vcmp.lt.s32.totalorder %v310, 0
      %v313 = vsub.s32 0, %v310
      %v314 = vsel %vm312, %v313, %v310
      %v315 = vshrl.u32 %v314, 4
      %v316 = vand.u32 %v314, 15
      %v317 = vsub.s32 0, %v316
      %v318 = vsel %vm312, %v317, %v316
      %vm319 = vcmp.lt.s32.totalorder %v311, 0
      %v320 = vsub.s32 0, %v311
      %v321 = vsel %vm319, %v320, %v311
      %v322 = vshrl.u32 %v321, 4
      %v323 = vand.u32 %v321, 15
      %v324 = vsub.s32 0, %v323
      %v325 = vsel %vm319, %v324, %v323
      %vm326 = vcmp.ne.s32.totalorder %v318, 0
      %vm327 = vcmp.ne.s32.totalorder %v325, 0
      %vm328 = vcmp.lt.s32.totalorder %v318, 0
      %vm329 = vcmp.lt.s32.totalorder %v325, 0
      %vm330 = vmand %vm328, %vm326
      %vm331 = vmand %vm329, %vm327
      %v332 = vadd.s32 %v318, 16
      %v333 = vadd.s32 %v325, 16
      %v334 = vsel %vm330, %v332, %v318
      %v335 = vsel %vm331, %v333, %v325
      %vm336 = vcmp.gt.s32.totalorder %v334, 0
      %vm337 = vcmp.gt.s32.totalorder %v335, 0
      %vm338 = vcmp.lt.s32.totalorder %v334, 15
      %vm339 = vcmp.lt.s32.totalorder %v335, 15
      %vm340 = vmpackc.low %vm337, %vm336
      %v341 = vsel %vm340, 65537, 0
      %v342 = vlaneseq
      %v343 = vshrl.u32 %v342, 7
      %v344 = vsub.s32 0, %v343
      %v345 = vrot.slane %v341, %v344
      %v346 = vlaneseq
      %v347 = vshrl.u32 %v346, 7
      %v348 = vsub.s32 4, %v347
      %v349 = vrot.slane %v341, %v348
      %vm350 = vcmp.ne.s16.totalorder %v345, 0
      %vm351 = vcmp.ne.s16.totalorder %v349, 0
      %v352 = vsel %vm350, %v304, 0
      %v353 = vsel %vm351, %v299, 0
      %vm354 = vmpackc.low %vm339, %vm338
      %v355 = vsel %vm354, 65537, 0
      %v356 = vlaneseq
      %v357 = vshrl.u32 %v356, 7
      %v358 = vsub.s32 0, %v357
      %v359 = vrot.slane %v355, %v358
      %v360 = vlaneseq
      %v361 = vshrl.u32 %v360, 7
      %v362 = vsub.s32 4, %v361
      %v363 = vrot.slane %v355, %v362
      %364 = vrot.lane.b32.xlu0 %v359, 2
      %v365 = vpop.permute.xlu0 %364
      %366 = vrot.lane.b32.xlu0 %v363, 2
      %v367 = vpop.permute.xlu0 %366
      %vm368 = vcmask 15360
      %v369 = vsel %vm368, %v365, %v367
      %vm370 = vcmp.ne.s16.totalorder %v365, 0
      %vm371 = vcmp.ne.s16.totalorder %v369, 0
      %vm372 = vcmp.ne.s16.totalorder %v367, 0
      %v373 = vsel %vm370, %v304, 0
      %v374 = vsel %vm371, %v299, 0
      %v375 = vsel %vm372, %v307, 0
      %376 = vrot.lane.b32.xlu0 %v345, 16
      %v377 = vpop.permute.xlu0 %376
      %378 = vrot.lane.b32.xlu0 %v349, 16
      %v379 = vpop.permute.xlu0 %378
      %vm380 = vcmask 130048
      %v381 = vsel %vm380, %v377, %v379
      %vm382 = vcmp.ne.s16.totalorder %v377, 0
      %vm383 = vcmp.ne.s16.totalorder %v381, 0
      %vm384 = vcmp.ne.s16.totalorder %v379, 0
      %v385 = vsel %vm382, %v304, 0
      %v386 = vsel %vm383, %v299, 0
      %v387 = vsel %vm384, %v307, 0
      %388 = vrot.lane.b32.xlu0 %v359, 18
      %v389 = vpop.permute.xlu0 %388
      %390 = vrot.lane.b32.xlu0 %v363, 18
      %v391 = vpop.permute.xlu0 %390
      %vm392 = vcmask 146432
      %v393 = vsel %vm392, %v389, %v391
      %vm394 = vcmp.ne.s16.totalorder %v389, 0
      %vm395 = vcmp.ne.s16.totalorder %v393, 0
      %vm396 = vcmp.ne.s16.totalorder %v391, 0
      %v397 = vsel %vm394, %v304, 0
      %v398 = vsel %vm395, %v299, 0
      %v399 = vsel %vm396, %v307, 0
      %400 = vrot.lane.b32.xlu0 %v345, 32
      %v401 = vpop.permute.xlu0 %400
      %402 = vrot.lane.b32.xlu0 %v349, 32
      %v403 = vpop.permute.xlu0 %402
      %vm404 = vcmask 261120
      %v405 = vsel %vm404, %v401, %v403
      %vm406 = vcmp.ne.s16.totalorder %v401, 0
      %vm407 = vcmp.ne.s16.totalorder %v405, 0
      %vm408 = vcmp.ne.s16.totalorder %v403, 0
      %v409 = vsel %vm406, %v304, 0
      %v410 = vsel %vm407, %v299, 0
      %v411 = vsel %vm408, %v307, 0
      %412 = vrot.lane.b32.xlu0 %v359, 34
      %v413 = vpop.permute.xlu0 %412
      %414 = vrot.lane.b32.xlu0 %v363, 34
      %v415 = vpop.permute.xlu0 %414
      %vm416 = vcmask 277504
      %v417 = vsel %vm416, %v413, %v415
      %vm418 = vcmp.ne.s16.totalorder %v413, 0
      %vm419 = vcmp.ne.s16.totalorder %v417, 0
      %vm420 = vcmp.ne.s16.totalorder %v415, 0
      %v421 = vsel %vm418, %v304, 0
      %v422 = vsel %vm419, %v299, 0
      %v423 = vsel %vm420, %v307, 0
      %v426 = vrot.slane %v304, 6
      %v427 = vrot.slane %v299, 6
      %v428 = vrot.slane %v307, 6
      %429 = vrot.lane.b32.xlu0 %v426, 127
      %v430 = vpop.permute.xlu0 %429
      %431 = vrot.lane.b32.xlu0 %v427, 127
      %v432 = vpop.permute.xlu0 %431
      %433 = vrot.lane.b32.xlu0 %v428, 127
      %v434 = vpop.permute.xlu0 %433
      %vm435 = vcmask 1039360
      %v436 = vsel %vm435, %v430, %v432
      %v437 = vsel %vm435, %v432, %v434
      %v441 = vrot.slane %v373, 4
      %v442 = vrot.slane %v374, 4
      %v443 = vrot.slane %v375, 4
      %444 = vrot.lane.b32.xlu0 %v441, 126
      %v445 = vpop.permute.xlu0 %444
      %446 = vrot.lane.b32.xlu0 %v442, 126
      %v447 = vpop.permute.xlu0 %446
      %448 = vrot.lane.b32.xlu0 %v443, 126
      %v449 = vpop.permute.xlu0 %448
      %vm450 = vcmask 1031168
      %v451 = vsel %vm450, %v445, %v447
      %v452 = vsel %vm450, %v447, %v449
      %v456 = vrot.slane %v385, 2
      %v457 = vrot.slane %v386, 2
      %v458 = vrot.slane %v387, 2
      %459 = vrot.lane.b32.xlu0 %v456, 112
      %v460 = vpop.permute.xlu0 %459
      %461 = vrot.lane.b32.xlu0 %v457, 112
      %v462 = vpop.permute.xlu0 %461
      %463 = vrot.lane.b32.xlu0 %v458, 112
      %v464 = vpop.permute.xlu0 %463
      %vm465 = vcmask 916480
      %v466 = vsel %vm465, %v460, %v462
      %v467 = vsel %vm465, %v462, %v464
      %468 = vrot.lane.b32.xlu0 %v304, 111
      %v469 = vpop.permute.xlu0 %468
      %470 = vrot.lane.b32.xlu0 %v299, 111
      %v471 = vpop.permute.xlu0 %470
      %472 = vrot.lane.b32.xlu0 %v307, 111
      %v473 = vpop.permute.xlu0 %472
      %vm474 = vcmask 908288
      %v475 = vsel %vm474, %v469, %v471
      %v476 = vsel %vm474, %v471, %v473
      %v480 = vrot.slane %v397, 6
      %v481 = vrot.slane %v398, 6
      %v482 = vrot.slane %v399, 6
      %483 = vrot.lane.b32.xlu0 %v480, 110
      %v484 = vpop.permute.xlu0 %483
      %485 = vrot.lane.b32.xlu0 %v481, 110
      %v486 = vpop.permute.xlu0 %485
      %487 = vrot.lane.b32.xlu0 %v482, 110
      %v488 = vpop.permute.xlu0 %487
      %vm489 = vcmask 900096
      %v490 = vsel %vm489, %v484, %v486
      %v491 = vsel %vm489, %v486, %v488
      %v495 = vrot.slane %v409, 4
      %v496 = vrot.slane %v410, 4
      %v497 = vrot.slane %v411, 4
      %498 = vrot.lane.b32.xlu0 %v495, 96
      %v499 = vpop.permute.xlu0 %498
      %500 = vrot.lane.b32.xlu0 %v496, 96
      %v501 = vpop.permute.xlu0 %500
      %502 = vrot.lane.b32.xlu0 %v497, 96
      %v503 = vpop.permute.xlu0 %502
      %vm504 = vcmask 785408
      %v505 = vsel %vm504, %v499, %v501
      %v506 = vsel %vm504, %v501, %v503
      %v507 = vrot.slane %v304, 2
      %v508 = vrot.slane %v299, 2
      %v509 = vrot.slane %v307, 2
      %510 = vrot.lane.b32.xlu0 %v507, 95
      %v511 = vpop.permute.xlu0 %510
      %512 = vrot.lane.b32.xlu0 %v508, 95
      %v513 = vpop.permute.xlu0 %512
      %514 = vrot.lane.b32.xlu0 %v509, 95
      %v515 = vpop.permute.xlu0 %514
      %vm516 = vcmask 777216
      %v517 = vsel %vm516, %v511, %v513
      %v518 = vsel %vm516, %v513, %v515
      %522 = vrot.lane.b32.xlu0 %v421, 94
      %v523 = vpop.permute.xlu0 %522
      %524 = vrot.lane.b32.xlu0 %v422, 94
      %v525 = vpop.permute.xlu0 %524
      %526 = vrot.lane.b32.xlu0 %v423, 94
      %v527 = vpop.permute.xlu0 %526
      %vm528 = vcmask 769024
      %v529 = vsel %vm528, %v523, %v525
      %v530 = vsel %vm528, %v525, %v527
      %vm531 = vcmask 1041408
      %v534 = vsel %vm531, %v352, %v436
      %v537 = vsel %vm531, %v353, %v437
      %vm538 = vcmask 1043456
      %v540 = vsel %vm538, %v534, %v451
      %v542 = vsel %vm538, %v537, %v452
      %vm543 = vcmask 1045504
      %v545 = vsel %vm543, %v540, %v466
      %v548 = vsel %vm543, %v542, %v467
      %v552 = vsel %vm531, %v475, %v490
      %v555 = vsel %vm531, %v476, %v491
      %v557 = vsel %vm538, %v552, %v505
      %v559 = vsel %vm538, %v555, %v506
      %v561 = vsel %vm543, %v557, %v517
      %v564 = vsel %vm543, %v559, %v518
      %567 = vset.pattern.permute.xlu0 0
      %568 = vperm.xlu0 %567, %v285
      %v569 = vpop.permute.xlu0 %568
      %572 = vset.pattern.permute.xlu0 0
      %573 = vperm.xlu0 %572, %v286
      %v574 = vpop.permute.xlu0 %573
      %v578 = vunpack.c.l.b16 %v283
      %v579 = vunpack.c.l.b16 %v284
      %v580 = vpack.c.b16 %v579, %v578
      %vm581 = vcmask 293888
      %v583 = vsel %vm581, %v580, 0
      %v586 = vsel %vm531, %v529, 0
      %v589 = vsel %vm531, %v530, 0
      %591 = vmatprep.subr.bf16.mxu0 %v548
      %592 = vmatpush1.bf16.msra.mxu0 %v545
      %593 = vmatprep.subr.bf16.mxu0 %v564
      %594 = vmatpush1.bf16.msra.mxu0 %v561
      %595 = vmatprep.subr.bf16.mxu0 %v589
      %596 = vmatpush1.bf16.msra.mxu0 %v586
      %597 = vmatprep.subr.bf16.mxu0 0
      %598 = vmatpush1.bf16.msra.mxu0 0
      %599 = vmatprep.subr.bf16.mxu0 0
      %600 = vmatpush1.bf16.msra.mxu0 0
      %601 = vmatprep.subr.bf16.mxu0 0
      %602 = vmatpush1.bf16.msra.mxu0 0
      %603 = vmatprep.subr.bf16.mxu0 0
      %604 = vmatpush1.bf16.msra.mxu0 0
      %605 = vmatprep.subr.bf16.mxu0 0
      %606 = vmatpush1.bf16.msra.mxu0 0
      %607 = vmatprep.subr.bf16.mxu0 0
      %608 = vmatpush1.bf16.msra.mxu0 0
      %609 = vmatprep.subr.bf16.mxu0 0
      %610 = vmatpush1.bf16.msra.mxu0 0
      %611 = vmatprep.subr.bf16.mxu0 0
      %612 = vmatpush1.bf16.msra.mxu0 0
      %613 = vmatprep.subr.bf16.mxu0 0
      %614 = vmatpush1.bf16.msra.mxu0 0
      %615 = vmatprep.subr.bf16.mxu0 0
      %616 = vmatpush1.bf16.msra.mxu0 0
      %617 = vmatprep.subr.bf16.mxu0 0
      %618 = vmatpush1.bf16.msra.mxu0 0
      %619 = vmatprep.subr.bf16.mxu0 0
      %620 = vmatpush1.bf16.msra.mxu0 0
      %621 = vmatprep.subr.bf16.mxu0 0
      %622 = vmatpush1.bf16.msra.mxu0 0
      %623 = vmatprep.mubr.bf16.mxu0 0
      %624 = vmatmul.mubr.bf16.gmra.mrb[0].mxu0 %v583
      %v625 = vpop.f32.mrb[0].mxu0
      %v626 = vadd.f32 %v569, %v625
      %v627 = vpop.f32.mrb[0].mxu0
      %v628 = vadd.f32 %v569, %v627
      %v629 = vpop.f32.mrb[0].mxu0
      %v630 = vadd.f32 %v574, %v629
      %v631 = vpop.f32.mrb[0].mxu0
      %v632 = vadd.f32 %v574, %v631
      %633 = vdwg.mxu0
      loop: start=0, step=1, limit=2
      $region49: #{_lambda_.3} parent=47 // loop_pre_header
        _
      $region50: #{_lambda_.3} parent=47 // loop_header
        %s635 = sphi 0, %s639
        %p636 = scmp.ge.s32.totalorder %s635, 2
        %v640 = vphi %v626, %v1052
        %v641 = vphi %v628, %v1053
        %v642 = vphi %v630, %v1054
        %v643 = vphi %v632, %v1055
      $region51: #{_lambda_.3} parent=47 // loop_header_branch
        %638 = sbr.rel (%p636) target = $region55
      $region52: #{_lambda_.3} parent=47 // loop_body
        %s644 = smul.u32 %s635, 8
        %s645 = smul.addr %s644, 4
        %s646 = scalar_lea.vmem %s3, %s645
        %v647 = vld [vmem:[%s646] sm:$0xff]
        %v648 = vld [vmem:[%s646 + $0x8] sm:$0xff]
        %v649 = vld [vmem:[%s646 + $0x10] sm:$0xff]
        %v650 = vld [vmem:[%s646 + $0x18] sm:$0xff]
        %s651 = smul.u32 %s635, 32
        %s652 = scalar_lea.vmem %s4, %s651
        %v653 = vld [vmem:[%s652] sm:$0xff]
        %v654 = vld [vmem:[%s652 + $0x8] sm:$0xff]
        %v655 = vld [vmem:[%s652 + $0x10] sm:$0xff]
        %v656 = vld [vmem:[%s652 + $0x18] sm:$0xff]
        %v657 = vpack.c.bf16 %v642, %v640
        %v658 = vpack.c.bf16 %v643, %v641
        %661 = vrot.lane.b32.xlu0 %v657, 17
        %v662 = vpop.permute.xlu0 %661
        %663 = vrot.lane.b32.xlu0 %v658, 17
        %v664 = vpop.permute.xlu0 %663
        %v665 = vsel %vm298, %v662, %v664
        %v668 = vsel %vm301, 0, %v662
        %v671 = vsel %vm301, %v664, 0
        %v673 = vsel %vm350, %v668, 0
        %v674 = vsel %vm351, %v665, 0
        %v675 = vsel %vm370, %v668, 0
        %v676 = vsel %vm371, %v665, 0
        %v677 = vsel %vm372, %v671, 0
        %v678 = vsel %vm382, %v668, 0
        %v679 = vsel %vm383, %v665, 0
        %v680 = vsel %vm384, %v671, 0
        %v681 = vsel %vm394, %v668, 0
        %v682 = vsel %vm395, %v665, 0
        %v683 = vsel %vm396, %v671, 0
        %v684 = vsel %vm406, %v668, 0
        %v685 = vsel %vm407, %v665, 0
        %v686 = vsel %vm408, %v671, 0
        %v687 = vsel %vm418, %v668, 0
        %v688 = vsel %vm419, %v665, 0
        %v689 = vsel %vm420, %v671, 0
        %692 = vrot.lane.b32.xlu0 %v668, 127
        %v693 = vpop.permute.xlu0 %692
        %694 = vrot.lane.b32.xlu0 %v665, 127
        %v695 = vpop.permute.xlu0 %694
        %696 = vrot.lane.b32.xlu0 %v671, 127
        %v697 = vpop.permute.xlu0 %696
        %v698 = vsel %vm435, %v693, %v695
        %v699 = vsel %vm435, %v695, %v697
        %705 = vrot.lane.b32.xlu0 %v675, 126
        %v706 = vpop.permute.xlu0 %705
        %707 = vrot.lane.b32.xlu0 %v676, 126
        %v708 = vpop.permute.xlu0 %707
        %709 = vrot.lane.b32.xlu0 %v677, 126
        %v710 = vpop.permute.xlu0 %709
        %v711 = vsel %vm450, %v706, %v708
        %v712 = vsel %vm450, %v708, %v710
        %718 = vrot.lane.b32.xlu0 %v678, 112
        %v719 = vpop.permute.xlu0 %718
        %720 = vrot.lane.b32.xlu0 %v679, 112
        %v721 = vpop.permute.xlu0 %720
        %722 = vrot.lane.b32.xlu0 %v680, 112
        %v723 = vpop.permute.xlu0 %722
        %v724 = vsel %vm465, %v719, %v721
        %v725 = vsel %vm465, %v721, %v723
        %728 = vrot.lane.b32.xlu0 %v668, 111
        %v729 = vpop.permute.xlu0 %728
        %730 = vrot.lane.b32.xlu0 %v665, 111
        %v731 = vpop.permute.xlu0 %730
        %732 = vrot.lane.b32.xlu0 %v671, 111
        %v733 = vpop.permute.xlu0 %732
        %v734 = vsel %vm474, %v729, %v731
        %v735 = vsel %vm474, %v731, %v733
        %741 = vrot.lane.b32.xlu0 %v681, 110
        %v742 = vpop.permute.xlu0 %741
        %743 = vrot.lane.b32.xlu0 %v682, 110
        %v744 = vpop.permute.xlu0 %743
        %745 = vrot.lane.b32.xlu0 %v683, 110
        %v746 = vpop.permute.xlu0 %745
        %v747 = vsel %vm489, %v742, %v744
        %v748 = vsel %vm489, %v744, %v746
        %754 = vrot.lane.b32.xlu0 %v684, 96
        %v755 = vpop.permute.xlu0 %754
        %756 = vrot.lane.b32.xlu0 %v685, 96
        %v757 = vpop.permute.xlu0 %756
        %758 = vrot.lane.b32.xlu0 %v686, 96
        %v759 = vpop.permute.xlu0 %758
        %v760 = vsel %vm504, %v755, %v757
        %v761 = vsel %vm504, %v757, %v759
        %764 = vrot.lane.b32.xlu0 %v668, 95
        %v765 = vpop.permute.xlu0 %764
        %766 = vrot.lane.b32.xlu0 %v665, 95
        %v767 = vpop.permute.xlu0 %766
        %768 = vrot.lane.b32.xlu0 %v671, 95
        %v769 = vpop.permute.xlu0 %768
        %v770 = vsel %vm516, %v765, %v767
        %v771 = vsel %vm516, %v767, %v769
        %777 = vrot.lane.b32.xlu0 %v687, 94
        %v778 = vpop.permute.xlu0 %777
        %779 = vrot.lane.b32.xlu0 %v688, 94
        %v780 = vpop.permute.xlu0 %779
        %781 = vrot.lane.b32.xlu0 %v689, 94
        %v782 = vpop.permute.xlu0 %781
        %v783 = vsel %vm528, %v778, %v780
        %v784 = vsel %vm528, %v780, %v782
        %788 = vset.pattern.permute.xlu0 0
        %789 = vperm.xlu0 %788, %v653
        %v790 = vpop.permute.xlu0 %789
        %793 = vset.pattern.permute.xlu0 0
        %794 = vperm.xlu0 %793, %v654
        %v795 = vpop.permute.xlu0 %794
        %v799 = vunpack.c.l.b16 %v647
        %v800 = vunpack.c.h.b16 %v647
        %v801 = vunpack.c.l.b16 %v648
        %v802 = vunpack.c.h.b16 %v648
        %v803 = vpack.c.b16 %v801, %v799
        %v804 = vpack.c.b16 %v802, %v800
        %vm806 = vcmask 130048
        %v808 = vsel %vm806, %v804, 0
        %810 = vmatprep.subr.bf16.mxu0 %v674
        %811 = vmatpush1.bf16.msra.mxu0 %v673
        %812 = vmatprep.subr.bf16.mxu0 %v699
        %813 = vmatpush1.bf16.msra.mxu0 %v698
        %814 = vmatprep.subr.bf16.mxu0 %v712
        %815 = vmatpush1.bf16.msra.mxu0 %v711
        %816 = vmatprep.subr.bf16.mxu0 %v725
        %817 = vmatpush1.bf16.msra.mxu0 %v724
        %818 = vmatprep.subr.bf16.mxu0 %v735
        %819 = vmatpush1.bf16.msra.mxu0 %v734
        %820 = vmatprep.subr.bf16.mxu0 %v748
        %821 = vmatpush1.bf16.msra.mxu0 %v747
        %822 = vmatprep.subr.bf16.mxu0 %v761
        %823 = vmatpush1.bf16.msra.mxu0 %v760
        %824 = vmatprep.subr.bf16.mxu0 %v771
        %825 = vmatpush1.bf16.msra.mxu0 %v770
        %826 = vmatprep.subr.bf16.mxu0 %v784
        %827 = vmatpush1.bf16.msra.mxu0 %v783
        %828 = vmatprep.subr.bf16.mxu0 0
        %829 = vmatpush1.bf16.msra.mxu0 0
        %830 = vmatprep.subr.bf16.mxu0 0
        %831 = vmatpush1.bf16.msra.mxu0 0
        %832 = vmatprep.subr.bf16.mxu0 0
        %833 = vmatpush1.bf16.msra.mxu0 0
        %834 = vmatprep.subr.bf16.mxu0 0
        %835 = vmatpush1.bf16.msra.mxu0 0
        %836 = vmatprep.subr.bf16.mxu0 0
        %837 = vmatpush1.bf16.msra.mxu0 0
        %838 = vmatprep.subr.bf16.mxu0 0
        %839 = vmatpush1.bf16.msra.mxu0 0
        %840 = vmatprep.subr.bf16.mxu0 0
        %841 = vmatpush1.bf16.msra.mxu0 0
        %842 = vmatprep.mubr.bf16.mxu0 %v808
        %843 = vmatmul.mubr.bf16.gmra.mrb[0].mxu0 %v803
        %v844 = vpop.f32.mrb[0].mxu0
        %v845 = vadd.f32 %v790, %v844
        %v846 = vpop.f32.mrb[0].mxu0
        %v847 = vadd.f32 %v790, %v846
        %v848 = vpop.f32.mrb[0].mxu0
        %v849 = vadd.f32 %v795, %v848
        %v850 = vpop.f32.mrb[0].mxu0
        %v851 = vadd.f32 %v795, %v850
        %852 = vdwg.mxu0
        %v853 = vmax.f32 %v845, 0.0
        %v854 = vmax.f32 %v847, 0.0
        %v855 = vmax.f32 %v849, 0.0
        %v856 = vmax.f32 %v851, 0.0
        %v857 = vpack.c.bf16 %v855, %v853
        %v858 = vpack.c.bf16 %v856, %v854
        %861 = vrot.lane.b32.xlu0 %v857, 17
        %v862 = vpop.permute.xlu0 %861
        %863 = vrot.lane.b32.xlu0 %v858, 17
        %v864 = vpop.permute.xlu0 %863
        %v865 = vsel %vm298, %v862, %v864
        %v868 = vsel %vm301, 0, %v862
        %v871 = vsel %vm301, %v864, 0
        %v873 = vsel %vm350, %v868, 0
        %v874 = vsel %vm351, %v865, 0
        %v875 = vsel %vm370, %v868, 0
        %v876 = vsel %vm371, %v865, 0
        %v877 = vsel %vm372, %v871, 0
        %v878 = vsel %vm382, %v868, 0
        %v879 = vsel %vm383, %v865, 0
        %v880 = vsel %vm384, %v871, 0
        %v881 = vsel %vm394, %v868, 0
        %v882 = vsel %vm395, %v865, 0
        %v883 = vsel %vm396, %v871, 0
        %v884 = vsel %vm406, %v868, 0
        %v885 = vsel %vm407, %v865, 0
        %v886 = vsel %vm408, %v871, 0
        %v887 = vsel %vm418, %v868, 0
        %v888 = vsel %vm419, %v865, 0
        %v889 = vsel %vm420, %v871, 0
        %892 = vrot.lane.b32.xlu0 %v868, 127
        %v893 = vpop.permute.xlu0 %892
        %894 = vrot.lane.b32.xlu0 %v865, 127
        %v895 = vpop.permute.xlu0 %894
        %896 = vrot.lane.b32.xlu0 %v871, 127
        %v897 = vpop.permute.xlu0 %896
        %v898 = vsel %vm435, %v893, %v895
        %v899 = vsel %vm435, %v895, %v897
        %905 = vrot.lane.b32.xlu0 %v875, 126
        %v906 = vpop.permute.xlu0 %905
        %907 = vrot.lane.b32.xlu0 %v876, 126
        %v908 = vpop.permute.xlu0 %907
        %909 = vrot.lane.b32.xlu0 %v877, 126
        %v910 = vpop.permute.xlu0 %909
        %v911 = vsel %vm450, %v906, %v908
        %v912 = vsel %vm450, %v908, %v910
        %918 = vrot.lane.b32.xlu0 %v878, 112
        %v919 = vpop.permute.xlu0 %918
        %920 = vrot.lane.b32.xlu0 %v879, 112
        %v921 = vpop.permute.xlu0 %920
        %922 = vrot.lane.b32.xlu0 %v880, 112
        %v923 = vpop.permute.xlu0 %922
        %v924 = vsel %vm465, %v919, %v921
        %v925 = vsel %vm465, %v921, %v923
        %928 = vrot.lane.b32.xlu0 %v868, 111
        %v929 = vpop.permute.xlu0 %928
        %930 = vrot.lane.b32.xlu0 %v865, 111
        %v931 = vpop.permute.xlu0 %930
        %932 = vrot.lane.b32.xlu0 %v871, 111
        %v933 = vpop.permute.xlu0 %932
        %v934 = vsel %vm474, %v929, %v931
        %v935 = vsel %vm474, %v931, %v933
        %941 = vrot.lane.b32.xlu0 %v881, 110
        %v942 = vpop.permute.xlu0 %941
        %943 = vrot.lane.b32.xlu0 %v882, 110
        %v944 = vpop.permute.xlu0 %943
        %945 = vrot.lane.b32.xlu0 %v883, 110
        %v946 = vpop.permute.xlu0 %945
        %v947 = vsel %vm489, %v942, %v944
        %v948 = vsel %vm489, %v944, %v946
        %954 = vrot.lane.b32.xlu0 %v884, 96
        %v955 = vpop.permute.xlu0 %954
        %956 = vrot.lane.b32.xlu0 %v885, 96
        %v957 = vpop.permute.xlu0 %956
        %958 = vrot.lane.b32.xlu0 %v886, 96
        %v959 = vpop.permute.xlu0 %958
        %v960 = vsel %vm504, %v955, %v957
        %v961 = vsel %vm504, %v957, %v959
        %964 = vrot.lane.b32.xlu0 %v868, 95
        %v965 = vpop.permute.xlu0 %964
        %966 = vrot.lane.b32.xlu0 %v865, 95
        %v967 = vpop.permute.xlu0 %966
        %968 = vrot.lane.b32.xlu0 %v871, 95
        %v969 = vpop.permute.xlu0 %968
        %v970 = vsel %vm516, %v965, %v967
        %v971 = vsel %vm516, %v967, %v969
        %977 = vrot.lane.b32.xlu0 %v887, 94
        %v978 = vpop.permute.xlu0 %977
        %979 = vrot.lane.b32.xlu0 %v888, 94
        %v980 = vpop.permute.xlu0 %979
        %981 = vrot.lane.b32.xlu0 %v889, 94
        %v982 = vpop.permute.xlu0 %981
        %v983 = vsel %vm528, %v978, %v980
        %v984 = vsel %vm528, %v980, %v982
        %988 = vset.pattern.permute.xlu0 0
        %989 = vperm.xlu0 %988, %v655
        %v990 = vpop.permute.xlu0 %989
        %993 = vset.pattern.permute.xlu0 0
        %994 = vperm.xlu0 %993, %v656
        %v995 = vpop.permute.xlu0 %994
        %v999 = vunpack.c.l.b16 %v649
        %v1000 = vunpack.c.h.b16 %v649
        %v1001 = vunpack.c.l.b16 %v650
        %v1002 = vunpack.c.h.b16 %v650
        %v1003 = vpack.c.b16 %v1001, %v999
        %v1004 = vpack.c.b16 %v1002, %v1000
        %v1007 = vsel %vm806, %v1004, 0
        %1009 = vmatprep.subr.bf16.mxu0 %v874
        %1010 = vmatpush1.bf16.msra.mxu0 %v873
        %1011 = vmatprep.subr.bf16.mxu0 %v899
        %1012 = vmatpush1.bf16.msra.mxu0 %v898
        %1013 = vmatprep.subr.bf16.mxu0 %v912
        %1014 = vmatpush1.bf16.msra.mxu0 %v911
        %1015 = vmatprep.subr.bf16.mxu0 %v925
        %1016 = vmatpush1.bf16.msra.mxu0 %v924
        %1017 = vmatprep.subr.bf16.mxu0 %v935
        %1018 = vmatpush1.bf16.msra.mxu0 %v934
        %1019 = vmatprep.subr.bf16.mxu0 %v948
        %1020 = vmatpush1.bf16.msra.mxu0 %v947
        %1021 = vmatprep.subr.bf16.mxu0 %v961
        %1022 = vmatpush1.bf16.msra.mxu0 %v960
        %1023 = vmatprep.subr.bf16.mxu0 %v971
        %1024 = vmatpush1.bf16.msra.mxu0 %v970
        %1025 = vmatprep.subr.bf16.mxu0 %v984
        %1026 = vmatpush1.bf16.msra.mxu0 %v983
        %1027 = vmatprep.subr.bf16.mxu0 0
        %1028 = vmatpush1.bf16.msra.mxu0 0
        %1029 = vmatprep.subr.bf16.mxu0 0
        %1030 = vmatpush1.bf16.msra.mxu0 0
        %1031 = vmatprep.subr.bf16.mxu0 0
        %1032 = vmatpush1.bf16.msra.mxu0 0
        %1033 = vmatprep.subr.bf16.mxu0 0
        %1034 = vmatpush1.bf16.msra.mxu0 0
        %1035 = vmatprep.subr.bf16.mxu0 0
        %1036 = vmatpush1.bf16.msra.mxu0 0
        %1037 = vmatprep.subr.bf16.mxu0 0
        %1038 = vmatpush1.bf16.msra.mxu0 0
        %1039 = vmatprep.subr.bf16.mxu0 0
        %1040 = vmatpush1.bf16.msra.mxu0 0
        %1041 = vmatprep.mubr.bf16.mxu0 %v1007
        %1042 = vmatmul.mubr.bf16.gmra.mrb[0].mxu0 %v1003
        %v1043 = vpop.f32.mrb[0].mxu0
        %v1044 = vadd.f32 %v990, %v1043
        %v1045 = vpop.f32.mrb[0].mxu0
        %v1046 = vadd.f32 %v990, %v1045
        %v1047 = vpop.f32.mrb[0].mxu0
        %v1048 = vadd.f32 %v995, %v1047
        %v1049 = vpop.f32.mrb[0].mxu0
        %v1050 = vadd.f32 %v995, %v1049
        %1051 = vdwg.mxu0
        %v1052 = vadd.f32 %v1044, %v640
        %v1053 = vadd.f32 %v1046, %v641
        %v1054 = vadd.f32 %v1048, %v642
        %v1055 = vadd.f32 %v1050, %v643
      $region53: #{_lambda_.3} parent=47 // loop_footer
        %s639 = sadd.s32 1, %s635
      $region54: #{_lambda_.3} parent=47 // loop_footer_branch
        %634 = sbr.rel target = $region50
      $region55: #{_lambda_.3} parent=47 // loop_exit
        _
      %v1056 = vld [vmem:[%s5] sm:$0xff]
      %v1057 = vld [vmem:[%s5 + $0x8] sm:$0xff]
      %v1058 = vld [vmem:[%s6] sm:$0xff]
      %v1059 = vld [vmem:[%s6 + $0x8] sm:$0xff]
      %v1060 = vpack.c.bf16 %v642, %v640
      %v1061 = vpack.c.bf16 %v643, %v641
      %1064 = vrot.lane.b32.xlu0 %v1060, 17
      %v1065 = vpop.permute.xlu0 %1064
      %1066 = vrot.lane.b32.xlu0 %v1061, 17
      %v1067 = vpop.permute.xlu0 %1066
      %v1068 = vsel %vm298, %v1065, %v1067
      %v1071 = vsel %vm301, 0, %v1065
      %v1074 = vsel %vm301, %v1067, 0
      %v1076 = vsel %vm350, %v1071, 0
      %v1077 = vsel %vm351, %v1068, 0
      %v1078 = vsel %vm370, %v1071, 0
      %v1079 = vsel %vm371, %v1068, 0
      %v1080 = vsel %vm372, %v1074, 0
      %v1081 = vsel %vm382, %v1071, 0
      %v1082 = vsel %vm383, %v1068, 0
      %v1083 = vsel %vm384, %v1074, 0
      %v1084 = vsel %vm394, %v1071, 0
      %v1085 = vsel %vm395, %v1068, 0
      %v1086 = vsel %vm396, %v1074, 0
      %v1087 = vsel %vm406, %v1071, 0
      %v1088 = vsel %vm407, %v1068, 0
      %v1089 = vsel %vm408, %v1074, 0
      %v1090 = vsel %vm418, %v1071, 0
      %v1091 = vsel %vm419, %v1068, 0
      %v1092 = vsel %vm420, %v1074, 0
      %1095 = vrot.lane.b32.xlu0 %v1071, 127
      %v1096 = vpop.permute.xlu0 %1095
      %1097 = vrot.lane.b32.xlu0 %v1068, 127
      %v1098 = vpop.permute.xlu0 %1097
      %1099 = vrot.lane.b32.xlu0 %v1074, 127
      %v1100 = vpop.permute.xlu0 %1099
      %v1101 = vsel %vm435, %v1096, %v1098
      %v1102 = vsel %vm435, %v1098, %v1100
      %1108 = vrot.lane.b32.xlu0 %v1078, 126
      %v1109 = vpop.permute.xlu0 %1108
      %1110 = vrot.lane.b32.xlu0 %v1079, 126
      %v1111 = vpop.permute.xlu0 %1110
      %1112 = vrot.lane.b32.xlu0 %v1080, 126
      %v1113 = vpop.permute.xlu0 %1112
      %v1114 = vsel %vm450, %v1109, %v1111
      %v1115 = vsel %vm450, %v1111, %v1113
      %1121 = vrot.lane.b32.xlu0 %v1081, 112
      %v1122 = vpop.permute.xlu0 %1121
      %1123 = vrot.lane.b32.xlu0 %v1082, 112
      %v1124 = vpop.permute.xlu0 %1123
      %1125 = vrot.lane.b32.xlu0 %v1083, 112
      %v1126 = vpop.permute.xlu0 %1125
      %v1127 = vsel %vm465, %v1122, %v1124
      %v1128 = vsel %vm465, %v1124, %v1126
      %1131 = vrot.lane.b32.xlu0 %v1071, 111
      %v1132 = vpop.permute.xlu0 %1131
      %1133 = vrot.lane.b32.xlu0 %v1068, 111
      %v1134 = vpop.permute.xlu0 %1133
      %1135 = vrot.lane.b32.xlu0 %v1074, 111
      %v1136 = vpop.permute.xlu0 %1135
      %v1137 = vsel %vm474, %v1132, %v1134
      %v1138 = vsel %vm474, %v1134, %v1136
      %1144 = vrot.lane.b32.xlu0 %v1084, 110
      %v1145 = vpop.permute.xlu0 %1144
      %1146 = vrot.lane.b32.xlu0 %v1085, 110
      %v1147 = vpop.permute.xlu0 %1146
      %1148 = vrot.lane.b32.xlu0 %v1086, 110
      %v1149 = vpop.permute.xlu0 %1148
      %v1150 = vsel %vm489, %v1145, %v1147
      %v1151 = vsel %vm489, %v1147, %v1149
      %1157 = vrot.lane.b32.xlu0 %v1087, 96
      %v1158 = vpop.permute.xlu0 %1157
      %1159 = vrot.lane.b32.xlu0 %v1088, 96
      %v1160 = vpop.permute.xlu0 %1159
      %1161 = vrot.lane.b32.xlu0 %v1089, 96
      %v1162 = vpop.permute.xlu0 %1161
      %v1163 = vsel %vm504, %v1158, %v1160
      %v1164 = vsel %vm504, %v1160, %v1162
      %1167 = vrot.lane.b32.xlu0 %v1071, 95
      %v1168 = vpop.permute.xlu0 %1167
      %1169 = vrot.lane.b32.xlu0 %v1068, 95
      %v1170 = vpop.permute.xlu0 %1169
      %1171 = vrot.lane.b32.xlu0 %v1074, 95
      %v1172 = vpop.permute.xlu0 %1171
      %v1173 = vsel %vm516, %v1168, %v1170
      %v1174 = vsel %vm516, %v1170, %v1172
      %1180 = vrot.lane.b32.xlu0 %v1090, 94
      %v1181 = vpop.permute.xlu0 %1180
      %1182 = vrot.lane.b32.xlu0 %v1091, 94
      %v1183 = vpop.permute.xlu0 %1182
      %1184 = vrot.lane.b32.xlu0 %v1092, 94
      %v1185 = vpop.permute.xlu0 %1184
      %v1186 = vsel %vm528, %v1181, %v1183
      %v1187 = vsel %vm528, %v1183, %v1185
      %1191 = vset.pattern.permute.xlu0 0
      %1192 = vperm.xlu0 %1191, %v1058
      %v1193 = vpop.permute.xlu0 %1192
      %1196 = vset.pattern.permute.xlu0 0
      %1197 = vperm.xlu0 %1196, %v1059
      %v1198 = vpop.permute.xlu0 %1197
      %v1202 = vunpack.c.l.b16 %v1056
      %v1203 = vunpack.c.h.b16 %v1056
      %v1204 = vunpack.c.l.b16 %v1057
      %v1205 = vunpack.c.h.b16 %v1057
      %v1206 = vpack.c.b16 %v1204, %v1202
      %v1207 = vpack.c.b16 %v1205, %v1203
      %vm1209 = vcmask 130048
      %v1211 = vsel %vm1209, %v1207, 0
      %1213 = vmatprep.subr.bf16.mxu0 %v1077
      %1214 = vmatpush1.bf16.msra.mxu0 %v1076
      %1215 = vmatprep.subr.bf16.mxu0 %v1102
      %1216 = vmatpush1.bf16.msra.mxu0 %v1101
      %1217 = vmatprep.subr.bf16.mxu0 %v1115
      %1218 = vmatpush1.bf16.msra.mxu0 %v1114
      %1219 = vmatprep.subr.bf16.mxu0 %v1128
      %1220 = vmatpush1.bf16.msra.mxu0 %v1127
      %1221 = vmatprep.subr.bf16.mxu0 %v1138
      %1222 = vmatpush1.bf16.msra.mxu0 %v1137
      %1223 = vmatprep.subr.bf16.mxu0 %v1151
      %1224 = vmatpush1.bf16.msra.mxu0 %v1150
      %1225 = vmatprep.subr.bf16.mxu0 %v1164
      %1226 = vmatpush1.bf16.msra.mxu0 %v1163
      %1227 = vmatprep.subr.bf16.mxu0 %v1174
      %1228 = vmatpush1.bf16.msra.mxu0 %v1173
      %1229 = vmatprep.subr.bf16.mxu0 %v1187
      %1230 = vmatpush1.bf16.msra.mxu0 %v1186
      %1231 = vmatprep.subr.bf16.mxu0 0
      %1232 = vmatpush1.bf16.msra.mxu0 0
      %1233 = vmatprep.subr.bf16.mxu0 0
      %1234 = vmatpush1.bf16.msra.mxu0 0
      %1235 = vmatprep.subr.bf16.mxu0 0
      %1236 = vmatpush1.bf16.msra.mxu0 0
      %1237 = vmatprep.subr.bf16.mxu0 0
      %1238 = vmatpush1.bf16.msra.mxu0 0
      %1239 = vmatprep.subr.bf16.mxu0 0
      %1240 = vmatpush1.bf16.msra.mxu0 0
      %1241 = vmatprep.subr.bf16.mxu0 0
      %1242 = vmatpush1.bf16.msra.mxu0 0
      %1243 = vmatprep.subr.bf16.mxu0 0
      %1244 = vmatpush1.bf16.msra.mxu0 0
      %1245 = vmatprep.mubr.bf16.mxu0 %v1211
      %1246 = vmatmul.mubr.bf16.gmra.mrb[0].mxu0 %v1206
      %v1247 = vpop.f32.mrb[0].mxu0
      %v1248 = vadd.f32 %v1193, %v1247
      %v1249 = vpop.f32.mrb[0].mxu0
      %v1250 = vadd.f32 %v1193, %v1249
      %v1251 = vpop.f32.mrb[0].mxu0
      %v1252 = vadd.f32 %v1198, %v1251
      %v1253 = vpop.f32.mrb[0].mxu0
      %v1254 = vadd.f32 %v1198, %v1253
      %1255 = vdwg.mxu0
      %v1256 = vadd.f32 %v1248, %v626
      %v1257 = vadd.f32 %v1250, %v628
      %v1258 = vadd.f32 %v1252, %v630
      %v1259 = vadd.f32 %v1254, %v632
      %1260 = vst [vmem:[%s278] sm:$0xff] %v1256
      %1261 = vst [vmem:[%s278 + $0x8] sm:$0xff] %v1257
      %1262 = vst [vmem:[%s278 + $0x10] sm:$0xff] %v1258
      %1263 = vst [vmem:[%s278 + $0x18] sm:$0xff] %v1259
      %p1264 = scmp.lt.s32.totalorder %s18, 1
      %s1265 = scalar_select %p1264, %s18, 1
      %s1266 = smul.addr %s1265, 4
      %s1267 = smul.addr %s1266, 8
      %s1268 = scalar_lea.vmem %s7, %s1267
      // Predicated region
      $region56: #{_lambda_.3} parent=47 // pred_check
        %p1269 = pneg %p188
      $region57: #{_lambda_.3} parent=47 // pred_check_branch
        %1271 = sbr.rel (%p1269) target = $region59
      $region58: #{_lambda_.3} parent=47 // pred_region
        _
      $region59: #{_lambda_.3} parent=47 // pred_fallthru
        _
    $region48: #{_lambda_.3} parent=5 // pred_fallthru
      _
    %p1272 = scmp.le.s32.totalorder 2, %s13
    // Predicated region
    $region60: #{_lambda_.3} parent=5 // pred_check
      %p1273 = pneg %p1272
    $region61: #{_lambda_.3} parent=5 // pred_check_branch
      %1275 = sbr.rel (%p1273) target = $region63
    $region62: #{_lambda_.3} parent=5 // pred_region
      %s1276 = ssub.s32 %s13, 2
      // Predicated region
      $region64: #{_lambda_.3} parent=62 // pred_check
        %p1277 = pneg %p194
      $region65: #{_lambda_.3} parent=62 // pred_check_branch
        %1279 = sbr.rel (%p1277) target = $region67
      $region66: #{_lambda_.3} parent=62 // pred_region
        %p1280 = scmp.lt.s32.totalorder %s19, 1
        %s1281 = scalar_select %p1280, %s19, 1
        %s1282 = smul.addr %s1281, 4
        %s1283 = smul.addr %s1282, 8
        %s1284 = scalar_lea.vmem %s7, %s1283
      $region67: #{_lambda_.3} parent=62 // pred_fallthru
        _
    $region63: #{_lambda_.3} parent=5 // pred_fallthru
      _
  $region6: #{_lambda_.3} parent=0 // loop_footer
    %s17 = sadd.s32 1, %s13
  $region7: #{_lambda_.3} parent=0 // loop_footer_branch
    %12 = sbr.rel target = $region3
  $region8: #{_lambda_.3} parent=0 // loop_exit
    _

// kernel: _lambda_.5
$region0: #{_lambda_.5}
  #allocation0 [shape = 'u32[]', space=smem, size = 0x4, offset = 0x4, fixed_abs, tag = 'smem constant byte address 0x4 - core index']
  #allocation1 [shape = 'u32[144,128]{1,0:T(1,128)}', space=vmem, size = 0x12000, scoped, tag = 'internal scratch']
  %s0 = inlined_call_operand.vmem [shape: f32[2,16,1024], index: 0, kind: input, shape index: {}]
  %s1 = inlined_call_operand.vmem [shape: bf16[4,144], index: 1, kind: input, shape index: {}]
  %s2 = inlined_call_operand.vmem [shape: f32[4,1], index: 2, kind: input, shape index: {}]
  %s3 = inlined_call_operand.vmem [shape: f32[2,4,1024], index: 3, kind: output, shape index: {}]
  %s4 = sld [smem:[#allocation0]]
  $region45: #{_lambda_.5} parent=0
    _
  %s6 = ssub.s32 1, %s4
  %s7 = scalar_select 0, %s6, %s4
  loop: start=0, step=1, limit=4
  $region2: #{_lambda_.5} parent=0 // loop_pre_header
    _
  $region3: #{_lambda_.5} parent=0 // loop_header
    %s9 = sphi 0, %s13
    %p10 = scmp.ge.s32.totalorder %s9, 4
    %s19 = sphi 0, %s21
    %s22 = sphi 0, %s19
    %s23 = sphi 0, %s22
    %s39 = sphi 0, %s23
    %s43 = sphi 0, %s43
    %s45 = sphi 0, %s43
    %s46 = sphi 0, %s45
    %s60 = sphi 0, %s46
    %s64 = sphi 0, %s64
    %s66 = sphi 0, %s64
    %s67 = sphi 0, %s66
    %s81 = sphi 0, %s67
    %s87 = sphi 0, %s89
    %s90 = sphi 0, %s87
    %s91 = sphi 0, %s90
    %s107 = sphi 0, %s91
  $region4: #{_lambda_.5} parent=0 // loop_header_branch
    %12 = sbr.rel (%p10) target = $region8
  $region5: #{_lambda_.5} parent=0 // loop_body
    %s14 = ssub.s32 %s9, 1
    %s15 = ssub.s32 %s9, 2
    %s16 = sadd.s32 %s9, 1
    %s17 = ssub.s32 %s9, %s16
    %p18 = scmp.eq.s32.totalorder %s17, 0
    %s20 = sadd.s32 %s19, 1
    %s21 = scalar_select %p18, %s19, %s20
    %p24 = pneg %p18
    %p25 = scmp.eq.s32.totalorder %s9, 1
    %p26 = por %p24, %p25
    %p27 = scmp.ne.s32.totalorder %s19, %s22
    %p28 = scmp.eq.s32.totalorder %s9, 0
    %p29 = por %p27, %p28
    %p30 = scmp.ne.s32.totalorder %s19, %s22
    %p31 = scmp.eq.s32.totalorder %s14, 1
    %p32 = por %p30, %p31
    %p33 = scmp.ne.s32.totalorder %s22, %s23
    %p34 = scmp.eq.s32.totalorder %s14, 0
    %p35 = por %p33, %p34
    %p36 = scmp.ne.s32.totalorder %s22, %s23
    %p37 = scmp.eq.s32.totalorder %s15, 1
    %p38 = por %p36, %p37
    %p40 = scmp.ne.s32.totalorder %s23, %s39
    %p41 = scmp.eq.s32.totalorder %s15, 0
    %p42 = por %p40, %p41
    %s44 = sadd.s32 %s43, 1
    %p47 = scmp.eq.s32.totalorder %s9, 1
    %p48 = scmp.ne.s32.totalorder %s43, %s45
    %p49 = scmp.eq.s32.totalorder %s9, 0
    %p50 = por %p48, %p49
    %p51 = scmp.ne.s32.totalorder %s43, %s45
    %p52 = scmp.eq.s32.totalorder %s14, 1
    %p53 = por %p51, %p52
    %p54 = scmp.ne.s32.totalorder %s45, %s46
    %p55 = scmp.eq.s32.totalorder %s14, 0
    %p56 = por %p54, %p55
    %p57 = scmp.ne.s32.totalorder %s45, %s46
    %p58 = scmp.eq.s32.totalorder %s15, 1
    %p59 = por %p57, %p58
    %p61 = scmp.ne.s32.totalorder %s46, %s60
    %p62 = scmp.eq.s32.totalorder %s15, 0
    %p63 = por %p61, %p62
    %s65 = sadd.s32 %s64, 1
    %p68 = scmp.eq.s32.totalorder %s9, 1
    %p69 = scmp.ne.s32.totalorder %s64, %s66
    %p70 = scmp.eq.s32.totalorder %s9, 0
    %p71 = por %p69, %p70
    %p72 = scmp.ne.s32.totalorder %s64, %s66
    %p73 = scmp.eq.s32.totalorder %s14, 1
    %p74 = por %p72, %p73
    %p75 = scmp.ne.s32.totalorder %s66, %s67
    %p76 = scmp.eq.s32.totalorder %s14, 0
    %p77 = por %p75, %p76
    %p78 = scmp.ne.s32.totalorder %s66, %s67
    %p79 = scmp.eq.s32.totalorder %s15, 1
    %p80 = por %p78, %p79
    %p82 = scmp.ne.s32.totalorder %s67, %s81
    %p83 = scmp.eq.s32.totalorder %s15, 0
    %p84 = por %p82, %p83
    %s85 = ssub.s32 %s9, %s16
    %p86 = scmp.eq.s32.totalorder %s85, 0
    %s88 = sadd.s32 %s87, 1
    %s89 = scalar_select %p86, %s87, %s88
    %p92 = pneg %p86
    %p93 = scmp.eq.s32.totalorder %s9, 1
    %p94 = por %p92, %p93
    %p95 = scmp.ne.s32.totalorder %s87, %s90
    %p96 = scmp.eq.s32.totalorder %s9, 0
    %p97 = por %p95, %p96
    %p98 = scmp.ne.s32.totalorder %s87, %s90
    %p99 = scmp.eq.s32.totalorder %s14, 1
    %p100 = por %p98, %p99
    %p101 = scmp.ne.s32.totalorder %s90, %s91
    %p102 = scmp.eq.s32.totalorder %s14, 0
    %p103 = por %p101, %p102
    %p104 = scmp.ne.s32.totalorder %s90, %s91
    %p105 = scmp.eq.s32.totalorder %s15, 1
    %p106 = por %p104, %p105
    %p108 = scmp.ne.s32.totalorder %s91, %s107
    %p109 = scmp.eq.s32.totalorder %s15, 0
    %p110 = por %p108, %p109
    %p111 = scmp.le.s32.totalorder 1, %s9
    %p112 = scmp.lt.s32.totalorder %s9, 3
    %p113 = pnand %p111, %p112
    %p114 = pneg %p113
    // Predicated region
    $region9: #{_lambda_.5} parent=5 // pred_check
      _
    $region10: #{_lambda_.5} parent=5 // pred_check_branch
      %116 = sbr.rel (%p113) target = $region12
    $region11: #{_lambda_.5} parent=5 // pred_region
      %s117 = ssub.s32 %s9, 1
      // Predicated region
      $region13: #{_lambda_.5} parent=11 // pred_check
        %p118 = pneg %p56
      $region14: #{_lambda_.5} parent=11 // pred_check_branch
        %120 = sbr.rel (%p118) target = $region16
      $region15: #{_lambda_.5} parent=11 // pred_region
        _
      $region16: #{_lambda_.5} parent=11 // pred_fallthru
        _
      // Predicated region
      $region17: #{_lambda_.5} parent=11 // pred_check
        %p121 = pneg %p77
      $region18: #{_lambda_.5} parent=11 // pred_check_branch
        %123 = sbr.rel (%p121) target = $region20
      $region19: #{_lambda_.5} parent=11 // pred_region
        _
      $region20: #{_lambda_.5} parent=11 // pred_fallthru
        _
    $region12: #{_lambda_.5} parent=5 // pred_fallthru
      _
    %p124 = scmp.lt.s32.totalorder %s9, 2
    // Predicated region
    $region21: #{_lambda_.5} parent=5 // pred_check
      %p125 = pneg %p124
    $region22: #{_lambda_.5} parent=5 // pred_check_branch
      %127 = sbr.rel (%p125) target = $region24
    $region23: #{_lambda_.5} parent=5 // pred_region
      // Predicated region
      $region25: #{_lambda_.5} parent=23 // pred_check
        %p128 = pneg %p29
      $region26: #{_lambda_.5} parent=23 // pred_check_branch
        %130 = sbr.rel (%p128) target = $region28
      $region27: #{_lambda_.5} parent=23 // pred_region
        %p131 = scmp.lt.s32.totalorder %s9, 1
        %s132 = scalar_select %p131, %s9, 1
        %s133 = smul.addr %s132, 16
        %s134 = smul.addr %s133, 8
        %s135 = scalar_lea.vmem %s0, %s134
      $region28: #{_lambda_.5} parent=23 // pred_fallthru
        _
    $region24: #{_lambda_.5} parent=5 // pred_fallthru
      _
    %p136 = scmp.le.s32.totalorder 1, %s9
    %p137 = scmp.lt.s32.totalorder %s9, 3
    %p138 = pnand %p136, %p137
    %p139 = pneg %p138
    // Predicated region
    $region29: #{_lambda_.5} parent=5 // pred_check
      _
    $region30: #{_lambda_.5} parent=5 // pred_check_branch
      %141 = sbr.rel (%p138) target = $region32
    $region31: #{_lambda_.5} parent=5 // pred_region
      %s142 = ssub.s32 %s9, 1
      %p143 = scmp.lt.s32.totalorder %s14, 1
      %s144 = scalar_select %p143, %s14, 1
      %s145 = smul.addr %s144, 16
      %s146 = smul.addr %s145, 8
      %s147 = scalar_lea.vmem %s0, %s146
      %p148 = pneg %p35
      %p149 = pneg %p32
      %p150 = pneg %p56
      %p151 = pneg %p53
      %p152 = pneg %p77
      %p153 = pneg %p74
      %p154 = pneg %p103
      %p155 = pneg %p100
      %p156 = scmp.lt.s32.totalorder %s14, 1
      %s157 = scalar_select %p156, %s14, 1
      %s158 = smul.addr %s157, 8
      %s159 = smul.addr %s158, 4
      %s160 = scalar_lea.vmem %s3, %s159
      %p161 = scmp.lt.s32.totalorder %s14, 1
      %s162 = scalar_select %p161, %s14, 1
      %s163 = smul.addr %s162, 16
      %s164 = smul.addr %s163, 8
      %s165 = scalar_lea.vmem %s0, %s164
      %p166 = scmp.lt.s32.totalorder %s14, 1
      %s167 = scalar_select %p166, %s14, 1
      %s168 = smul.addr %s167, 8
      %s169 = smul.addr %s168, 4
      %s170 = scalar_lea.vmem %s3, %s169
      %v174 = vld [vmem:[%s165] sm:$0xff]
      %v175 = vld [vmem:[%s165 + $0x8] sm:$0xff]
      %v176 = vld [vmem:[%s165 + $0x10] sm:$0xff]
      %v177 = vld [vmem:[%s165 + $0x18] sm:$0xff]
      %v178 = vld [vmem:[%s165 + $0x20] sm:$0xff]
      %v179 = vld [vmem:[%s165 + $0x28] sm:$0xff]
      %v180 = vld [vmem:[%s165 + $0x30] sm:$0xff]
      %v181 = vld [vmem:[%s165 + $0x38] sm:$0xff]
      %v182 = vld [vmem:[%s165 + $0x40] sm:$0xff]
      %v183 = vld [vmem:[%s165 + $0x48] sm:$0xff]
      %v184 = vld [vmem:[%s165 + $0x50] sm:$0xff]
      %v185 = vld [vmem:[%s165 + $0x58] sm:$0xff]
      %v186 = vld [vmem:[%s165 + $0x60] sm:$0xff]
      %v187 = vld [vmem:[%s165 + $0x68] sm:$0xff]
      %v188 = vld [vmem:[%s165 + $0x70] sm:$0xff]
      %v189 = vld [vmem:[%s165 + $0x78] sm:$0xff]
      %v190 = vld [vmem:[%s1] sm:$0xf]
      %v191 = vld [vmem:[%s2] sm:$0xf]
      %v192 = vpack.c.bf16 %v182, %v174
      %v193 = vpack.c.bf16 %v183, %v175
      %v194 = vpack.c.bf16 %v184, %v176
      %v195 = vpack.c.bf16 %v185, %v177
      %v196 = vpack.c.bf16 %v186, %v178
      %v197 = vpack.c.bf16 %v187, %v179
      %v198 = vpack.c.bf16 %v188, %v180
      %v199 = vpack.c.bf16 %v189, %v181
      %208 = vrot.lane.b32.xlu0 %v192, 33
      %v209 = vpop.permute.xlu0 %208
      %210 = vrot.lane.b32.xlu0 %v193, 33
      %v211 = vpop.permute.xlu0 %210
      %212 = vrot.lane.b32.xlu0 %v194, 33
      %v213 = vpop.permute.xlu0 %212
      %214 = vrot.lane.b32.xlu0 %v195, 33
      %v215 = vpop.permute.xlu0 %214
      %216 = vrot.lane.b32.xlu0 %v196, 33
      %v217 = vpop.permute.xlu0 %216
      %218 = vrot.lane.b32.xlu0 %v197, 33
      %v219 = vpop.permute.xlu0 %218
      %220 = vrot.lane.b32.xlu0 %v198, 33
      %v221 = vpop.permute.xlu0 %220
      %222 = vrot.lane.b32.xlu0 %v199, 33
      %v223 = vpop.permute.xlu0 %222
      %vm224 = vcmask 269312
      %v225 = vsel %vm224, %v209, %v211
      %v226 = vsel %vm224, %v211, %v213
      %v227 = vsel %vm224, %v213, %v215
      %v228 = vsel %vm224, %v215, %v217
      %v229 = vsel %vm224, %v217, %v219
      %v230 = vsel %vm224, %v219, %v221
      %v231 = vsel %vm224, %v221, %v223
      %vm239 = vcmask 269312
      %v242 = vsel %vm239, 0, %v209
      %v245 = vsel %vm239, %v223, 0
      %v247 = vlaneseq
      %v248 = vand.u32 %v247, 127
      %v249 = vadd.s32 %v248, 128
      %v250 = vadd.s32 %v248, 256
      %v251 = vadd.s32 %v248, 384
      %v252 = vadd.s32 %v248, 512
      %v253 = vadd.s32 %v248, 640
      %v254 = vadd.s32 %v248, 768
      %v255 = vadd.s32 %v248, 896
      %vm256 = vcmp.lt.s32.totalorder %v248, 0
      %v257 = vsub.s32 0, %v248
      %v258 = vsel %vm256, %v257, %v248
      %v259 = vshrl.u32 %v258, 5
      %v260 = vand.u32 %v258, 31
      %v261 = vsub.s32 0, %v260
      %v262 = vsel %vm256, %v261, %v260
      %vm263 = vcmp.lt.s32.totalorder %v249, 0
      %v264 = vsub.s32 0, %v249
      %v265 = vsel %vm263, %v264, %v249
      %v266 = vshrl.u32 %v265, 5
      %v267 = vand.u32 %v265, 31
      %v268 = vsub.s32 0, %v267
      %v269 = vsel %vm263, %v268, %v267
      %vm270 = vcmp.lt.s32.totalorder %v250, 0
      %v271 = vsub.s32 0, %v250
      %v272 = vsel %vm270, %v271, %v250
      %v273 = vshrl.u32 %v272, 5
      %v274 = vand.u32 %v272, 31
      %v275 = vsub.s32 0, %v274
      %v276 = vsel %vm270, %v275, %v274
      %vm277 = vcmp.lt.s32.totalorder %v251, 0
      %v278 = vsub.s32 0, %v251
      %v279 = vsel %vm277, %v278, %v251
      %v280 = vshrl.u32 %v279, 5
      %v281 = vand.u32 %v279, 31
      %v282 = vsub.s32 0, %v281
      %v283 = vsel %vm277, %v282, %v281
      %vm284 = vcmp.lt.s32.totalorder %v252, 0
      %v285 = vsub.s32 0, %v252
      %v286 = vsel %vm284, %v285, %v252
      %v287 = vshrl.u32 %v286, 5
      %v288 = vand.u32 %v286, 31
      %v289 = vsub.s32 0, %v288
      %v290 = vsel %vm284, %v289, %v288
      %vm291 = vcmp.lt.s32.totalorder %v253, 0
      %v292 = vsub.s32 0, %v253
      %v293 = vsel %vm291, %v292, %v253
      %v294 = vshrl.u32 %v293, 5
      %v295 = vand.u32 %v293, 31
      %v296 = vsub.s32 0, %v295
      %v297 = vsel %vm291, %v296, %v295
      %vm298 = vcmp.lt.s32.totalorder %v254, 0
      %v299 = vsub.s32 0, %v254
      %v300 = vsel %vm298, %v299, %v254
      %v301 = vshrl.u32 %v300, 5
      %v302 = vand.u32 %v300, 31
      %v303 = vsub.s32 0, %v302
      %v304 = vsel %vm298, %v303, %v302
      %vm305 = vcmp.lt.s32.totalorder %v255, 0
      %v306 = vsub.s32 0, %v255
      %v307 = vsel %vm305, %v306, %v255
      %v308 = vshrl.u32 %v307, 5
      %v309 = vand.u32 %v307, 31
      %v310 = vsub.s32 0, %v309
      %v311 = vsel %vm305, %v310, %v309
      %vm312 = vcmp.ne.s32.totalorder %v262, 0
      %vm313 = vcmp.ne.s32.totalorder %v269, 0
      %vm314 = vcmp.ne.s32.totalorder %v276, 0
      %vm315 = vcmp.ne.s32.totalorder %v283, 0
      %vm316 = vcmp.ne.s32.totalorder %v290, 0
      %vm317 = vcmp.ne.s32.totalorder %v297, 0
      %vm318 = vcmp.ne.s32.totalorder %v304, 0
      %vm319 = vcmp.ne.s32.totalorder %v311, 0
      %vm320 = vcmp.lt.s32.totalorder %v262, 0
      %vm321 = vcmp.lt.s32.totalorder %v269, 0
      %vm322 = vcmp.lt.s32.totalorder %v276, 0
      %vm323 = vcmp.lt.s32.totalorder %v283, 0
      %vm324 = vcmp.lt.s32.totalorder %v290, 0
      %vm325 = vcmp.lt.s32.totalorder %v297, 0
      %vm326 = vcmp.lt.s32.totalorder %v304, 0
      %vm327 = vcmp.lt.s32.totalorder %v311, 0
      %vm328 = vmand %vm320, %vm312
      %vm329 = vmand %vm321, %vm313
      %vm330 = vmand %vm322, %vm314
      %vm331 = vmand %vm323, %vm315
      %vm332 = vmand %vm324, %vm316
      %vm333 = vmand %vm325, %vm317
      %vm334 = vmand %vm326, %vm318
      %vm335 = vmand %vm327, %vm319
      %v336 = vadd.s32 %v262, 32
      %v337 = vadd.s32 %v269, 32
      %v338 = vadd.s32 %v276, 32
      %v339 = vadd.s32 %v283, 32
      %v340 = vadd.s32 %v290, 32
      %v341 = vadd.s32 %v297, 32
      %v342 = vadd.s32 %v304, 32
      %v343 = vadd.s32 %v311, 32
      %v344 = vsel %vm328, %v336, %v262
      %v345 = vsel %vm329, %v337, %v269
      %v346 = vsel %vm330, %v338, %v276
      %v347 = vsel %vm331, %v339, %v283
      %v348 = vsel %vm332, %v340, %v290
      %v349 = vsel %vm333, %v341, %v297
      %v350 = vsel %vm334, %v342, %v304
      %v351 = vsel %vm335, %v343, %v311
      %vm352 = vcmp.gt.s32.totalorder %v344, 0
      %vm353 = vcmp.gt.s32.totalorder %v345, 0
      %vm354 = vcmp.gt.s32.totalorder %v346, 0
      %vm355 = vcmp.gt.s32.totalorder %v347, 0
      %vm356 = vcmp.gt.s32.totalorder %v348, 0
      %vm357 = vcmp.gt.s32.totalorder %v349, 0
      %vm358 = vcmp.gt.s32.totalorder %v350, 0
      %vm359 = vcmp.gt.s32.totalorder %v351, 0
      %vm360 = vcmp.lt.s32.totalorder %v344, 31
      %vm361 = vcmp.lt.s32.totalorder %v345, 31
      %vm362 = vcmp.lt.s32.totalorder %v346, 31
      %vm363 = vcmp.lt.s32.totalorder %v347, 31
      %vm364 = vcmp.lt.s32.totalorder %v348, 31
      %vm365 = vcmp.lt.s32.totalorder %v349, 31
      %vm366 = vcmp.lt.s32.totalorder %v350, 31
      %vm367 = vcmp.lt.s32.totalorder %v351, 31
      %vm368 = vmpackc.low %vm353, %vm352
      %vm369 = vmpackc.low %vm355, %vm354
      %vm370 = vmpackc.low %vm357, %vm356
      %vm371 = vmpackc.low %vm359, %vm358
      %v372 = vsel %vm368, 65537, 0
      %v373 = vsel %vm369, 65537, 0
      %v374 = vsel %vm370, 65537, 0
      %v375 = vsel %vm371, 65537, 0
      %v376 = vlaneseq
      %v377 = vshrl.u32 %v376, 7
      %v378 = vsub.s32 0, %v377
      %v379 = vrot.slane %v372, %v378
      %v380 = vlaneseq
      %v381 = vshrl.u32 %v380, 7
      %v382 = vsub.s32 4, %v381
      %v383 = vrot.slane %v372, %v382
      %v384 = vlaneseq
      %v385 = vshrl.u32 %v384, 7
      %v386 = vsub.s32 0, %v385
      %v387 = vrot.slane %v373, %v386
      %v388 = vlaneseq
      %v389 = vshrl.u32 %v388, 7
      %v390 = vsub.s32 4, %v389
      %v391 = vrot.slane %v373, %v390
      %v392 = vlaneseq
      %v393 = vshrl.u32 %v392, 7
      %v394 = vsub.s32 0, %v393
      %v395 = vrot.slane %v374, %v394
      %v396 = vlaneseq
      %v397 = vshrl.u32 %v396, 7
      %v398 = vsub.s32 4, %v397
      %v399 = vrot.slane %v374, %v398
      %v400 = vlaneseq
      %v401 = vshrl.u32 %v400, 7
      %v402 = vsub.s32 0, %v401
      %v403 = vrot.slane %v375, %v402
      %v404 = vlaneseq
      %v405 = vshrl.u32 %v404, 7
      %v406 = vsub.s32 4, %v405
      %v407 = vrot.slane %v375, %v406
      %vm408 = vcmp.ne.s16.totalorder %v379, 0
      %vm409 = vcmp.ne.s16.totalorder %v383, 0
      %vm410 = vcmp.ne.s16.totalorder %v387, 0
      %vm411 = vcmp.ne.s16.totalorder %v391, 0
      %vm412 = vcmp.ne.s16.totalorder %v395, 0
      %vm413 = vcmp.ne.s16.totalorder %v399, 0
      %vm414 = vcmp.ne.s16.totalorder %v403, 0
      %vm415 = vcmp.ne.s16.totalorder %v407, 0
      %v416 = vsel %vm408, %v242, 0
      %v417 = vsel %vm409, %v225, 0
      %v418 = vsel %vm410, %v226, 0
      %v419 = vsel %vm411, %v227, 0
      %v420 = vsel %vm412, %v228, 0
      %v421 = vsel %vm413, %v229, 0
      %v422 = vsel %vm414, %v230, 0
      %v423 = vsel %vm415, %v231, 0
      %vm424 = vmpackc.low %vm361, %vm360
      %vm425 = vmpackc.low %vm363, %vm362
      %vm426 = vmpackc.low %vm365, %vm364
      %vm427 = vmpackc.low %vm367, %vm366
      %v428 = vsel %vm424, 65537, 0
      %v429 = vsel %vm425, 65537, 0
      %v430 = vsel %vm426, 65537, 0
      %v431 = vsel %vm427, 65537, 0
      %v432 = vlaneseq
      %v433 = vshrl.u32 %v432, 7
      %v434 = vsub.s32 0, %v433
      %v435 = vrot.slane %v428, %v434
      %v436 = vlaneseq
      %v437 = vshrl.u32 %v436, 7
      %v438 = vsub.s32 4, %v437
      %v439 = vrot.slane %v428, %v438
      %v440 = vlaneseq
      %v441 = vshrl.u32 %v440, 7
      %v442 = vsub.s32 0, %v441
      %v443 = vrot.slane %v429, %v442
      %v444 = vlaneseq
      %v445 = vshrl.u32 %v444, 7
      %v446 = vsub.s32 4, %v445
      %v447 = vrot.slane %v429, %v446
      %v448 = vlaneseq
      %v449 = vshrl.u32 %v448, 7
      %v450 = vsub.s32 0, %v449
      %v451 = vrot.slane %v430, %v450
      %v452 = vlaneseq
      %v453 = vshrl.u32 %v452, 7
      %v454 = vsub.s32 4, %v453
      %v455 = vrot.slane %v430, %v454
      %v456 = vlaneseq
      %v457 = vshrl.u32 %v456, 7
      %v458 = vsub.s32 0, %v457
      %v459 = vrot.slane %v431, %v458
      %v460 = vlaneseq
      %v461 = vshrl.u32 %v460, 7
      %v462 = vsub.s32 4, %v461
      %v463 = vrot.slane %v431, %v462
      %464 = vrot.lane.b32.xlu0 %v435, 2
      %v465 = vpop.permute.xlu0 %464
      %466 = vrot.lane.b32.xlu0 %v439, 2
      %v467 = vpop.permute.xlu0 %466
      %468 = vrot.lane.b32.xlu0 %v443, 2
      %v469 = vpop.permute.xlu0 %468
      %470 = vrot.lane.b32.xlu0 %v447, 2
      %v471 = vpop.permute.xlu0 %470
      %472 = vrot.lane.b32.xlu0 %v451, 2
      %v473 = vpop.permute.xlu0 %472
      %474 = vrot.lane.b32.xlu0 %v455, 2
      %v475 = vpop.permute.xlu0 %474
      %476 = vrot.lane.b32.xlu0 %v459, 2
      %v477 = vpop.permute.xlu0 %476
      %478 = vrot.lane.b32.xlu0 %v463, 2
      %v479 = vpop.permute.xlu0 %478
      %vm480 = vcmask 15360
      %v481 = vsel %vm480, %v465, %v467
      %v482 = vsel %vm480, %v467, %v469
      %v483 = vsel %vm480, %v469, %v471
      %v484 = vsel %vm480, %v471, %v473
      %v485 = vsel %vm480, %v473, %v475
      %v486 = vsel %vm480, %v475, %v477
      %v487 = vsel %vm480, %v477, %v479
      %vm488 = vcmp.ne.s16.totalorder %v465, 0
      %vm489 = vcmp.ne.s16.totalorder %v481, 0
      %vm490 = vcmp.ne.s16.totalorder %v482, 0
      %vm491 = vcmp.ne.s16.totalorder %v483, 0
      %vm492 = vcmp.ne.s16.totalorder %v484, 0
      %vm493 = vcmp.ne.s16.totalorder %v485, 0
      %vm494 = vcmp.ne.s16.totalorder %v486, 0
      %vm495 = vcmp.ne.s16.totalorder %v487, 0
      %vm496 = vcmp.ne.s16.totalorder %v479, 0
      %v497 = vsel %vm488, %v242, 0
      %v498 = vsel %vm489, %v225, 0
      %v499 = vsel %vm490, %v226, 0
      %v500 = vsel %vm491, %v227, 0
      %v501 = vsel %vm492, %v228, 0
      %v502 = vsel %vm493, %v229, 0
      %v503 = vsel %vm494, %v230, 0
      %v504 = vsel %vm495, %v231, 0
      %v505 = vsel %vm496, %v245, 0
      %506 = vrot.lane.b32.xlu0 %v379, 32
      %v507 = vpop.permute.xlu0 %506
      %508 = vrot.lane.b32.xlu0 %v383, 32
      %v509 = vpop.permute.xlu0 %508
      %510 = vrot.lane.b32.xlu0 %v387, 32
      %v511 = vpop.permute.xlu0 %510
      %512 = vrot.lane.b32.xlu0 %v391, 32
      %v513 = vpop.permute.xlu0 %512
      %514 = vrot.lane.b32.xlu0 %v395, 32
      %v515 = vpop.permute.xlu0 %514
      %516 = vrot.lane.b32.xlu0 %v399, 32
      %v517 = vpop.permute.xlu0 %516
      %518 = vrot.lane.b32.xlu0 %v403, 32
      %v519 = vpop.permute.xlu0 %518
      %520 = vrot.lane.b32.xlu0 %v407, 32
      %v521 = vpop.permute.xlu0 %520
      %vm522 = vcmask 261120
      %v523 = vsel %vm522, %v507, %v509
      %v524 = vsel %vm522, %v509, %v511
      %v525 = vsel %vm522, %v511, %v513
      %v526 = vsel %vm522, %v513, %v515
      %v527 = vsel %vm522, %v515, %v517
      %v528 = vsel %vm522, %v517, %v519
      %v529 = vsel %vm522, %v519, %v521
      %vm530 = vcmp.ne.s16.totalorder %v507, 0
      %vm531 = vcmp.ne.s16.totalorder %v523, 0
      %vm532 = vcmp.ne.s16.totalorder %v524, 0
      %vm533 = vcmp.ne.s16.totalorder %v525, 0
      %vm534 = vcmp.ne.s16.totalorder %v526, 0
      %vm535 = vcmp.ne.s16.totalorder %v527, 0
      %vm536 = vcmp.ne.s16.totalorder %v528, 0
      %vm537 = vcmp.ne.s16.totalorder %v529, 0
      %vm538 = vcmp.ne.s16.totalorder %v521, 0
      %v539 = vsel %vm530, %v242, 0
      %v540 = vsel %vm531, %v225, 0
      %v541 = vsel %vm532, %v226, 0
      %v542 = vsel %vm533, %v227, 0
      %v543 = vsel %vm534, %v228, 0
      %v544 = vsel %vm535, %v229, 0
      %v545 = vsel %vm536, %v230, 0
      %v546 = vsel %vm537, %v231, 0
      %v547 = vsel %vm538, %v245, 0
      %548 = vrot.lane.b32.xlu0 %v435, 34
      %v549 = vpop.permute.xlu0 %548
      %550 = vrot.lane.b32.xlu0 %v439, 34
      %v551 = vpop.permute.xlu0 %550
      %552 = vrot.lane.b32.xlu0 %v443, 34
      %v553 = vpop.permute.xlu0 %552
      %554 = vrot.lane.b32.xlu0 %v447, 34
      %v555 = vpop.permute.xlu0 %554
      %556 = vrot.lane.b32.xlu0 %v451, 34
      %v557 = vpop.permute.xlu0 %556
      %558 = vrot.lane.b32.xlu0 %v455, 34
      %v559 = vpop.permute.xlu0 %558
      %560 = vrot.lane.b32.xlu0 %v459, 34
      %v561 = vpop.permute.xlu0 %560
      %562 = vrot.lane.b32.xlu0 %v463, 34
      %v563 = vpop.permute.xlu0 %562
      %vm564 = vcmask 277504
      %v565 = vsel %vm564, %v549, %v551
      %v566 = vsel %vm564, %v551, %v553
      %v567 = vsel %vm564, %v553, %v555
      %v568 = vsel %vm564, %v555, %v557
      %v569 = vsel %vm564, %v557, %v559
      %v570 = vsel %vm564, %v559, %v561
      %v571 = vsel %vm564, %v561, %v563
      %vm572 = vcmp.ne.s16.totalorder %v549, 0
      %vm573 = vcmp.ne.s16.totalorder %v565, 0
      %vm574 = vcmp.ne.s16.totalorder %v566, 0
      %vm575 = vcmp.ne.s16.totalorder %v567, 0
      %vm576 = vcmp.ne.s16.totalorder %v568, 0
      %vm577 = vcmp.ne.s16.totalorder %v569, 0
      %vm578 = vcmp.ne.s16.totalorder %v570, 0
      %vm579 = vcmp.ne.s16.totalorder %v571, 0
      %vm580 = vcmp.ne.s16.totalorder %v563, 0
      %v581 = vsel %vm572, %v242, 0
      %v582 = vsel %vm573, %v225, 0
      %v583 = vsel %vm574, %v226, 0
      %v584 = vsel %vm575, %v227, 0
      %v585 = vsel %vm576, %v228, 0
      %v586 = vsel %vm577, %v229, 0
      %v587 = vsel %vm578, %v230, 0
      %v588 = vsel %vm579, %v231, 0
      %v589 = vsel %vm580, %v245, 0
      %590 = vrot.lane.b32.xlu0 %v379, 64
      %v591 = vpop.permute.xlu0 %590
      %592 = vrot.lane.b32.xlu0 %v383, 64
      %v593 = vpop.permute.xlu0 %592
      %594 = vrot.lane.b32.xlu0 %v387, 64
      %v595 = vpop.permute.xlu0 %594
      %596 = vrot.lane.b32.xlu0 %v391, 64
      %v597 = vpop.permute.xlu0 %596
      %598 = vrot.lane.b32.xlu0 %v395, 64
      %v599 = vpop.permute.xlu0 %598
      %600 = vrot.lane.b32.xlu0 %v399, 64
      %v601 = vpop.permute.xlu0 %600
      %602 = vrot.lane.b32.xlu0 %v403, 64
      %v603 = vpop.permute.xlu0 %602
      %604 = vrot.lane.b32.xlu0 %v407, 64
      %v605 = vpop.permute.xlu0 %604
      %vm606 = vcmask 523264
      %v607 = vsel %vm606, %v591, %v593
      %v608 = vsel %vm606, %v593, %v595
      %v609 = vsel %vm606, %v595, %v597
      %v610 = vsel %vm606, %v597, %v599
      %v611 = vsel %vm606, %v599, %v601
      %v612 = vsel %vm606, %v601, %v603
      %v613 = vsel %vm606, %v603, %v605
      %vm614 = vcmp.ne.s16.totalorder %v591, 0
      %vm615 = vcmp.ne.s16.totalorder %v607, 0
      %vm616 = vcmp.ne.s16.totalorder %v608, 0
      %vm617 = vcmp.ne.s16.totalorder %v609, 0
      %vm618 = vcmp.ne.s16.totalorder %v610, 0
      %vm619 = vcmp.ne.s16.totalorder %v611, 0
      %vm620 = vcmp.ne.s16.totalorder %v612, 0
      %vm621 = vcmp.ne.s16.totalorder %v613, 0
      %vm622 = vcmp.ne.s16.totalorder %v605, 0
      %v623 = vsel %vm614, %v242, 0
      %v624 = vsel %vm615, %v225, 0
      %v625 = vsel %vm616, %v226, 0
      %v626 = vsel %vm617, %v227, 0
      %v627 = vsel %vm618, %v228, 0
      %v628 = vsel %vm619, %v229, 0
      %v629 = vsel %vm620, %v230, 0
      %v630 = vsel %vm621, %v231, 0
      %v631 = vsel %vm622, %v245, 0
      %632 = vrot.lane.b32.xlu0 %v435, 66
      %v633 = vpop.permute.xlu0 %632
      %634 = vrot.lane.b32.xlu0 %v439, 66
      %v635 = vpop.permute.xlu0 %634
      %636 = vrot.lane.b32.xlu0 %v443, 66
      %v637 = vpop.permute.xlu0 %636
      %638 = vrot.lane.b32.xlu0 %v447, 66
      %v639 = vpop.permute.xlu0 %638
      %640 = vrot.lane.b32.xlu0 %v451, 66
      %v641 = vpop.permute.xlu0 %640
      %642 = vrot.lane.b32.xlu0 %v455, 66
      %v643 = vpop.permute.xlu0 %642
      %644 = vrot.lane.b32.xlu0 %v459, 66
      %v645 = vpop.permute.xlu0 %644
      %646 = vrot.lane.b32.xlu0 %v463, 66
      %v647 = vpop.permute.xlu0 %646
      %vm648 = vcmask 539648
      %v649 = vsel %vm648, %v633, %v635
      %v650 = vsel %vm648, %v635, %v637
      %v651 = vsel %vm648, %v637, %v639
      %v652 = vsel %vm648, %v639, %v641
      %v653 = vsel %vm648, %v641, %v643
      %v654 = vsel %vm648, %v643, %v645
      %v655 = vsel %vm648, %v645, %v647
      %vm656 = vcmp.ne.s16.totalorder %v633, 0
      %vm657 = vcmp.ne.s16.totalorder %v649, 0
      %vm658 = vcmp.ne.s16.totalorder %v650, 0
      %vm659 = vcmp.ne.s16.totalorder %v651, 0
      %vm660 = vcmp.ne.s16.totalorder %v652, 0
      %vm661 = vcmp.ne.s16.totalorder %v653, 0
      %vm662 = vcmp.ne.s16.totalorder %v654, 0
      %vm663 = vcmp.ne.s16.totalorder %v655, 0
      %vm664 = vcmp.ne.s16.totalorder %v647, 0
      %v665 = vsel %vm656, %v242, 0
      %v666 = vsel %vm657, %v225, 0
      %v667 = vsel %vm658, %v226, 0
      %v668 = vsel %vm659, %v227, 0
      %v669 = vsel %vm660, %v228, 0
      %v670 = vsel %vm661, %v229, 0
      %v671 = vsel %vm662, %v230, 0
      %v672 = vsel %vm663, %v231, 0
      %v673 = vsel %vm664, %v245, 0
      %676 = vrot.lane.b32.xlu0 %v242, 127
      %v677 = vpop.permute.xlu0 %676
      %678 = vrot.lane.b32.xlu0 %v225, 127
      %v679 = vpop.permute.xlu0 %678
      %680 = vrot.lane.b32.xlu0 %v226, 127
      %v681 = vpop.permute.xlu0 %680
      %682 = vrot.lane.b32.xlu0 %v227, 127
      %v683 = vpop.permute.xlu0 %682
      %684 = vrot.lane.b32.xlu0 %v228, 127
      %v685 = vpop.permute.xlu0 %684
      %686 = vrot.lane.b32.xlu0 %v229, 127
      %v687 = vpop.permute.xlu0 %686
      %688 = vrot.lane.b32.xlu0 %v230, 127
      %v689 = vpop.permute.xlu0 %688
      %690 = vrot.lane.b32.xlu0 %v231, 127
      %v691 = vpop.permute.xlu0 %690
      %692 = vrot.lane.b32.xlu0 %v245, 127
      %v693 = vpop.permute.xlu0 %692
      %vm694 = vcmask 1039360
      %v695 = vsel %vm694, %v677, %v679
      %v696 = vsel %vm694, %v679, %v681
      %v697 = vsel %vm694, %v681, %v683
      %v698 = vsel %vm694, %v683, %v685
      %v699 = vsel %vm694, %v685, %v687
      %v700 = vsel %vm694, %v687, %v689
      %v701 = vsel %vm694, %v689, %v691
      %v702 = vsel %vm694, %v691, %v693
      %720 = vrot.lane.b32.xlu0 %v497, 126
      %v721 = vpop.permute.xlu0 %720
      %722 = vrot.lane.b32.xlu0 %v498, 126
      %v723 = vpop.permute.xlu0 %722
      %724 = vrot.lane.b32.xlu0 %v499, 126
      %v725 = vpop.permute.xlu0 %724
      %726 = vrot.lane.b32.xlu0 %v500, 126
      %v727 = vpop.permute.xlu0 %726
      %728 = vrot.lane.b32.xlu0 %v501, 126
      %v729 = vpop.permute.xlu0 %728
      %730 = vrot.lane.b32.xlu0 %v502, 126
      %v731 = vpop.permute.xlu0 %730
      %732 = vrot.lane.b32.xlu0 %v503, 126
      %v733 = vpop.permute.xlu0 %732
      %734 = vrot.lane.b32.xlu0 %v504, 126
      %v735 = vpop.permute.xlu0 %734
      %736 = vrot.lane.b32.xlu0 %v505, 126
      %v737 = vpop.permute.xlu0 %736
      %vm738 = vcmask 1031168
      %v739 = vsel %vm738, %v721, %v723
      %v740 = vsel %vm738, %v723, %v725
      %v741 = vsel %vm738, %v725, %v727
      %v742 = vsel %vm738, %v727, %v729
      %v743 = vsel %vm738, %v729, %v731
      %v744 = vsel %vm738, %v731, %v733
      %v745 = vsel %vm738, %v733, %v735
      %v746 = vsel %vm738, %v735, %v737
      %764 = vrot.lane.b32.xlu0 %v539, 96
      %v765 = vpop.permute.xlu0 %764
      %766 = vrot.lane.b32.xlu0 %v540, 96
      %v767 = vpop.permute.xlu0 %766
      %768 = vrot.lane.b32.xlu0 %v541, 96
      %v769 = vpop.permute.xlu0 %768
      %770 = vrot.lane.b32.xlu0 %v542, 96
      %v771 = vpop.permute.xlu0 %770
      %772 = vrot.lane.b32.xlu0 %v543, 96
      %v773 = vpop.permute.xlu0 %772
      %774 = vrot.lane.b32.xlu0 %v544, 96
      %v775 = vpop.permute.xlu0 %774
      %776 = vrot.lane.b32.xlu0 %v545, 96
      %v777 = vpop.permute.xlu0 %776
      %778 = vrot.lane.b32.xlu0 %v546, 96
      %v779 = vpop.permute.xlu0 %778
      %780 = vrot.lane.b32.xlu0 %v547, 96
      %v781 = vpop.permute.xlu0 %780
      %vm782 = vcmask 785408
      %v783 = vsel %vm782, %v765, %v767
      %v784 = vsel %vm782, %v767, %v769
      %v785 = vsel %vm782, %v769, %v771
      %v786 = vsel %vm782, %v771, %v773
      %v787 = vsel %vm782, %v773, %v775
      %v788 = vsel %vm782, %v775, %v777
      %v789 = vsel %vm782, %v777, %v779
      %v790 = vsel %vm782, %v779, %v781
      %799 = vrot.lane.b32.xlu0 %v242, 95
      %v800 = vpop.permute.xlu0 %799
      %801 = vrot.lane.b32.xlu0 %v225, 95
      %v802 = vpop.permute.xlu0 %801
      %803 = vrot.lane.b32.xlu0 %v226, 95
      %v804 = vpop.permute.xlu0 %803
      %805 = vrot.lane.b32.xlu0 %v227, 95
      %v806 = vpop.permute.xlu0 %805
      %807 = vrot.lane.b32.xlu0 %v228, 95
      %v808 = vpop.permute.xlu0 %807
      %809 = vrot.lane.b32.xlu0 %v229, 95
      %v810 = vpop.permute.xlu0 %809
      %811 = vrot.lane.b32.xlu0 %v230, 95
      %v812 = vpop.permute.xlu0 %811
      %813 = vrot.lane.b32.xlu0 %v231, 95
      %v814 = vpop.permute.xlu0 %813
      %815 = vrot.lane.b32.xlu0 %v245, 95
      %v816 = vpop.permute.xlu0 %815
      %vm817 = vcmask 777216
      %v818 = vsel %vm817, %v800, %v802
      %v819 = vsel %vm817, %v802, %v804
      %v820 = vsel %vm817, %v804, %v806
      %v821 = vsel %vm817, %v806, %v808
      %v822 = vsel %vm817, %v808, %v810
      %v823 = vsel %vm817, %v810, %v812
      %v824 = vsel %vm817, %v812, %v814
      %v825 = vsel %vm817, %v814, %v816
      %843 = vrot.lane.b32.xlu0 %v581, 94
      %v844 = vpop.permute.xlu0 %843
      %845 = vrot.lane.b32.xlu0 %v582, 94
      %v846 = vpop.permute.xlu0 %845
      %847 = vrot.lane.b32.xlu0 %v583, 94
      %v848 = vpop.permute.xlu0 %847
      %849 = vrot.lane.b32.xlu0 %v584, 94
      %v850 = vpop.permute.xlu0 %849
      %851 = vrot.lane.b32.xlu0 %v585, 94
      %v852 = vpop.permute.xlu0 %851
      %853 = vrot.lane.b32.xlu0 %v586, 94
      %v854 = vpop.permute.xlu0 %853
      %855 = vrot.lane.b32.xlu0 %v587, 94
      %v856 = vpop.permute.xlu0 %855
      %857 = vrot.lane.b32.xlu0 %v588, 94
      %v858 = vpop.permute.xlu0 %857
      %859 = vrot.lane.b32.xlu0 %v589, 94
      %v860 = vpop.permute.xlu0 %859
      %vm861 = vcmask 769024
      %v862 = vsel %vm861, %v844, %v846
      %v863 = vsel %vm861, %v846, %v848
      %v864 = vsel %vm861, %v848, %v850
      %v865 = vsel %vm861, %v850, %v852
      %v866 = vsel %vm861, %v852, %v854
      %v867 = vsel %vm861, %v854, %v856
      %v868 = vsel %vm861, %v856, %v858
      %v869 = vsel %vm861, %v858, %v860
      %887 = vrot.lane.b32.xlu0 %v623, 64
      %v888 = vpop.permute.xlu0 %887
      %889 = vrot.lane.b32.xlu0 %v624, 64
      %v890 = vpop.permute.xlu0 %889
      %891 = vrot.lane.b32.xlu0 %v625, 64
      %v892 = vpop.permute.xlu0 %891
      %893 = vrot.lane.b32.xlu0 %v626, 64
      %v894 = vpop.permute.xlu0 %893
      %895 = vrot.lane.b32.xlu0 %v627, 64
      %v896 = vpop.permute.xlu0 %895
      %897 = vrot.lane.b32.xlu0 %v628, 64
      %v898 = vpop.permute.xlu0 %897
      %899 = vrot.lane.b32.xlu0 %v629, 64
      %v900 = vpop.permute.xlu0 %899
      %901 = vrot.lane.b32.xlu0 %v630, 64
      %v902 = vpop.permute.xlu0 %901
      %903 = vrot.lane.b32.xlu0 %v631, 64
      %v904 = vpop.permute.xlu0 %903
      %v905 = vsel %vm606, %v888, %v890
      %v906 = vsel %vm606, %v890, %v892
      %v907 = vsel %vm606, %v892, %v894
      %v908 = vsel %vm606, %v894, %v896
      %v909 = vsel %vm606, %v896, %v898
      %v910 = vsel %vm606, %v898, %v900
      %v911 = vsel %vm606, %v900, %v902
      %v912 = vsel %vm606, %v902, %v904
      %921 = vrot.lane.b32.xlu0 %v242, 63
      %v922 = vpop.permute.xlu0 %921
      %923 = vrot.lane.b32.xlu0 %v225, 63
      %v924 = vpop.permute.xlu0 %923
      %925 = vrot.lane.b32.xlu0 %v226, 63
      %v926 = vpop.permute.xlu0 %925
      %927 = vrot.lane.b32.xlu0 %v227, 63
      %v928 = vpop.permute.xlu0 %927
      %929 = vrot.lane.b32.xlu0 %v228, 63
      %v930 = vpop.permute.xlu0 %929
      %931 = vrot.lane.b32.xlu0 %v229, 63
      %v932 = vpop.permute.xlu0 %931
      %933 = vrot.lane.b32.xlu0 %v230, 63
      %v934 = vpop.permute.xlu0 %933
      %935 = vrot.lane.b32.xlu0 %v231, 63
      %v936 = vpop.permute.xlu0 %935
      %937 = vrot.lane.b32.xlu0 %v245, 63
      %v938 = vpop.permute.xlu0 %937
      %vm939 = vcmask 515072
      %v940 = vsel %vm939, %v922, %v924
      %v941 = vsel %vm939, %v924, %v926
      %v942 = vsel %vm939, %v926, %v928
      %v943 = vsel %vm939, %v928, %v930
      %v944 = vsel %vm939, %v930, %v932
      %v945 = vsel %vm939, %v932, %v934
      %v946 = vsel %vm939, %v934, %v936
      %v947 = vsel %vm939, %v936, %v938
      %965 = vrot.lane.b32.xlu0 %v665, 62
      %v966 = vpop.permute.xlu0 %965
      %967 = vrot.lane.b32.xlu0 %v666, 62
      %v968 = vpop.permute.xlu0 %967
      %969 = vrot.lane.b32.xlu0 %v667, 62
      %v970 = vpop.permute.xlu0 %969
      %971 = vrot.lane.b32.xlu0 %v668, 62
      %v972 = vpop.permute.xlu0 %971
      %973 = vrot.lane.b32.xlu0 %v669, 62
      %v974 = vpop.permute.xlu0 %973
      %975 = vrot.lane.b32.xlu0 %v670, 62
      %v976 = vpop.permute.xlu0 %975
      %977 = vrot.lane.b32.xlu0 %v671, 62
      %v978 = vpop.permute.xlu0 %977
      %979 = vrot.lane.b32.xlu0 %v672, 62
      %v980 = vpop.permute.xlu0 %979
      %981 = vrot.lane.b32.xlu0 %v673, 62
      %v982 = vpop.permute.xlu0 %981
      %vm983 = vcmask 506880
      %v984 = vsel %vm983, %v966, %v968
      %v985 = vsel %vm983, %v968, %v970
      %v986 = vsel %vm983, %v970, %v972
      %v987 = vsel %vm983, %v972, %v974
      %v988 = vsel %vm983, %v974, %v976
      %v989 = vsel %vm983, %v976, %v978
      %v990 = vsel %vm983, %v978, %v980
      %v991 = vsel %vm983, %v980, %v982
      %1001 = vset.pattern.permute.xlu0 0
      %1002 = vperm.xlu0 %1001, %v191
      %v1003 = vpop.permute.xlu0 %1002
      %v1007 = vunpack.c.l.s4 1983009808
      %v1008 = vunpack.c.0.s8 %v1007
      %v1009 = vlaneseq
      %v1010 = vshrl.u32 %v1009, 7
      %v1011 = vsub.s32 %v1008, %v1010
      %v1012 = vrot.slane %v190, %v1011
      %v1013 = vcombine.high %v1012, %v1012
      %vm1015 = vcmask 130048
      %v1017 = vsel %vm1015, %v1013, 0
      %1019 = vmatprep.subr.bf16.mxu0 %v417
      %1020 = vmatpush1.bf16.msra.mxu0 %v416
      %1021 = vmatprep.subr.bf16.mxu0 %v696
      %1022 = vmatpush1.bf16.msra.mxu0 %v695
      %1023 = vmatprep.subr.bf16.mxu0 %v740
      %1024 = vmatpush1.bf16.msra.mxu0 %v739
      %1025 = vmatprep.subr.bf16.mxu0 %v784
      %1026 = vmatpush1.bf16.msra.mxu0 %v783
      %1027 = vmatprep.subr.bf16.mxu0 %v819
      %1028 = vmatpush1.bf16.msra.mxu0 %v818
      %1029 = vmatprep.subr.bf16.mxu0 %v863
      %1030 = vmatpush1.bf16.msra.mxu0 %v862
      %1031 = vmatprep.subr.bf16.mxu0 %v906
      %1032 = vmatpush1.bf16.msra.mxu0 %v905
      %1033 = vmatprep.subr.bf16.mxu0 %v941
      %1034 = vmatpush1.bf16.msra.mxu0 %v940
      %1035 = vmatprep.subr.bf16.mxu0 %v985
      %1036 = vmatpush1.bf16.msra.mxu0 %v984
      %1037 = vmatprep.subr.bf16.mxu0 0
      %1038 = vmatpush1.bf16.msra.mxu0 0
      %1039 = vmatprep.subr.bf16.mxu0 0
      %1040 = vmatpush1.bf16.msra.mxu0 0
      %1041 = vmatprep.subr.bf16.mxu0 0
      %1042 = vmatpush1.bf16.msra.mxu0 0
      %1043 = vmatprep.subr.bf16.mxu0 0
      %1044 = vmatpush1.bf16.msra.mxu0 0
      %1045 = vmatprep.subr.bf16.mxu0 0
      %1046 = vmatpush1.bf16.msra.mxu0 0
      %1047 = vmatprep.subr.bf16.mxu0 0
      %1048 = vmatpush1.bf16.msra.mxu0 0
      %1049 = vmatprep.subr.bf16.mxu0 0
      %1050 = vmatpush1.bf16.msra.mxu0 0
      %1051 = vmatprep.mubr.bf16.mxu0 %v1017
      %1052 = vmatmul.mubr.bf16.gmra.mrb[0].mxu0 %v1012
      %v1053 = vpop.f32.mrb[0].mxu0
      %v1054 = vadd.f32 %v1003, %v1053
      %v1055 = vpop.f32.mrb[0].mxu0
      %v1056 = vadd.f32 %v1003, %v1055
      %v1057 = vpop.f32.mrb[0].mxu0
      %v1058 = vpop.f32.mrb[0].mxu0
      %1059 = vdwg.mxu0
      %1060 = vmatprep.subr.bf16.mxu0 %v419
      %1061 = vmatpush1.bf16.msra.mxu0 %v418
      %1062 = vmatprep.subr.bf16.mxu0 %v698
      %1063 = vmatpush1.bf16.msra.mxu0 %v697
      %1064 = vmatprep.subr.bf16.mxu0 %v742
      %1065 = vmatpush1.bf16.msra.mxu0 %v741
      %1066 = vmatprep.subr.bf16.mxu0 %v786
      %1067 = vmatpush1.bf16.msra.mxu0 %v785
      %1068 = vmatprep.subr.bf16.mxu0 %v821
      %1069 = vmatpush1.bf16.msra.mxu0 %v820
      %1070 = vmatprep.subr.bf16.mxu0 %v865
      %1071 = vmatpush1.bf16.msra.mxu0 %v864
      %1072 = vmatprep.subr.bf16.mxu0 %v908
      %1073 = vmatpush1.bf16.msra.mxu0 %v907
      %1074 = vmatprep.subr.bf16.mxu0 %v943
      %1075 = vmatpush1.bf16.msra.mxu0 %v942
      %1076 = vmatprep.subr.bf16.mxu0 %v987
      %1077 = vmatpush1.bf16.msra.mxu0 %v986
      %1078 = vmatprep.subr.bf16.mxu0 0
      %1079 = vmatpush1.bf16.msra.mxu0 0
      %1080 = vmatprep.subr.bf16.mxu0 0
      %1081 = vmatpush1.bf16.msra.mxu0 0
      %1082 = vmatprep.subr.bf16.mxu0 0
      %1083 = vmatpush1.bf16.msra.mxu0 0
      %1084 = vmatprep.subr.bf16.mxu0 0
      %1085 = vmatpush1.bf16.msra.mxu0 0
      %1086 = vmatprep.subr.bf16.mxu0 0
      %1087 = vmatpush1.bf16.msra.mxu0 0
      %1088 = vmatprep.subr.bf16.mxu0 0
      %1089 = vmatpush1.bf16.msra.mxu0 0
      %1090 = vmatprep.subr.bf16.mxu0 0
      %1091 = vmatpush1.bf16.msra.mxu0 0
      %1092 = vmatprep.mubr.bf16.mxu0 %v1017
      %1093 = vmatmul.mubr.bf16.gmra.mrb[0].mxu0 %v1012
      %v1094 = vpop.f32.mrb[0].mxu0
      %v1095 = vadd.f32 %v1003, %v1094
      %v1096 = vpop.f32.mrb[0].mxu0
      %v1097 = vadd.f32 %v1003, %v1096
      %v1098 = vpop.f32.mrb[0].mxu0
      %v1099 = vpop.f32.mrb[0].mxu0
      %1100 = vdwg.mxu0
      %1101 = vmatprep.subr.bf16.mxu0 %v421
      %1102 = vmatpush1.bf16.msra.mxu0 %v420
      %1103 = vmatprep.subr.bf16.mxu0 %v700
      %1104 = vmatpush1.bf16.msra.mxu0 %v699
      %1105 = vmatprep.subr.bf16.mxu0 %v744
      %1106 = vmatpush1.bf16.msra.mxu0 %v743
      %1107 = vmatprep.subr.bf16.mxu0 %v788
      %1108 = vmatpush1.bf16.msra.mxu0 %v787
      %1109 = vmatprep.subr.bf16.mxu0 %v823
      %1110 = vmatpush1.bf16.msra.mxu0 %v822
      %1111 = vmatprep.subr.bf16.mxu0 %v867
      %1112 = vmatpush1.bf16.msra.mxu0 %v866
      %1113 = vmatprep.subr.bf16.mxu0 %v910
      %1114 = vmatpush1.bf16.msra.mxu0 %v909
      %1115 = vmatprep.subr.bf16.mxu0 %v945
      %1116 = vmatpush1.bf16.msra.mxu0 %v944
      %1117 = vmatprep.subr.bf16.mxu0 %v989
      %1118 = vmatpush1.bf16.msra.mxu0 %v988
      %1119 = vmatprep.subr.bf16.mxu0 0
      %1120 = vmatpush1.bf16.msra.mxu0 0
      %1121 = vmatprep.subr.bf16.mxu0 0
      %1122 = vmatpush1.bf16.msra.mxu0 0
      %1123 = vmatprep.subr.bf16.mxu0 0
      %1124 = vmatpush1.bf16.msra.mxu0 0
      %1125 = vmatprep.subr.bf16.mxu0 0
      %1126 = vmatpush1.bf16.msra.mxu0 0
      %1127 = vmatprep.subr.bf16.mxu0 0
      %1128 = vmatpush1.bf16.msra.mxu0 0
      %1129 = vmatprep.subr.bf16.mxu0 0
      %1130 = vmatpush1.bf16.msra.mxu0 0
      %1131 = vmatprep.subr.bf16.mxu0 0
      %1132 = vmatpush1.bf16.msra.mxu0 0
      %1133 = vmatprep.mubr.bf16.mxu0 %v1017
      %1134 = vmatmul.mubr.bf16.gmra.mrb[0].mxu0 %v1012
      %v1135 = vpop.f32.mrb[0].mxu0
      %v1136 = vadd.f32 %v1003, %v1135
      %v1137 = vpop.f32.mrb[0].mxu0
      %v1138 = vadd.f32 %v1003, %v1137
      %v1139 = vpop.f32.mrb[0].mxu0
      %v1140 = vpop.f32.mrb[0].mxu0
      %1141 = vdwg.mxu0
      %1142 = vmatprep.subr.bf16.mxu0 %v423
      %1143 = vmatpush1.bf16.msra.mxu0 %v422
      %1144 = vmatprep.subr.bf16.mxu0 %v702
      %1145 = vmatpush1.bf16.msra.mxu0 %v701
      %1146 = vmatprep.subr.bf16.mxu0 %v746
      %1147 = vmatpush1.bf16.msra.mxu0 %v745
      %1148 = vmatprep.subr.bf16.mxu0 %v790
      %1149 = vmatpush1.bf16.msra.mxu0 %v789
      %1150 = vmatprep.subr.bf16.mxu0 %v825
      %1151 = vmatpush1.bf16.msra.mxu0 %v824
      %1152 = vmatprep.subr.bf16.mxu0 %v869
      %1153 = vmatpush1.bf16.msra.mxu0 %v868
      %1154 = vmatprep.subr.bf16.mxu0 %v912
      %1155 = vmatpush1.bf16.msra.mxu0 %v911
      %1156 = vmatprep.subr.bf16.mxu0 %v947
      %1157 = vmatpush1.bf16.msra.mxu0 %v946
      %1158 = vmatprep.subr.bf16.mxu0 %v991
      %1159 = vmatpush1.bf16.msra.mxu0 %v990
      %1160 = vmatprep.subr.bf16.mxu0 0
      %1161 = vmatpush1.bf16.msra.mxu0 0
      %1162 = vmatprep.subr.bf16.mxu0 0
      %1163 = vmatpush1.bf16.msra.mxu0 0
      %1164 = vmatprep.subr.bf16.mxu0 0
      %1165 = vmatpush1.bf16.msra.mxu0 0
      %1166 = vmatprep.subr.bf16.mxu0 0
      %1167 = vmatpush1.bf16.msra.mxu0 0
      %1168 = vmatprep.subr.bf16.mxu0 0
      %1169 = vmatpush1.bf16.msra.mxu0 0
      %1170 = vmatprep.subr.bf16.mxu0 0
      %1171 = vmatpush1.bf16.msra.mxu0 0
      %1172 = vmatprep.subr.bf16.mxu0 0
      %1173 = vmatpush1.bf16.msra.mxu0 0
      %1174 = vmatprep.mubr.bf16.mxu0 %v1017
      %1175 = vmatmul.mubr.bf16.gmra.mrb[0].mxu0 %v1012
      %v1176 = vpop.f32.mrb[0].mxu0
      %v1177 = vadd.f32 %v1003, %v1176
      %v1178 = vpop.f32.mrb[0].mxu0
      %v1179 = vadd.f32 %v1003, %v1178
      %v1180 = vpop.f32.mrb[0].mxu0
      %v1181 = vpop.f32.mrb[0].mxu0
      %1182 = vdwg.mxu0
      %v1191 = vcombine.low %v1054, %v1056
      %v1192 = vcombine.low %v1095, %v1097
      %v1193 = vcombine.low %v1136, %v1138
      %v1194 = vcombine.low %v1177, %v1179
      %1199 = vst [vmem:[%s170] sm:$0xff] %v1191
      %1200 = vst [vmem:[%s170 + $0x8] sm:$0xff] %v1192
      %1201 = vst [vmem:[%s170 + $0x10] sm:$0xff] %v1193
      %1202 = vst [vmem:[%s170 + $0x18] sm:$0xff] %v1194
      %p1203 = scmp.lt.s32.totalorder %s14, 1
      %s1204 = scalar_select %p1203, %s14, 1
      %s1205 = smul.addr %s1204, 8
      %s1206 = smul.addr %s1205, 4
      %s1207 = scalar_lea.vmem %s3, %s1206
      // Predicated region
      $region33: #{_lambda_.5} parent=31 // pred_check
        %p1208 = pneg %p100
      $region34: #{_lambda_.5} parent=31 // pred_check_branch
        %1210 = sbr.rel (%p1208) target = $region36
      $region35: #{_lambda_.5} parent=31 // pred_region
        _
      $region36: #{_lambda_.5} parent=31 // pred_fallthru
        _
    $region32: #{_lambda_.5} parent=5 // pred_fallthru
      _
    %p1211 = scmp.le.s32.totalorder 2, %s9
    // Predicated region
    $region37: #{_lambda_.5} parent=5 // pred_check
      %p1212 = pneg %p1211
    $region38: #{_lambda_.5} parent=5 // pred_check_branch
      %1214 = sbr.rel (%p1212) target = $region40
    $region39: #{_lambda_.5} parent=5 // pred_region
      %s1215 = ssub.s32 %s9, 2
      // Predicated region
      $region41: #{_lambda_.5} parent=39 // pred_check
        %p1216 = pneg %p106
      $region42: #{_lambda_.5} parent=39 // pred_check_branch
        %1218 = sbr.rel (%p1216) target = $region44
      $region43: #{_lambda_.5} parent=39 // pred_region
        %p1219 = scmp.lt.s32.totalorder %s15, 1
        %s1220 = scalar_select %p1219, %s15, 1
        %s1221 = smul.addr %s1220, 8
        %s1222 = smul.addr %s1221, 4
        %s1223 = scalar_lea.vmem %s3, %s1222
      $region44: #{_lambda_.5} parent=39 // pred_fallthru
        _
    $region40: #{_lambda_.5} parent=5 // pred_fallthru
      _
  $region6: #{_lambda_.5} parent=0 // loop_footer
    %s13 = sadd.s32 1, %s9
  $region7: #{_lambda_.5} parent=0 // loop_footer_branch
    %8 = sbr.rel target = $region3
  $region8: #{_lambda_.5} parent=0 // loop_exit
    _

</llo_original>
